<compile_context>
chip_gen: v5e
topology: v5e:2x2
jax: 0.10.0
libtpu: 0.0.40
codegen_flags: <defaults>
</compile_context>

<pallas_src>
import functools

import jax
import jax.numpy as jnp
from jax.experimental import pallas as pl
from jax.experimental.pallas import tpu as pltpu

FEATURE_DIM = 64
NUM_LAYERS = 4
N_HEADS = 4


# --------------------------------------------------------------------------
# Fused kernel: whole GNN for `bt` batch elements per grid step.
# --------------------------------------------------------------------------
def _fused_gnn_kernel(feat_ref, graph_ref, *refs, n_layers, n_heads, bt):
    (wi0f, wi0g, bi0, wi1, bi1, wi2, bi2,
     wqkv, bqkv, wmrg, bmrg, wm0h, wm0m, bm0, wm1, bm1,
     wd0, bd0, wd1t, bd1,
     wo0, bo0, wo1, bo1, wo2, bo2,
     desc_ref, off_ref) = refs

    f32 = jnp.float32
    bf16 = jnp.bfloat16

    def mm(a, w):
        # bf16 MXU operands, f32 accumulation.
        return jnp.dot(a.astype(bf16), w, preferred_element_type=f32)

    def dense(h, w, b, act=None):
        y = mm(h, w) + b
        if act == "relu":
            y = jnp.maximum(y, 0.0)
        elif act == "hardtanh":
            y = jnp.clip(y, -1.0, 1.0)
        return y

    wg = wi0g[...]                                       # (2, C) f32, graph part

    def one_element(i):
        # ---- conv_init ----------------------------------------------------
        # feat arrives in torch layout (C, N); transpose once in-kernel (XLU)
        # so the rest of the network runs channels-last (N, C).  graph (N, 2)
        # contributes via two VPU broadcast multiplies (no K=2 matmul).
        x = jnp.transpose(feat_ref[i].astype(f32))       # (N, C)
        g = graph_ref[i].astype(f32)                     # (N, 2)
        h = mm(x, wi0f[...])
        h = h + g[:, 0:1] * wg[0:1, :] + g[:, 1:2] * wg[1:2, :] + bi0[...]
        h = jnp.maximum(h, 0.0)
        h = dense(h, wi1[...], bi1[...], "relu")
        h = dense(h, wi2[...], bi2[...])                 # (N, C)

        C = h.shape[-1]
        dim = C // n_heads

        # ---- attentional propagation layers (residual) ---------------------
        for l in range(n_layers):                        # static unroll (small L)
            # q/k/v fused projection; head-contiguous columns; 1/sqrt(dim)
            # already folded into the q columns + bias at param-prep time.
            qkv = dense(h, wqkv[l], bqkv[l])             # (N, 3C) f32
            wm_l = wmrg[l]                               # (C, C) bf16, head-contig rows
            acc = None
            for hh in range(n_heads):                    # static unroll
                lo = hh * dim
                qh = qkv[:, lo:lo + dim].astype(bf16)
                kh = qkv[:, C + lo:C + lo + dim].astype(bf16)
                vh = qkv[:, 2 * C + lo:2 * C + lo + dim].astype(bf16)
                # softmax(q k^T) v  (scale pre-folded); no k^T materialisation.
                s = jax.lax.dot_general(qh, kh, (((1,), (1,)), ((), ())),
                                        preferred_element_type=f32)
                s = s - jnp.max(s, axis=-1, keepdims=True)
                p = jnp.exp(s)
                p = p / jnp.sum(p, axis=-1, keepdims=True)       # exact softmax
                o_h = jnp.dot(p.astype(bf16), vh, preferred_element_type=f32)
                # per-head merge contribution: no lane concat of head outputs.
                part = mm(o_h, wm_l[lo:lo + dim, :])
                acc = part if acc is None else acc + part
            msg = acc + bmrg[l]                          # (N, C)
            # MLP on cat([h, msg]) with the first conv weight split in two
            # (C, 2C) halves -> no (N, 2C) lane-concat is materialised.
            y = mm(h, wm0h[l]) + mm(msg, wm0m[l]) + bm0[l]
            y = jnp.maximum(y, 0.0)                      # Conv + BN(fold) + ReLU
            h = h + dense(y, wm1[l], bm1[l])             # residual

        # ---- conv_desc: emit directly in (C, N) layout ----------------------
        d0 = dense(h, wd0[...], bd0[...], "relu")        # (N, C)
        # desc^T = relu(wd1^T @ d0^T + b): transposed-RHS matmul -> (C, N).
        dT = jax.lax.dot_general(wd1t[...], d0.astype(bf16),
                                 (((1,), (1,)), ((), ())),
                                 preferred_element_type=f32) + bd1[...]
        desc_ref[i] = jnp.maximum(dT, 0.0).astype(desc_ref.dtype)

        # ---- conv_offset ----------------------------------------------------
        o = dense(h, wo0[...], bo0[...], "relu")
        o = dense(o, wo1[...], bo1[...], "relu")
        o = dense(o, wo2[...], bo2[...], "hardtanh")     # (N, 2)
        off_ref[i] = o.astype(off_ref.dtype)

    for i in range(bt):                                  # static; bt is small
        one_element(i)


# --------------------------------------------------------------------------
# JAX wrapper around the single pallas_call.
# --------------------------------------------------------------------------
def _pick_batch_block(batch, n_points):
    # Amortise the ~0.35us per-grid-step overhead when per-point work is tiny,
    # but keep >=2 grid steps when possible so both v7x TensorCores get work
    # (no-op on single-TC v5e/v6e).
    if n_points > 128:
        return 1
    for bt in (8, 4, 2):
        if batch % bt == 0 and batch // bt >= 2:
            return bt
    return 1


def attentional_gnn_forward(weights, feat, graph, *, n_heads=N_HEADS,
                            batch_block=None):
    """feat: (B, C, N) (NCL, like the torch module); graph: (B, N, 2).

    Returns (desc, offset) with desc: (B, C, N), offset: (B, N, 2),
    matching AttentionalGNN.forward.
    """
    B, C, N = feat.shape
    n_layers = weights[7].shape[0]                       # stacked Wqkv
    bt = batch_block if batch_block is not None else _pick_batch_block(B, N)
    assert B % bt == 0
    nb = B // bt

    def const_spec(a):                                   # VMEM-resident weights
        zeros = (0,) * a.ndim
        return pl.BlockSpec(a.shape, lambda b, _z=zeros: _z)

    in_specs = [pl.BlockSpec((bt, C, N), lambda b: (b, 0, 0)),
                pl.BlockSpec((bt, N, 2), lambda b: (b, 0, 0))]
    in_specs += [const_spec(w) for w in weights]

    kern = functools.partial(_fused_gnn_kernel, n_layers=n_layers,
                             n_heads=n_heads, bt=bt)
    desc, offset = pl.pallas_call(
        kern,
        out_shape=(jax.ShapeDtypeStruct((B, C, N), jnp.float32),
                   jax.ShapeDtypeStruct((B, N, 2), jnp.float32)),
        grid=(nb,),
        in_specs=in_specs,
        out_specs=(pl.BlockSpec((bt, C, N), lambda b: (b, 0, 0)),
                   pl.BlockSpec((bt, N, 2), lambda b: (b, 0, 0))),
        compiler_params=pltpu.CompilerParams(
            dimension_semantics=("parallel",),
            vmem_limit_bytes=64 * 1024 * 1024),
    )(feat, graph, *weights)
    return desc, offset


# --------------------------------------------------------------------------
# Deterministic synthetic parameters (no checkpoint load).
# --------------------------------------------------------------------------
def _conv_init(key, cin, cout, zero_bias=False):
    kw, kb = jax.random.split(key)
    bound = 1.0 / (cin ** 0.5)
    w = jax.random.uniform(kw, (cin, cout), jnp.float32, -bound, bound)
    b = (jnp.zeros((cout,), jnp.float32) if zero_bias else
         jax.random.uniform(kb, (cout,), jnp.float32, -bound, bound))
    return w, b


def _fold_bn(w, b, eps=1e-5):
    # Eval-mode BatchNorm1d (gamma=1, beta=0, running_mean=0, running_var=1)
    # folded into the preceding 1x1 conv.
    cout = w.shape[1]
    scale = jax.lax.rsqrt(jnp.ones((cout,), jnp.float32) + eps)
    return w * scale[None, :], b * scale


def _head_perm(channels, n_heads):
    # torch channel layout: c = d * n_heads + h  ->  head-contiguous: h*dim + d
    dim = channels // n_heads
    new = jnp.arange(channels)
    return (new % dim) * n_heads + (new // dim)          # perm[new] = old


def init_params(key, feature_dim=FEATURE_DIM, num_layers=NUM_LAYERS,
                n_heads=N_HEADS):
    keys = iter(jax.random.split(key, 8 + 8 * num_layers))
    bf16 = jnp.bfloat16

    # conv_init: Conv+BN+ReLU, Conv+BN+ReLU, Conv.  First conv split into the
    # feat part (C, C) and the graph part (2, C).
    wi0, bi0 = _fold_bn(*_conv_init(next(keys), feature_dim + 2, feature_dim))
    wi1, bi1 = _fold_bn(*_conv_init(next(keys), feature_dim, feature_dim))
    wi2, bi2 = _conv_init(next(keys), feature_dim, feature_dim)
    wi0f, wi0g = wi0[:feature_dim, :], wi0[feature_dim:, :]

    dim = feature_dim // n_heads
    qscale = 1.0 / (dim ** 0.5)
    perm = _head_perm(feature_dim, n_heads)

    l_wqkv, l_bqkv, l_wmrg, l_bmrg = [], [], [], []
    l_wm0h, l_wm0m, l_bm0, l_wm1, l_bm1 = [], [], [], [], []
    for _ in range(num_layers):
        wq, bq = _conv_init(next(keys), feature_dim, feature_dim)
        wk, bk = _conv_init(next(keys), feature_dim, feature_dim)
        wv, bv = _conv_init(next(keys), feature_dim, feature_dim)
        wm, bm = _conv_init(next(keys), feature_dim, feature_dim)
        # Head-contiguous permutation (q/k/v columns, merge rows) -- exact.
        # The 1/sqrt(dim) attention scale is folded into q (weights + bias).
        wq, bq = wq[:, perm] * qscale, bq[perm] * qscale
        wk, bk = wk[:, perm], bk[perm]
        wv, bv = wv[:, perm], bv[perm]
        wm = wm[perm, :]
        l_wqkv.append(jnp.concatenate([wq, wk, wv], axis=1))      # (C, 3C)
        l_bqkv.append(jnp.concatenate([bq, bk, bv])[None, :])     # (1, 3C)
        l_wmrg.append(wm)
        l_bmrg.append(bm[None, :])
        # MLP([2C, 2C, C]): Conv+BN+ReLU (weight split in two halves), Conv.
        w0, b0 = _fold_bn(*_conv_init(next(keys), 2 * feature_dim,
                                      2 * feature_dim))
        w1, b1 = _conv_init(next(keys), 2 * feature_dim, feature_dim,
                            zero_bias=True)
        l_wm0h.append(w0[:feature_dim, :])
        l_wm0m.append(w0[feature_dim:, :])
        l_bm0.append(b0[None, :])
        l_wm1.append(w1)
        l_bm1.append(b1[None, :])

    # conv_desc: (Conv+BN+ReLU) x2; second conv stored transposed so the
    # kernel can emit desc directly in (C, N) layout.
    wd0, bd0 = _fold_bn(*_conv_init(next(keys), feature_dim, feature_dim))
    wd1, bd1 = _fold_bn(*_conv_init(next(keys), feature_dim, feature_dim))
    # conv_offset: (Conv+BN+ReLU) x2, Conv(->2), Hardtanh
    wo0, bo0 = _fold_bn(*_conv_init(next(keys), feature_dim, feature_dim))
    wo1, bo1 = _fold_bn(*_conv_init(next(keys), feature_dim, feature_dim))
    wo2, bo2 = _conv_init(next(keys), feature_dim, 2)

    stack = lambda xs: jnp.stack(xs, axis=0)
    cast = lambda w: w.astype(bf16)                      # matmul weights -> bf16
    return [
        cast(wi0f), wi0g, bi0[None, :],
        cast(wi1), bi1[None, :], cast(wi2), bi2[None, :],
        cast(stack(l_wqkv)), stack(l_bqkv), cast(stack(l_wmrg)), stack(l_bmrg),
        cast(stack(l_wm0h)), cast(stack(l_wm0m)), stack(l_bm0),
        cast(stack(l_wm1)), stack(l_bm1),
        cast(wd0), bd0[None, :], cast(wd1.T), bd1[:, None],
        cast(wo0), bo0[None, :], cast(wo1), bo1[None, :],
        cast(wo2), bo2[None, :],
    ]


# --------------------------------------------------------------------------
if __name__ == "__main__":
    key = jax.random.PRNGKey(0)
    kp, kf, kg = jax.random.split(key, 3)
    B, N = 2, 16
    weights = init_params(kp)
    feat = jax.random.normal(kf, (B, FEATURE_DIM, N), jnp.float32)
    graph = jax.random.uniform(kg, (B, N, 2), jnp.float32, -1.0, 1.0)

    fwd = jax.jit(attentional_gnn_forward)
    desc, offset = fwd(weights, feat, graph)
    jax.block_until_ready((desc, offset))

    assert desc.shape == (B, FEATURE_DIM, N)
    assert offset.shape == (B, N, 2)
    assert bool(jnp.all(jnp.isfinite(desc)))
    assert bool(jnp.all(jnp.isfinite(offset)))
    assert bool(jnp.all(jnp.abs(offset) <= 1.0 + 1e-6))   # Hardtanh range
    print("KERNEL_OK")
</pallas_src>

<mosaic_0001>
module attributes {stable_mosaic.version = 11 : i64} {
  func.func @_fused_gnn_kernel(%arg0: i32, %arg1: memref<1x64x16xf32, #tpu.memory_space<vmem>>, %arg2: memref<1x16x2xf32, #tpu.memory_space<vmem>>, %arg3: memref<64x64xbf16, #tpu.memory_space<vmem>>, %arg4: memref<2x64xf32, #tpu.memory_space<vmem>>, %arg5: memref<1x64xf32, #tpu.memory_space<vmem>>, %arg6: memref<64x64xbf16, #tpu.memory_space<vmem>>, %arg7: memref<1x64xf32, #tpu.memory_space<vmem>>, %arg8: memref<64x64xbf16, #tpu.memory_space<vmem>>, %arg9: memref<1x64xf32, #tpu.memory_space<vmem>>, %arg10: memref<4x64x192xbf16, #tpu.memory_space<vmem>>, %arg11: memref<4x1x192xf32, #tpu.memory_space<vmem>>, %arg12: memref<4x64x64xbf16, #tpu.memory_space<vmem>>, %arg13: memref<4x1x64xf32, #tpu.memory_space<vmem>>, %arg14: memref<4x64x128xbf16, #tpu.memory_space<vmem>>, %arg15: memref<4x64x128xbf16, #tpu.memory_space<vmem>>, %arg16: memref<4x1x128xf32, #tpu.memory_space<vmem>>, %arg17: memref<4x128x64xbf16, #tpu.memory_space<vmem>>, %arg18: memref<4x1x64xf32, #tpu.memory_space<vmem>>, %arg19: memref<64x64xbf16, #tpu.memory_space<vmem>>, %arg20: memref<1x64xf32, #tpu.memory_space<vmem>>, %arg21: memref<64x64xbf16, #tpu.memory_space<vmem>>, %arg22: memref<64x1xf32, #tpu.memory_space<vmem>>, %arg23: memref<64x64xbf16, #tpu.memory_space<vmem>>, %arg24: memref<1x64xf32, #tpu.memory_space<vmem>>, %arg25: memref<64x64xbf16, #tpu.memory_space<vmem>>, %arg26: memref<1x64xf32, #tpu.memory_space<vmem>>, %arg27: memref<64x2xbf16, #tpu.memory_space<vmem>>, %arg28: memref<1x2xf32, #tpu.memory_space<vmem>>, %arg29: memref<1x64x16xf32, #tpu.memory_space<vmem>>, %arg30: memref<1x16x2xf32, #tpu.memory_space<vmem>>) attributes {dimension_semantics = [#tpu.dimension_semantics<parallel>], iteration_bounds = array<i64: 2>, scalar_prefetch = 0 : i64, scratch_operands = 0 : i64, tpu.core_type = #tpu.core_type<tc>, window_params = [{transform_indices = @transform_0, window_bounds = array<i64: 1, 64, 16>}, {transform_indices = @transform_1, window_bounds = array<i64: 1, 16, 2>}, {pipeline_mode = #tpu.pipeline_mode<synchronous>, transform_indices = @transform_2, window_bounds = array<i64: 64, 64>}, {pipeline_mode = #tpu.pipeline_mode<synchronous>, transform_indices = @transform_3, window_bounds = array<i64: 2, 64>}, {pipeline_mode = #tpu.pipeline_mode<synchronous>, transform_indices = @transform_4, window_bounds = array<i64: 1, 64>}, {pipeline_mode = #tpu.pipeline_mode<synchronous>, transform_indices = @transform_5, window_bounds = array<i64: 64, 64>}, {pipeline_mode = #tpu.pipeline_mode<synchronous>, transform_indices = @transform_6, window_bounds = array<i64: 1, 64>}, {pipeline_mode = #tpu.pipeline_mode<synchronous>, transform_indices = @transform_7, window_bounds = array<i64: 64, 64>}, {pipeline_mode = #tpu.pipeline_mode<synchronous>, transform_indices = @transform_8, window_bounds = array<i64: 1, 64>}, {pipeline_mode = #tpu.pipeline_mode<synchronous>, transform_indices = @transform_9, window_bounds = array<i64: 4, 64, 192>}, {pipeline_mode = #tpu.pipeline_mode<synchronous>, transform_indices = @transform_10, window_bounds = array<i64: 4, 1, 192>}, {pipeline_mode = #tpu.pipeline_mode<synchronous>, transform_indices = @transform_11, window_bounds = array<i64: 4, 64, 64>}, {pipeline_mode = #tpu.pipeline_mode<synchronous>, transform_indices = @transform_12, window_bounds = array<i64: 4, 1, 64>}, {pipeline_mode = #tpu.pipeline_mode<synchronous>, transform_indices = @transform_13, window_bounds = array<i64: 4, 64, 128>}, {pipeline_mode = #tpu.pipeline_mode<synchronous>, transform_indices = @transform_14, window_bounds = array<i64: 4, 64, 128>}, {pipeline_mode = #tpu.pipeline_mode<synchronous>, transform_indices = @transform_15, window_bounds = array<i64: 4, 1, 128>}, {pipeline_mode = #tpu.pipeline_mode<synchronous>, transform_indices = @transform_16, window_bounds = array<i64: 4, 128, 64>}, {pipeline_mode = #tpu.pipeline_mode<synchronous>, transform_indices = @transform_17, window_bounds = array<i64: 4, 1, 64>}, {pipeline_mode = #tpu.pipeline_mode<synchronous>, transform_indices = @transform_18, window_bounds = array<i64: 64, 64>}, {pipeline_mode = #tpu.pipeline_mode<synchronous>, transform_indices = @transform_19, window_bounds = array<i64: 1, 64>}, {pipeline_mode = #tpu.pipeline_mode<synchronous>, transform_indices = @transform_20, window_bounds = array<i64: 64, 64>}, {pipeline_mode = #tpu.pipeline_mode<synchronous>, transform_indices = @transform_21, window_bounds = array<i64: 64, 1>}, {pipeline_mode = #tpu.pipeline_mode<synchronous>, transform_indices = @transform_22, window_bounds = array<i64: 64, 64>}, {pipeline_mode = #tpu.pipeline_mode<synchronous>, transform_indices = @transform_23, window_bounds = array<i64: 1, 64>}, {pipeline_mode = #tpu.pipeline_mode<synchronous>, transform_indices = @transform_24, window_bounds = array<i64: 64, 64>}, {pipeline_mode = #tpu.pipeline_mode<synchronous>, transform_indices = @transform_25, window_bounds = array<i64: 1, 64>}, {pipeline_mode = #tpu.pipeline_mode<synchronous>, transform_indices = @transform_26, window_bounds = array<i64: 64, 2>}, {pipeline_mode = #tpu.pipeline_mode<synchronous>, transform_indices = @transform_27, window_bounds = array<i64: 1, 2>}, {transform_indices = @transform_28, window_bounds = array<i64: 1, 64, 16>}, {transform_indices = @transform_29, window_bounds = array<i64: 1, 16, 2>}]} {
    %c0 = arith.constant 0 : index
    %c0_0 = arith.constant 0 : index
    %0 = vector.load %arg4[%c0, %c0_0] : memref<2x64xf32, #tpu.memory_space<vmem>>, vector<2x64xf32>
    %c0_1 = arith.constant 0 : index
    %c0_2 = arith.constant 0 : index
    %c0_3 = arith.constant 0 : index
    %1 = vector.load %arg1[%c0_1, %c0_2, %c0_3] : memref<1x64x16xf32, #tpu.memory_space<vmem>>, vector<1x64x16xf32>
    %2 = vector.shape_cast %1 : vector<1x64x16xf32> to vector<64x16xf32>
    %3 = tpu.transpose %2, [1, 0] : vector<64x16xf32> -> vector<16x64xf32>
    %c0_4 = arith.constant 0 : index
    %c0_5 = arith.constant 0 : index
    %c0_6 = arith.constant 0 : index
    %4 = vector.load %arg2[%c0_4, %c0_5, %c0_6] : memref<1x16x2xf32, #tpu.memory_space<vmem>>, vector<1x16x2xf32>
    %5 = vector.shape_cast %4 : vector<1x16x2xf32> to vector<16x2xf32>
    %c0_7 = arith.constant 0 : index
    %c0_8 = arith.constant 0 : index
    %6 = vector.load %arg3[%c0_7, %c0_8] : memref<64x64xbf16, #tpu.memory_space<vmem>>, vector<64x64xbf16>
    %7 = arith.truncf %3 : vector<16x64xf32> to vector<16x64xbf16>
    %cst = arith.constant dense<0.000000e+00> : vector<16x64xf32>
    %8 = tpu.matmul %7, %6, %cst {dimension_numbers = #tpu.dot_dimension_numbers<[1], [0], [0], [1], [0, 0, 1, 1], [], []>} : vector<16x64xbf16>, vector<64x64xbf16>, vector<16x64xf32> -> vector<16x64xf32>
    %9 = vector.extract_strided_slice %5 {offsets = [0, 0], sizes = [16, 1], strides = [1, 1]} : vector<16x2xf32> to vector<16x1xf32>
    %10 = vector.extract_strided_slice %0 {offsets = [0, 0], sizes = [1, 64], strides = [1, 1]} : vector<2x64xf32> to vector<1x64xf32>
    %11 = vector.broadcast %9 : vector<16x1xf32> to vector<16x64xf32>
    %12 = vector.broadcast %10 : vector<1x64xf32> to vector<16x64xf32>
    %13 = arith.mulf %11, %12 : vector<16x64xf32>
    %14 = arith.addf %8, %13 : vector<16x64xf32>
    %15 = vector.extract_strided_slice %5 {offsets = [0, 1], sizes = [16, 1], strides = [1, 1]} : vector<16x2xf32> to vector<16x1xf32>
    %16 = vector.extract_strided_slice %0 {offsets = [1, 0], sizes = [1, 64], strides = [1, 1]} : vector<2x64xf32> to vector<1x64xf32>
    %17 = vector.broadcast %15 : vector<16x1xf32> to vector<16x64xf32>
    %18 = vector.broadcast %16 : vector<1x64xf32> to vector<16x64xf32>
    %19 = arith.mulf %17, %18 : vector<16x64xf32>
    %20 = arith.addf %14, %19 : vector<16x64xf32>
    %c0_9 = arith.constant 0 : index
    %c0_10 = arith.constant 0 : index
    %21 = vector.load %arg5[%c0_9, %c0_10] : memref<1x64xf32, #tpu.memory_space<vmem>>, vector<1x64xf32>
    %22 = vector.broadcast %21 : vector<1x64xf32> to vector<16x64xf32>
    %23 = arith.addf %20, %22 : vector<16x64xf32>
    %cst_11 = arith.constant 0.000000e+00 : f32
    %24 = vector.broadcast %cst_11 : f32 to vector<16x64xf32>
    %25 = arith.maximumf %23, %24 : vector<16x64xf32>
    %c0_12 = arith.constant 0 : index
    %c0_13 = arith.constant 0 : index
    %26 = vector.load %arg6[%c0_12, %c0_13] : memref<64x64xbf16, #tpu.memory_space<vmem>>, vector<64x64xbf16>
    %c0_14 = arith.constant 0 : index
    %c0_15 = arith.constant 0 : index
    %27 = vector.load %arg7[%c0_14, %c0_15] : memref<1x64xf32, #tpu.memory_space<vmem>>, vector<1x64xf32>
    %28 = arith.truncf %25 : vector<16x64xf32> to vector<16x64xbf16>
    %cst_16 = arith.constant dense<0.000000e+00> : vector<16x64xf32>
    %29 = tpu.matmul %28, %26, %cst_16 {dimension_numbers = #tpu.dot_dimension_numbers<[1], [0], [0], [1], [0, 0, 1, 1], [], []>} : vector<16x64xbf16>, vector<64x64xbf16>, vector<16x64xf32> -> vector<16x64xf32>
    %30 = vector.broadcast %27 : vector<1x64xf32> to vector<16x64xf32>
    %31 = arith.addf %29, %30 : vector<16x64xf32>
    %cst_17 = arith.constant 0.000000e+00 : f32
    %32 = vector.broadcast %cst_17 : f32 to vector<16x64xf32>
    %33 = arith.maximumf %31, %32 : vector<16x64xf32>
    %c0_18 = arith.constant 0 : index
    %c0_19 = arith.constant 0 : index
    %34 = vector.load %arg8[%c0_18, %c0_19] : memref<64x64xbf16, #tpu.memory_space<vmem>>, vector<64x64xbf16>
    %c0_20 = arith.constant 0 : index
    %c0_21 = arith.constant 0 : index
    %35 = vector.load %arg9[%c0_20, %c0_21] : memref<1x64xf32, #tpu.memory_space<vmem>>, vector<1x64xf32>
    %36 = arith.truncf %33 : vector<16x64xf32> to vector<16x64xbf16>
    %cst_22 = arith.constant dense<0.000000e+00> : vector<16x64xf32>
    %37 = tpu.matmul %36, %34, %cst_22 {dimension_numbers = #tpu.dot_dimension_numbers<[1], [0], [0], [1], [0, 0, 1, 1], [], []>} : vector<16x64xbf16>, vector<64x64xbf16>, vector<16x64xf32> -> vector<16x64xf32>
    %38 = vector.broadcast %35 : vector<1x64xf32> to vector<16x64xf32>
    %39 = arith.addf %37, %38 : vector<16x64xf32>
    %c0_23 = arith.constant 0 : index
    %c0_24 = arith.constant 0 : index
    %c0_25 = arith.constant 0 : index
    %40 = vector.load %arg10[%c0_23, %c0_24, %c0_25] : memref<4x64x192xbf16, #tpu.memory_space<vmem>>, vector<1x64x192xbf16>
    %41 = vector.shape_cast %40 : vector<1x64x192xbf16> to vector<64x192xbf16>
    %c0_26 = arith.constant 0 : index
    %c0_27 = arith.constant 0 : index
    %c0_28 = arith.constant 0 : index
    %42 = vector.load %arg11[%c0_26, %c0_27, %c0_28] : memref<4x1x192xf32, #tpu.memory_space<vmem>>, vector<1x1x192xf32>
    %43 = vector.shape_cast %42 : vector<1x1x192xf32> to vector<1x192xf32>
    %44 = arith.truncf %39 : vector<16x64xf32> to vector<16x64xbf16>
    %cst_29 = arith.constant dense<0.000000e+00> : vector<16x192xf32>
    %45 = tpu.matmul %44, %41, %cst_29 {dimension_numbers = #tpu.dot_dimension_numbers<[1], [0], [0], [1], [0, 0, 1, 1], [], []>} : vector<16x64xbf16>, vector<64x192xbf16>, vector<16x192xf32> -> vector<16x192xf32>
    %46 = vector.broadcast %43 : vector<1x192xf32> to vector<16x192xf32>
    %47 = arith.addf %45, %46 : vector<16x192xf32>
    %c0_30 = arith.constant 0 : index
    %c0_31 = arith.constant 0 : index
    %c0_32 = arith.constant 0 : index
    %48 = vector.load %arg12[%c0_30, %c0_31, %c0_32] : memref<4x64x64xbf16, #tpu.memory_space<vmem>>, vector<1x64x64xbf16>
    %49 = vector.shape_cast %48 : vector<1x64x64xbf16> to vector<64x64xbf16>
    %50 = vector.extract_strided_slice %47 {offsets = [0, 0], sizes = [16, 16], strides = [1, 1]} : vector<16x192xf32> to vector<16x16xf32>
    %51 = arith.truncf %50 : vector<16x16xf32> to vector<16x16xbf16>
    %52 = vector.extract_strided_slice %47 {offsets = [0, 64], sizes = [16, 16], strides = [1, 1]} : vector<16x192xf32> to vector<16x16xf32>
    %53 = arith.truncf %52 : vector<16x16xf32> to vector<16x16xbf16>
    %54 = vector.extract_strided_slice %47 {offsets = [0, 128], sizes = [16, 16], strides = [1, 1]} : vector<16x192xf32> to vector<16x16xf32>
    %55 = arith.truncf %54 : vector<16x16xf32> to vector<16x16xbf16>
    %cst_33 = arith.constant dense<0.000000e+00> : vector<16x16xf32>
    %56 = tpu.matmul %51, %53, %cst_33 {dimension_numbers = #tpu.dot_dimension_numbers<[1], [1], [0], [0], [0, 0, 1, 0], [], []>} : vector<16x16xbf16>, vector<16x16xbf16>, vector<16x16xf32> -> vector<16x16xf32>
    %cst_34 = arith.constant dense<0xFF800000> : vector<16xf32>
    %57 = vector.multi_reduction <maximumf>, %56, %cst_34 [1] : vector<16x16xf32> to vector<16xf32>
    %58 = vector.shape_cast %57 : vector<16xf32> to vector<16x1xf32>
    %59 = vector.broadcast %58 : vector<16x1xf32> to vector<16x16xf32>
    %60 = arith.subf %56, %59 : vector<16x16xf32>
    %61 = math.exp %60 : vector<16x16xf32>
    %cst_35 = arith.constant dense<0.000000e+00> : vector<16xf32>
    %62 = vector.multi_reduction <add>, %61, %cst_35 [1] : vector<16x16xf32> to vector<16xf32>
    %63 = vector.shape_cast %62 : vector<16xf32> to vector<16x1xf32>
    %64 = vector.broadcast %63 : vector<16x1xf32> to vector<16x16xf32>
    %65 = arith.divf %61, %64 : vector<16x16xf32>
    %66 = arith.truncf %65 : vector<16x16xf32> to vector<16x16xbf16>
    %cst_36 = arith.constant dense<0.000000e+00> : vector<16x16xf32>
    %67 = tpu.matmul %66, %55, %cst_36 {dimension_numbers = #tpu.dot_dimension_numbers<[1], [0], [0], [1], [0, 0, 1, 1], [], []>} : vector<16x16xbf16>, vector<16x16xbf16>, vector<16x16xf32> -> vector<16x16xf32>
    %68 = vector.extract_strided_slice %49 {offsets = [0, 0], sizes = [16, 64], strides = [1, 1]} : vector<64x64xbf16> to vector<16x64xbf16>
    %69 = arith.truncf %67 : vector<16x16xf32> to vector<16x16xbf16>
    %cst_37 = arith.constant dense<0.000000e+00> : vector<16x64xf32>
    %70 = tpu.matmul %69, %68, %cst_37 {dimension_numbers = #tpu.dot_dimension_numbers<[1], [0], [0], [1], [0, 0, 1, 1], [], []>} : vector<16x16xbf16>, vector<16x64xbf16>, vector<16x64xf32> -> vector<16x64xf32>
    %71 = vector.extract_strided_slice %47 {offsets = [0, 16], sizes = [16, 16], strides = [1, 1]} : vector<16x192xf32> to vector<16x16xf32>
    %72 = arith.truncf %71 : vector<16x16xf32> to vector<16x16xbf16>
    %73 = vector.extract_strided_slice %47 {offsets = [0, 80], sizes = [16, 16], strides = [1, 1]} : vector<16x192xf32> to vector<16x16xf32>
    %74 = arith.truncf %73 : vector<16x16xf32> to vector<16x16xbf16>
    %75 = vector.extract_strided_slice %47 {offsets = [0, 144], sizes = [16, 16], strides = [1, 1]} : vector<16x192xf32> to vector<16x16xf32>
    %76 = arith.truncf %75 : vector<16x16xf32> to vector<16x16xbf16>
    %cst_38 = arith.constant dense<0.000000e+00> : vector<16x16xf32>
    %77 = tpu.matmul %72, %74, %cst_38 {dimension_numbers = #tpu.dot_dimension_numbers<[1], [1], [0], [0], [0, 0, 1, 0], [], []>} : vector<16x16xbf16>, vector<16x16xbf16>, vector<16x16xf32> -> vector<16x16xf32>
    %cst_39 = arith.constant dense<0xFF800000> : vector<16xf32>
    %78 = vector.multi_reduction <maximumf>, %77, %cst_39 [1] : vector<16x16xf32> to vector<16xf32>
    %79 = vector.shape_cast %78 : vector<16xf32> to vector<16x1xf32>
    %80 = vector.broadcast %79 : vector<16x1xf32> to vector<16x16xf32>
    %81 = arith.subf %77, %80 : vector<16x16xf32>
    %82 = math.exp %81 : vector<16x16xf32>
    %cst_40 = arith.constant dense<0.000000e+00> : vector<16xf32>
    %83 = vector.multi_reduction <add>, %82, %cst_40 [1] : vector<16x16xf32> to vector<16xf32>
    %84 = vector.shape_cast %83 : vector<16xf32> to vector<16x1xf32>
    %85 = vector.broadcast %84 : vector<16x1xf32> to vector<16x16xf32>
    %86 = arith.divf %82, %85 : vector<16x16xf32>
    %87 = arith.truncf %86 : vector<16x16xf32> to vector<16x16xbf16>
    %cst_41 = arith.constant dense<0.000000e+00> : vector<16x16xf32>
    %88 = tpu.matmul %87, %76, %cst_41 {dimension_numbers = #tpu.dot_dimension_numbers<[1], [0], [0], [1], [0, 0, 1, 1], [], []>} : vector<16x16xbf16>, vector<16x16xbf16>, vector<16x16xf32> -> vector<16x16xf32>
    %89 = vector.extract_strided_slice %49 {offsets = [16, 0], sizes = [16, 64], strides = [1, 1]} : vector<64x64xbf16> to vector<16x64xbf16>
    %90 = arith.truncf %88 : vector<16x16xf32> to vector<16x16xbf16>
    %cst_42 = arith.constant dense<0.000000e+00> : vector<16x64xf32>
    %91 = tpu.matmul %90, %89, %cst_42 {dimension_numbers = #tpu.dot_dimension_numbers<[1], [0], [0], [1], [0, 0, 1, 1], [], []>} : vector<16x16xbf16>, vector<16x64xbf16>, vector<16x64xf32> -> vector<16x64xf32>
    %92 = arith.addf %70, %91 : vector<16x64xf32>
    %93 = vector.extract_strided_slice %47 {offsets = [0, 32], sizes = [16, 16], strides = [1, 1]} : vector<16x192xf32> to vector<16x16xf32>
    %94 = arith.truncf %93 : vector<16x16xf32> to vector<16x16xbf16>
    %95 = vector.extract_strided_slice %47 {offsets = [0, 96], sizes = [16, 16], strides = [1, 1]} : vector<16x192xf32> to vector<16x16xf32>
    %96 = arith.truncf %95 : vector<16x16xf32> to vector<16x16xbf16>
    %97 = vector.extract_strided_slice %47 {offsets = [0, 160], sizes = [16, 16], strides = [1, 1]} : vector<16x192xf32> to vector<16x16xf32>
    %98 = arith.truncf %97 : vector<16x16xf32> to vector<16x16xbf16>
    %cst_43 = arith.constant dense<0.000000e+00> : vector<16x16xf32>
    %99 = tpu.matmul %94, %96, %cst_43 {dimension_numbers = #tpu.dot_dimension_numbers<[1], [1], [0], [0], [0, 0, 1, 0], [], []>} : vector<16x16xbf16>, vector<16x16xbf16>, vector<16x16xf32> -> vector<16x16xf32>
    %cst_44 = arith.constant dense<0xFF800000> : vector<16xf32>
    %100 = vector.multi_reduction <maximumf>, %99, %cst_44 [1] : vector<16x16xf32> to vector<16xf32>
    %101 = vector.shape_cast %100 : vector<16xf32> to vector<16x1xf32>
    %102 = vector.broadcast %101 : vector<16x1xf32> to vector<16x16xf32>
    %103 = arith.subf %99, %102 : vector<16x16xf32>
    %104 = math.exp %103 : vector<16x16xf32>
    %cst_45 = arith.constant dense<0.000000e+00> : vector<16xf32>
    %105 = vector.multi_reduction <add>, %104, %cst_45 [1] : vector<16x16xf32> to vector<16xf32>
    %106 = vector.shape_cast %105 : vector<16xf32> to vector<16x1xf32>
    %107 = vector.broadcast %106 : vector<16x1xf32> to vector<16x16xf32>
    %108 = arith.divf %104, %107 : vector<16x16xf32>
    %109 = arith.truncf %108 : vector<16x16xf32> to vector<16x16xbf16>
    %cst_46 = arith.constant dense<0.000000e+00> : vector<16x16xf32>
    %110 = tpu.matmul %109, %98, %cst_46 {dimension_numbers = #tpu.dot_dimension_numbers<[1], [0], [0], [1], [0, 0, 1, 1], [], []>} : vector<16x16xbf16>, vector<16x16xbf16>, vector<16x16xf32> -> vector<16x16xf32>
    %111 = vector.extract_strided_slice %49 {offsets = [32, 0], sizes = [16, 64], strides = [1, 1]} : vector<64x64xbf16> to vector<16x64xbf16>
    %112 = arith.truncf %110 : vector<16x16xf32> to vector<16x16xbf16>
    %cst_47 = arith.constant dense<0.000000e+00> : vector<16x64xf32>
    %113 = tpu.matmul %112, %111, %cst_47 {dimension_numbers = #tpu.dot_dimension_numbers<[1], [0], [0], [1], [0, 0, 1, 1], [], []>} : vector<16x16xbf16>, vector<16x64xbf16>, vector<16x64xf32> -> vector<16x64xf32>
    %114 = arith.addf %92, %113 : vector<16x64xf32>
    %115 = vector.extract_strided_slice %47 {offsets = [0, 48], sizes = [16, 16], strides = [1, 1]} : vector<16x192xf32> to vector<16x16xf32>
    %116 = arith.truncf %115 : vector<16x16xf32> to vector<16x16xbf16>
    %117 = vector.extract_strided_slice %47 {offsets = [0, 112], sizes = [16, 16], strides = [1, 1]} : vector<16x192xf32> to vector<16x16xf32>
    %118 = arith.truncf %117 : vector<16x16xf32> to vector<16x16xbf16>
    %119 = vector.extract_strided_slice %47 {offsets = [0, 176], sizes = [16, 16], strides = [1, 1]} : vector<16x192xf32> to vector<16x16xf32>
    %120 = arith.truncf %119 : vector<16x16xf32> to vector<16x16xbf16>
    %cst_48 = arith.constant dense<0.000000e+00> : vector<16x16xf32>
    %121 = tpu.matmul %116, %118, %cst_48 {dimension_numbers = #tpu.dot_dimension_numbers<[1], [1], [0], [0], [0, 0, 1, 0], [], []>} : vector<16x16xbf16>, vector<16x16xbf16>, vector<16x16xf32> -> vector<16x16xf32>
    %cst_49 = arith.constant dense<0xFF800000> : vector<16xf32>
    %122 = vector.multi_reduction <maximumf>, %121, %cst_49 [1] : vector<16x16xf32> to vector<16xf32>
    %123 = vector.shape_cast %122 : vector<16xf32> to vector<16x1xf32>
    %124 = vector.broadcast %123 : vector<16x1xf32> to vector<16x16xf32>
    %125 = arith.subf %121, %124 : vector<16x16xf32>
    %126 = math.exp %125 : vector<16x16xf32>
    %cst_50 = arith.constant dense<0.000000e+00> : vector<16xf32>
    %127 = vector.multi_reduction <add>, %126, %cst_50 [1] : vector<16x16xf32> to vector<16xf32>
    %128 = vector.shape_cast %127 : vector<16xf32> to vector<16x1xf32>
    %129 = vector.broadcast %128 : vector<16x1xf32> to vector<16x16xf32>
    %130 = arith.divf %126, %129 : vector<16x16xf32>
    %131 = arith.truncf %130 : vector<16x16xf32> to vector<16x16xbf16>
    %cst_51 = arith.constant dense<0.000000e+00> : vector<16x16xf32>
    %132 = tpu.matmul %131, %120, %cst_51 {dimension_numbers = #tpu.dot_dimension_numbers<[1], [0], [0], [1], [0, 0, 1, 1], [], []>} : vector<16x16xbf16>, vector<16x16xbf16>, vector<16x16xf32> -> vector<16x16xf32>
    %133 = vector.extract_strided_slice %49 {offsets = [48, 0], sizes = [16, 64], strides = [1, 1]} : vector<64x64xbf16> to vector<16x64xbf16>
    %134 = arith.truncf %132 : vector<16x16xf32> to vector<16x16xbf16>
    %cst_52 = arith.constant dense<0.000000e+00> : vector<16x64xf32>
    %135 = tpu.matmul %134, %133, %cst_52 {dimension_numbers = #tpu.dot_dimension_numbers<[1], [0], [0], [1], [0, 0, 1, 1], [], []>} : vector<16x16xbf16>, vector<16x64xbf16>, vector<16x64xf32> -> vector<16x64xf32>
    %136 = arith.addf %114, %135 : vector<16x64xf32>
    %c0_53 = arith.constant 0 : index
    %c0_54 = arith.constant 0 : index
    %c0_55 = arith.constant 0 : index
    %137 = vector.load %arg13[%c0_53, %c0_54, %c0_55] : memref<4x1x64xf32, #tpu.memory_space<vmem>>, vector<1x1x64xf32>
    %138 = vector.shape_cast %137 : vector<1x1x64xf32> to vector<1x64xf32>
    %139 = vector.broadcast %138 : vector<1x64xf32> to vector<16x64xf32>
    %140 = arith.addf %136, %139 : vector<16x64xf32>
    %c0_56 = arith.constant 0 : index
    %c0_57 = arith.constant 0 : index
    %c0_58 = arith.constant 0 : index
    %141 = vector.load %arg14[%c0_56, %c0_57, %c0_58] : memref<4x64x128xbf16, #tpu.memory_space<vmem>>, vector<1x64x128xbf16>
    %142 = vector.shape_cast %141 : vector<1x64x128xbf16> to vector<64x128xbf16>
    %143 = arith.truncf %39 : vector<16x64xf32> to vector<16x64xbf16>
    %cst_59 = arith.constant dense<0.000000e+00> : vector<16x128xf32>
    %144 = tpu.matmul %143, %142, %cst_59 {dimension_numbers = #tpu.dot_dimension_numbers<[1], [0], [0], [1], [0, 0, 1, 1], [], []>} : vector<16x64xbf16>, vector<64x128xbf16>, vector<16x128xf32> -> vector<16x128xf32>
    %c0_60 = arith.constant 0 : index
    %c0_61 = arith.constant 0 : index
    %c0_62 = arith.constant 0 : index
    %145 = vector.load %arg15[%c0_60, %c0_61, %c0_62] : memref<4x64x128xbf16, #tpu.memory_space<vmem>>, vector<1x64x128xbf16>
    %146 = vector.shape_cast %145 : vector<1x64x128xbf16> to vector<64x128xbf16>
    %147 = arith.truncf %140 : vector<16x64xf32> to vector<16x64xbf16>
    %cst_63 = arith.constant dense<0.000000e+00> : vector<16x128xf32>
    %148 = tpu.matmul %147, %146, %cst_63 {dimension_numbers = #tpu.dot_dimension_numbers<[1], [0], [0], [1], [0, 0, 1, 1], [], []>} : vector<16x64xbf16>, vector<64x128xbf16>, vector<16x128xf32> -> vector<16x128xf32>
    %149 = arith.addf %144, %148 : vector<16x128xf32>
    %c0_64 = arith.constant 0 : index
    %c0_65 = arith.constant 0 : index
    %c0_66 = arith.constant 0 : index
    %150 = vector.load %arg16[%c0_64, %c0_65, %c0_66] : memref<4x1x128xf32, #tpu.memory_space<vmem>>, vector<1x1x128xf32>
    %151 = vector.shape_cast %150 : vector<1x1x128xf32> to vector<1x128xf32>
    %152 = vector.broadcast %151 : vector<1x128xf32> to vector<16x128xf32>
    %153 = arith.addf %149, %152 : vector<16x128xf32>
    %cst_67 = arith.constant 0.000000e+00 : f32
    %154 = vector.broadcast %cst_67 : f32 to vector<16x128xf32>
    %155 = arith.maximumf %153, %154 : vector<16x128xf32>
    %c0_68 = arith.constant 0 : index
    %c0_69 = arith.constant 0 : index
    %c0_70 = arith.constant 0 : index
    %156 = vector.load %arg17[%c0_68, %c0_69, %c0_70] : memref<4x128x64xbf16, #tpu.memory_space<vmem>>, vector<1x128x64xbf16>
    %157 = vector.shape_cast %156 : vector<1x128x64xbf16> to vector<128x64xbf16>
    %c0_71 = arith.constant 0 : index
    %c0_72 = arith.constant 0 : index
    %c0_73 = arith.constant 0 : index
    %158 = vector.load %arg18[%c0_71, %c0_72, %c0_73] : memref<4x1x64xf32, #tpu.memory_space<vmem>>, vector<1x1x64xf32>
    %159 = vector.shape_cast %158 : vector<1x1x64xf32> to vector<1x64xf32>
    %160 = arith.truncf %155 : vector<16x128xf32> to vector<16x128xbf16>
    %cst_74 = arith.constant dense<0.000000e+00> : vector<16x64xf32>
    %161 = tpu.matmul %160, %157, %cst_74 {dimension_numbers = #tpu.dot_dimension_numbers<[1], [0], [0], [1], [0, 0, 1, 1], [], []>} : vector<16x128xbf16>, vector<128x64xbf16>, vector<16x64xf32> -> vector<16x64xf32>
    %162 = vector.broadcast %159 : vector<1x64xf32> to vector<16x64xf32>
    %163 = arith.addf %161, %162 : vector<16x64xf32>
    %164 = arith.addf %39, %163 : vector<16x64xf32>
    %c1 = arith.constant 1 : index
    %c0_75 = arith.constant 0 : index
    %c0_76 = arith.constant 0 : index
    %165 = vector.load %arg10[%c1, %c0_75, %c0_76] : memref<4x64x192xbf16, #tpu.memory_space<vmem>>, vector<1x64x192xbf16>
    %166 = vector.shape_cast %165 : vector<1x64x192xbf16> to vector<64x192xbf16>
    %c1_77 = arith.constant 1 : index
    %c0_78 = arith.constant 0 : index
    %c0_79 = arith.constant 0 : index
    %167 = vector.load %arg11[%c1_77, %c0_78, %c0_79] : memref<4x1x192xf32, #tpu.memory_space<vmem>>, vector<1x1x192xf32>
    %168 = vector.shape_cast %167 : vector<1x1x192xf32> to vector<1x192xf32>
    %169 = arith.truncf %164 : vector<16x64xf32> to vector<16x64xbf16>
    %cst_80 = arith.constant dense<0.000000e+00> : vector<16x192xf32>
    %170 = tpu.matmul %169, %166, %cst_80 {dimension_numbers = #tpu.dot_dimension_numbers<[1], [0], [0], [1], [0, 0, 1, 1], [], []>} : vector<16x64xbf16>, vector<64x192xbf16>, vector<16x192xf32> -> vector<16x192xf32>
    %171 = vector.broadcast %168 : vector<1x192xf32> to vector<16x192xf32>
    %172 = arith.addf %170, %171 : vector<16x192xf32>
    %c1_81 = arith.constant 1 : index
    %c0_82 = arith.constant 0 : index
    %c0_83 = arith.constant 0 : index
    %173 = vector.load %arg12[%c1_81, %c0_82, %c0_83] : memref<4x64x64xbf16, #tpu.memory_space<vmem>>, vector<1x64x64xbf16>
    %174 = vector.shape_cast %173 : vector<1x64x64xbf16> to vector<64x64xbf16>
    %175 = vector.extract_strided_slice %172 {offsets = [0, 0], sizes = [16, 16], strides = [1, 1]} : vector<16x192xf32> to vector<16x16xf32>
    %176 = arith.truncf %175 : vector<16x16xf32> to vector<16x16xbf16>
    %177 = vector.extract_strided_slice %172 {offsets = [0, 64], sizes = [16, 16], strides = [1, 1]} : vector<16x192xf32> to vector<16x16xf32>
    %178 = arith.truncf %177 : vector<16x16xf32> to vector<16x16xbf16>
    %179 = vector.extract_strided_slice %172 {offsets = [0, 128], sizes = [16, 16], strides = [1, 1]} : vector<16x192xf32> to vector<16x16xf32>
    %180 = arith.truncf %179 : vector<16x16xf32> to vector<16x16xbf16>
    %cst_84 = arith.constant dense<0.000000e+00> : vector<16x16xf32>
    %181 = tpu.matmul %176, %178, %cst_84 {dimension_numbers = #tpu.dot_dimension_numbers<[1], [1], [0], [0], [0, 0, 1, 0], [], []>} : vector<16x16xbf16>, vector<16x16xbf16>, vector<16x16xf32> -> vector<16x16xf32>
    %cst_85 = arith.constant dense<0xFF800000> : vector<16xf32>
    %182 = vector.multi_reduction <maximumf>, %181, %cst_85 [1] : vector<16x16xf32> to vector<16xf32>
    %183 = vector.shape_cast %182 : vector<16xf32> to vector<16x1xf32>
    %184 = vector.broadcast %183 : vector<16x1xf32> to vector<16x16xf32>
    %185 = arith.subf %181, %184 : vector<16x16xf32>
    %186 = math.exp %185 : vector<16x16xf32>
    %cst_86 = arith.constant dense<0.000000e+00> : vector<16xf32>
    %187 = vector.multi_reduction <add>, %186, %cst_86 [1] : vector<16x16xf32> to vector<16xf32>
    %188 = vector.shape_cast %187 : vector<16xf32> to vector<16x1xf32>
    %189 = vector.broadcast %188 : vector<16x1xf32> to vector<16x16xf32>
    %190 = arith.divf %186, %189 : vector<16x16xf32>
    %191 = arith.truncf %190 : vector<16x16xf32> to vector<16x16xbf16>
    %cst_87 = arith.constant dense<0.000000e+00> : vector<16x16xf32>
    %192 = tpu.matmul %191, %180, %cst_87 {dimension_numbers = #tpu.dot_dimension_numbers<[1], [0], [0], [1], [0, 0, 1, 1], [], []>} : vector<16x16xbf16>, vector<16x16xbf16>, vector<16x16xf32> -> vector<16x16xf32>
    %193 = vector.extract_strided_slice %174 {offsets = [0, 0], sizes = [16, 64], strides = [1, 1]} : vector<64x64xbf16> to vector<16x64xbf16>
    %194 = arith.truncf %192 : vector<16x16xf32> to vector<16x16xbf16>
    %cst_88 = arith.constant dense<0.000000e+00> : vector<16x64xf32>
    %195 = tpu.matmul %194, %193, %cst_88 {dimension_numbers = #tpu.dot_dimension_numbers<[1], [0], [0], [1], [0, 0, 1, 1], [], []>} : vector<16x16xbf16>, vector<16x64xbf16>, vector<16x64xf32> -> vector<16x64xf32>
    %196 = vector.extract_strided_slice %172 {offsets = [0, 16], sizes = [16, 16], strides = [1, 1]} : vector<16x192xf32> to vector<16x16xf32>
    %197 = arith.truncf %196 : vector<16x16xf32> to vector<16x16xbf16>
    %198 = vector.extract_strided_slice %172 {offsets = [0, 80], sizes = [16, 16], strides = [1, 1]} : vector<16x192xf32> to vector<16x16xf32>
    %199 = arith.truncf %198 : vector<16x16xf32> to vector<16x16xbf16>
    %200 = vector.extract_strided_slice %172 {offsets = [0, 144], sizes = [16, 16], strides = [1, 1]} : vector<16x192xf32> to vector<16x16xf32>
    %201 = arith.truncf %200 : vector<16x16xf32> to vector<16x16xbf16>
    %cst_89 = arith.constant dense<0.000000e+00> : vector<16x16xf32>
    %202 = tpu.matmul %197, %199, %cst_89 {dimension_numbers = #tpu.dot_dimension_numbers<[1], [1], [0], [0], [0, 0, 1, 0], [], []>} : vector<16x16xbf16>, vector<16x16xbf16>, vector<16x16xf32> -> vector<16x16xf32>
    %cst_90 = arith.constant dense<0xFF800000> : vector<16xf32>
    %203 = vector.multi_reduction <maximumf>, %202, %cst_90 [1] : vector<16x16xf32> to vector<16xf32>
    %204 = vector.shape_cast %203 : vector<16xf32> to vector<16x1xf32>
    %205 = vector.broadcast %204 : vector<16x1xf32> to vector<16x16xf32>
    %206 = arith.subf %202, %205 : vector<16x16xf32>
    %207 = math.exp %206 : vector<16x16xf32>
    %cst_91 = arith.constant dense<0.000000e+00> : vector<16xf32>
    %208 = vector.multi_reduction <add>, %207, %cst_91 [1] : vector<16x16xf32> to vector<16xf32>
    %209 = vector.shape_cast %208 : vector<16xf32> to vector<16x1xf32>
    %210 = vector.broadcast %209 : vector<16x1xf32> to vector<16x16xf32>
    %211 = arith.divf %207, %210 : vector<16x16xf32>
    %212 = arith.truncf %211 : vector<16x16xf32> to vector<16x16xbf16>
    %cst_92 = arith.constant dense<0.000000e+00> : vector<16x16xf32>
    %213 = tpu.matmul %212, %201, %cst_92 {dimension_numbers = #tpu.dot_dimension_numbers<[1], [0], [0], [1], [0, 0, 1, 1], [], []>} : vector<16x16xbf16>, vector<16x16xbf16>, vector<16x16xf32> -> vector<16x16xf32>
    %214 = vector.extract_strided_slice %174 {offsets = [16, 0], sizes = [16, 64], strides = [1, 1]} : vector<64x64xbf16> to vector<16x64xbf16>
    %215 = arith.truncf %213 : vector<16x16xf32> to vector<16x16xbf16>
    %cst_93 = arith.constant dense<0.000000e+00> : vector<16x64xf32>
    %216 = tpu.matmul %215, %214, %cst_93 {dimension_numbers = #tpu.dot_dimension_numbers<[1], [0], [0], [1], [0, 0, 1, 1], [], []>} : vector<16x16xbf16>, vector<16x64xbf16>, vector<16x64xf32> -> vector<16x64xf32>
    %217 = arith.addf %195, %216 : vector<16x64xf32>
    %218 = vector.extract_strided_slice %172 {offsets = [0, 32], sizes = [16, 16], strides = [1, 1]} : vector<16x192xf32> to vector<16x16xf32>
    %219 = arith.truncf %218 : vector<16x16xf32> to vector<16x16xbf16>
    %220 = vector.extract_strided_slice %172 {offsets = [0, 96], sizes = [16, 16], strides = [1, 1]} : vector<16x192xf32> to vector<16x16xf32>
    %221 = arith.truncf %220 : vector<16x16xf32> to vector<16x16xbf16>
    %222 = vector.extract_strided_slice %172 {offsets = [0, 160], sizes = [16, 16], strides = [1, 1]} : vector<16x192xf32> to vector<16x16xf32>
    %223 = arith.truncf %222 : vector<16x16xf32> to vector<16x16xbf16>
    %cst_94 = arith.constant dense<0.000000e+00> : vector<16x16xf32>
    %224 = tpu.matmul %219, %221, %cst_94 {dimension_numbers = #tpu.dot_dimension_numbers<[1], [1], [0], [0], [0, 0, 1, 0], [], []>} : vector<16x16xbf16>, vector<16x16xbf16>, vector<16x16xf32> -> vector<16x16xf32>
    %cst_95 = arith.constant dense<0xFF800000> : vector<16xf32>
    %225 = vector.multi_reduction <maximumf>, %224, %cst_95 [1] : vector<16x16xf32> to vector<16xf32>
    %226 = vector.shape_cast %225 : vector<16xf32> to vector<16x1xf32>
    %227 = vector.broadcast %226 : vector<16x1xf32> to vector<16x16xf32>
    %228 = arith.subf %224, %227 : vector<16x16xf32>
    %229 = math.exp %228 : vector<16x16xf32>
    %cst_96 = arith.constant dense<0.000000e+00> : vector<16xf32>
    %230 = vector.multi_reduction <add>, %229, %cst_96 [1] : vector<16x16xf32> to vector<16xf32>
    %231 = vector.shape_cast %230 : vector<16xf32> to vector<16x1xf32>
    %232 = vector.broadcast %231 : vector<16x1xf32> to vector<16x16xf32>
    %233 = arith.divf %229, %232 : vector<16x16xf32>
    %234 = arith.truncf %233 : vector<16x16xf32> to vector<16x16xbf16>
    %cst_97 = arith.constant dense<0.000000e+00> : vector<16x16xf32>
    %235 = tpu.matmul %234, %223, %cst_97 {dimension_numbers = #tpu.dot_dimension_numbers<[1], [0], [0], [1], [0, 0, 1, 1], [], []>} : vector<16x16xbf16>, vector<16x16xbf16>, vector<16x16xf32> -> vector<16x16xf32>
    %236 = vector.extract_strided_slice %174 {offsets = [32, 0], sizes = [16, 64], strides = [1, 1]} : vector<64x64xbf16> to vector<16x64xbf16>
    %237 = arith.truncf %235 : vector<16x16xf32> to vector<16x16xbf16>
    %cst_98 = arith.constant dense<0.000000e+00> : vector<16x64xf32>
    %238 = tpu.matmul %237, %236, %cst_98 {dimension_numbers = #tpu.dot_dimension_numbers<[1], [0], [0], [1], [0, 0, 1, 1], [], []>} : vector<16x16xbf16>, vector<16x64xbf16>, vector<16x64xf32> -> vector<16x64xf32>
    %239 = arith.addf %217, %238 : vector<16x64xf32>
    %240 = vector.extract_strided_slice %172 {offsets = [0, 48], sizes = [16, 16], strides = [1, 1]} : vector<16x192xf32> to vector<16x16xf32>
    %241 = arith.truncf %240 : vector<16x16xf32> to vector<16x16xbf16>
    %242 = vector.extract_strided_slice %172 {offsets = [0, 112], sizes = [16, 16], strides = [1, 1]} : vector<16x192xf32> to vector<16x16xf32>
    %243 = arith.truncf %242 : vector<16x16xf32> to vector<16x16xbf16>
    %244 = vector.extract_strided_slice %172 {offsets = [0, 176], sizes = [16, 16], strides = [1, 1]} : vector<16x192xf32> to vector<16x16xf32>
    %245 = arith.truncf %244 : vector<16x16xf32> to vector<16x16xbf16>
    %cst_99 = arith.constant dense<0.000000e+00> : vector<16x16xf32>
    %246 = tpu.matmul %241, %243, %cst_99 {dimension_numbers = #tpu.dot_dimension_numbers<[1], [1], [0], [0], [0, 0, 1, 0], [], []>} : vector<16x16xbf16>, vector<16x16xbf16>, vector<16x16xf32> -> vector<16x16xf32>
    %cst_100 = arith.constant dense<0xFF800000> : vector<16xf32>
    %247 = vector.multi_reduction <maximumf>, %246, %cst_100 [1] : vector<16x16xf32> to vector<16xf32>
    %248 = vector.shape_cast %247 : vector<16xf32> to vector<16x1xf32>
    %249 = vector.broadcast %248 : vector<16x1xf32> to vector<16x16xf32>
    %250 = arith.subf %246, %249 : vector<16x16xf32>
    %251 = math.exp %250 : vector<16x16xf32>
    %cst_101 = arith.constant dense<0.000000e+00> : vector<16xf32>
    %252 = vector.multi_reduction <add>, %251, %cst_101 [1] : vector<16x16xf32> to vector<16xf32>
    %253 = vector.shape_cast %252 : vector<16xf32> to vector<16x1xf32>
    %254 = vector.broadcast %253 : vector<16x1xf32> to vector<16x16xf32>
    %255 = arith.divf %251, %254 : vector<16x16xf32>
    %256 = arith.truncf %255 : vector<16x16xf32> to vector<16x16xbf16>
    %cst_102 = arith.constant dense<0.000000e+00> : vector<16x16xf32>
    %257 = tpu.matmul %256, %245, %cst_102 {dimension_numbers = #tpu.dot_dimension_numbers<[1], [0], [0], [1], [0, 0, 1, 1], [], []>} : vector<16x16xbf16>, vector<16x16xbf16>, vector<16x16xf32> -> vector<16x16xf32>
    %258 = vector.extract_strided_slice %174 {offsets = [48, 0], sizes = [16, 64], strides = [1, 1]} : vector<64x64xbf16> to vector<16x64xbf16>
    %259 = arith.truncf %257 : vector<16x16xf32> to vector<16x16xbf16>
    %cst_103 = arith.constant dense<0.000000e+00> : vector<16x64xf32>
    %260 = tpu.matmul %259, %258, %cst_103 {dimension_numbers = #tpu.dot_dimension_numbers<[1], [0], [0], [1], [0, 0, 1, 1], [], []>} : vector<16x16xbf16>, vector<16x64xbf16>, vector<16x64xf32> -> vector<16x64xf32>
    %261 = arith.addf %239, %260 : vector<16x64xf32>
    %c1_104 = arith.constant 1 : index
    %c0_105 = arith.constant 0 : index
    %c0_106 = arith.constant 0 : index
    %262 = vector.load %arg13[%c1_104, %c0_105, %c0_106] : memref<4x1x64xf32, #tpu.memory_space<vmem>>, vector<1x1x64xf32>
    %263 = vector.shape_cast %262 : vector<1x1x64xf32> to vector<1x64xf32>
    %264 = vector.broadcast %263 : vector<1x64xf32> to vector<16x64xf32>
    %265 = arith.addf %261, %264 : vector<16x64xf32>
    %c1_107 = arith.constant 1 : index
    %c0_108 = arith.constant 0 : index
    %c0_109 = arith.constant 0 : index
    %266 = vector.load %arg14[%c1_107, %c0_108, %c0_109] : memref<4x64x128xbf16, #tpu.memory_space<vmem>>, vector<1x64x128xbf16>
    %267 = vector.shape_cast %266 : vector<1x64x128xbf16> to vector<64x128xbf16>
    %268 = arith.truncf %164 : vector<16x64xf32> to vector<16x64xbf16>
    %cst_110 = arith.constant dense<0.000000e+00> : vector<16x128xf32>
    %269 = tpu.matmul %268, %267, %cst_110 {dimension_numbers = #tpu.dot_dimension_numbers<[1], [0], [0], [1], [0, 0, 1, 1], [], []>} : vector<16x64xbf16>, vector<64x128xbf16>, vector<16x128xf32> -> vector<16x128xf32>
    %c1_111 = arith.constant 1 : index
    %c0_112 = arith.constant 0 : index
    %c0_113 = arith.constant 0 : index
    %270 = vector.load %arg15[%c1_111, %c0_112, %c0_113] : memref<4x64x128xbf16, #tpu.memory_space<vmem>>, vector<1x64x128xbf16>
    %271 = vector.shape_cast %270 : vector<1x64x128xbf16> to vector<64x128xbf16>
    %272 = arith.truncf %265 : vector<16x64xf32> to vector<16x64xbf16>
    %cst_114 = arith.constant dense<0.000000e+00> : vector<16x128xf32>
    %273 = tpu.matmul %272, %271, %cst_114 {dimension_numbers = #tpu.dot_dimension_numbers<[1], [0], [0], [1], [0, 0, 1, 1], [], []>} : vector<16x64xbf16>, vector<64x128xbf16>, vector<16x128xf32> -> vector<16x128xf32>
    %274 = arith.addf %269, %273 : vector<16x128xf32>
    %c1_115 = arith.constant 1 : index
    %c0_116 = arith.constant 0 : index
    %c0_117 = arith.constant 0 : index
    %275 = vector.load %arg16[%c1_115, %c0_116, %c0_117] : memref<4x1x128xf32, #tpu.memory_space<vmem>>, vector<1x1x128xf32>
    %276 = vector.shape_cast %275 : vector<1x1x128xf32> to vector<1x128xf32>
    %277 = vector.broadcast %276 : vector<1x128xf32> to vector<16x128xf32>
    %278 = arith.addf %274, %277 : vector<16x128xf32>
    %cst_118 = arith.constant 0.000000e+00 : f32
    %279 = vector.broadcast %cst_118 : f32 to vector<16x128xf32>
    %280 = arith.maximumf %278, %279 : vector<16x128xf32>
    %c1_119 = arith.constant 1 : index
    %c0_120 = arith.constant 0 : index
    %c0_121 = arith.constant 0 : index
    %281 = vector.load %arg17[%c1_119, %c0_120, %c0_121] : memref<4x128x64xbf16, #tpu.memory_space<vmem>>, vector<1x128x64xbf16>
    %282 = vector.shape_cast %281 : vector<1x128x64xbf16> to vector<128x64xbf16>
    %c1_122 = arith.constant 1 : index
    %c0_123 = arith.constant 0 : index
    %c0_124 = arith.constant 0 : index
    %283 = vector.load %arg18[%c1_122, %c0_123, %c0_124] : memref<4x1x64xf32, #tpu.memory_space<vmem>>, vector<1x1x64xf32>
    %284 = vector.shape_cast %283 : vector<1x1x64xf32> to vector<1x64xf32>
    %285 = arith.truncf %280 : vector<16x128xf32> to vector<16x128xbf16>
    %cst_125 = arith.constant dense<0.000000e+00> : vector<16x64xf32>
    %286 = tpu.matmul %285, %282, %cst_125 {dimension_numbers = #tpu.dot_dimension_numbers<[1], [0], [0], [1], [0, 0, 1, 1], [], []>} : vector<16x128xbf16>, vector<128x64xbf16>, vector<16x64xf32> -> vector<16x64xf32>
    %287 = vector.broadcast %284 : vector<1x64xf32> to vector<16x64xf32>
    %288 = arith.addf %286, %287 : vector<16x64xf32>
    %289 = arith.addf %164, %288 : vector<16x64xf32>
    %c2 = arith.constant 2 : index
    %c0_126 = arith.constant 0 : index
    %c0_127 = arith.constant 0 : index
    %290 = vector.load %arg10[%c2, %c0_126, %c0_127] : memref<4x64x192xbf16, #tpu.memory_space<vmem>>, vector<1x64x192xbf16>
    %291 = vector.shape_cast %290 : vector<1x64x192xbf16> to vector<64x192xbf16>
    %c2_128 = arith.constant 2 : index
    %c0_129 = arith.constant 0 : index
    %c0_130 = arith.constant 0 : index
    %292 = vector.load %arg11[%c2_128, %c0_129, %c0_130] : memref<4x1x192xf32, #tpu.memory_space<vmem>>, vector<1x1x192xf32>
    %293 = vector.shape_cast %292 : vector<1x1x192xf32> to vector<1x192xf32>
    %294 = arith.truncf %289 : vector<16x64xf32> to vector<16x64xbf16>
    %cst_131 = arith.constant dense<0.000000e+00> : vector<16x192xf32>
    %295 = tpu.matmul %294, %291, %cst_131 {dimension_numbers = #tpu.dot_dimension_numbers<[1], [0], [0], [1], [0, 0, 1, 1], [], []>} : vector<16x64xbf16>, vector<64x192xbf16>, vector<16x192xf32> -> vector<16x192xf32>
    %296 = vector.broadcast %293 : vector<1x192xf32> to vector<16x192xf32>
    %297 = arith.addf %295, %296 : vector<16x192xf32>
    %c2_132 = arith.constant 2 : index
    %c0_133 = arith.constant 0 : index
    %c0_134 = arith.constant 0 : index
    %298 = vector.load %arg12[%c2_132, %c0_133, %c0_134] : memref<4x64x64xbf16, #tpu.memory_space<vmem>>, vector<1x64x64xbf16>
    %299 = vector.shape_cast %298 : vector<1x64x64xbf16> to vector<64x64xbf16>
    %300 = vector.extract_strided_slice %297 {offsets = [0, 0], sizes = [16, 16], strides = [1, 1]} : vector<16x192xf32> to vector<16x16xf32>
    %301 = arith.truncf %300 : vector<16x16xf32> to vector<16x16xbf16>
    %302 = vector.extract_strided_slice %297 {offsets = [0, 64], sizes = [16, 16], strides = [1, 1]} : vector<16x192xf32> to vector<16x16xf32>
    %303 = arith.truncf %302 : vector<16x16xf32> to vector<16x16xbf16>
    %304 = vector.extract_strided_slice %297 {offsets = [0, 128], sizes = [16, 16], strides = [1, 1]} : vector<16x192xf32> to vector<16x16xf32>
    %305 = arith.truncf %304 : vector<16x16xf32> to vector<16x16xbf16>
    %cst_135 = arith.constant dense<0.000000e+00> : vector<16x16xf32>
    %306 = tpu.matmul %301, %303, %cst_135 {dimension_numbers = #tpu.dot_dimension_numbers<[1], [1], [0], [0], [0, 0, 1, 0], [], []>} : vector<16x16xbf16>, vector<16x16xbf16>, vector<16x16xf32> -> vector<16x16xf32>
    %cst_136 = arith.constant dense<0xFF800000> : vector<16xf32>
    %307 = vector.multi_reduction <maximumf>, %306, %cst_136 [1] : vector<16x16xf32> to vector<16xf32>
    %308 = vector.shape_cast %307 : vector<16xf32> to vector<16x1xf32>
    %309 = vector.broadcast %308 : vector<16x1xf32> to vector<16x16xf32>
    %310 = arith.subf %306, %309 : vector<16x16xf32>
    %311 = math.exp %310 : vector<16x16xf32>
    %cst_137 = arith.constant dense<0.000000e+00> : vector<16xf32>
    %312 = vector.multi_reduction <add>, %311, %cst_137 [1] : vector<16x16xf32> to vector<16xf32>
    %313 = vector.shape_cast %312 : vector<16xf32> to vector<16x1xf32>
    %314 = vector.broadcast %313 : vector<16x1xf32> to vector<16x16xf32>
    %315 = arith.divf %311, %314 : vector<16x16xf32>
    %316 = arith.truncf %315 : vector<16x16xf32> to vector<16x16xbf16>
    %cst_138 = arith.constant dense<0.000000e+00> : vector<16x16xf32>
    %317 = tpu.matmul %316, %305, %cst_138 {dimension_numbers = #tpu.dot_dimension_numbers<[1], [0], [0], [1], [0, 0, 1, 1], [], []>} : vector<16x16xbf16>, vector<16x16xbf16>, vector<16x16xf32> -> vector<16x16xf32>
    %318 = vector.extract_strided_slice %299 {offsets = [0, 0], sizes = [16, 64], strides = [1, 1]} : vector<64x64xbf16> to vector<16x64xbf16>
    %319 = arith.truncf %317 : vector<16x16xf32> to vector<16x16xbf16>
    %cst_139 = arith.constant dense<0.000000e+00> : vector<16x64xf32>
    %320 = tpu.matmul %319, %318, %cst_139 {dimension_numbers = #tpu.dot_dimension_numbers<[1], [0], [0], [1], [0, 0, 1, 1], [], []>} : vector<16x16xbf16>, vector<16x64xbf16>, vector<16x64xf32> -> vector<16x64xf32>
    %321 = vector.extract_strided_slice %297 {offsets = [0, 16], sizes = [16, 16], strides = [1, 1]} : vector<16x192xf32> to vector<16x16xf32>
    %322 = arith.truncf %321 : vector<16x16xf32> to vector<16x16xbf16>
    %323 = vector.extract_strided_slice %297 {offsets = [0, 80], sizes = [16, 16], strides = [1, 1]} : vector<16x192xf32> to vector<16x16xf32>
    %324 = arith.truncf %323 : vector<16x16xf32> to vector<16x16xbf16>
    %325 = vector.extract_strided_slice %297 {offsets = [0, 144], sizes = [16, 16], strides = [1, 1]} : vector<16x192xf32> to vector<16x16xf32>
    %326 = arith.truncf %325 : vector<16x16xf32> to vector<16x16xbf16>
    %cst_140 = arith.constant dense<0.000000e+00> : vector<16x16xf32>
    %327 = tpu.matmul %322, %324, %cst_140 {dimension_numbers = #tpu.dot_dimension_numbers<[1], [1], [0], [0], [0, 0, 1, 0], [], []>} : vector<16x16xbf16>, vector<16x16xbf16>, vector<16x16xf32> -> vector<16x16xf32>
    %cst_141 = arith.constant dense<0xFF800000> : vector<16xf32>
    %328 = vector.multi_reduction <maximumf>, %327, %cst_141 [1] : vector<16x16xf32> to vector<16xf32>
    %329 = vector.shape_cast %328 : vector<16xf32> to vector<16x1xf32>
    %330 = vector.broadcast %329 : vector<16x1xf32> to vector<16x16xf32>
    %331 = arith.subf %327, %330 : vector<16x16xf32>
    %332 = math.exp %331 : vector<16x16xf32>
    %cst_142 = arith.constant dense<0.000000e+00> : vector<16xf32>
    %333 = vector.multi_reduction <add>, %332, %cst_142 [1] : vector<16x16xf32> to vector<16xf32>
    %334 = vector.shape_cast %333 : vector<16xf32> to vector<16x1xf32>
    %335 = vector.broadcast %334 : vector<16x1xf32> to vector<16x16xf32>
    %336 = arith.divf %332, %335 : vector<16x16xf32>
    %337 = arith.truncf %336 : vector<16x16xf32> to vector<16x16xbf16>
    %cst_143 = arith.constant dense<0.000000e+00> : vector<16x16xf32>
    %338 = tpu.matmul %337, %326, %cst_143 {dimension_numbers = #tpu.dot_dimension_numbers<[1], [0], [0], [1], [0, 0, 1, 1], [], []>} : vector<16x16xbf16>, vector<16x16xbf16>, vector<16x16xf32> -> vector<16x16xf32>
    %339 = vector.extract_strided_slice %299 {offsets = [16, 0], sizes = [16, 64], strides = [1, 1]} : vector<64x64xbf16> to vector<16x64xbf16>
    %340 = arith.truncf %338 : vector<16x16xf32> to vector<16x16xbf16>
    %cst_144 = arith.constant dense<0.000000e+00> : vector<16x64xf32>
    %341 = tpu.matmul %340, %339, %cst_144 {dimension_numbers = #tpu.dot_dimension_numbers<[1], [0], [0], [1], [0, 0, 1, 1], [], []>} : vector<16x16xbf16>, vector<16x64xbf16>, vector<16x64xf32> -> vector<16x64xf32>
    %342 = arith.addf %320, %341 : vector<16x64xf32>
    %343 = vector.extract_strided_slice %297 {offsets = [0, 32], sizes = [16, 16], strides = [1, 1]} : vector<16x192xf32> to vector<16x16xf32>
    %344 = arith.truncf %343 : vector<16x16xf32> to vector<16x16xbf16>
    %345 = vector.extract_strided_slice %297 {offsets = [0, 96], sizes = [16, 16], strides = [1, 1]} : vector<16x192xf32> to vector<16x16xf32>
    %346 = arith.truncf %345 : vector<16x16xf32> to vector<16x16xbf16>
    %347 = vector.extract_strided_slice %297 {offsets = [0, 160], sizes = [16, 16], strides = [1, 1]} : vector<16x192xf32> to vector<16x16xf32>
    %348 = arith.truncf %347 : vector<16x16xf32> to vector<16x16xbf16>
    %cst_145 = arith.constant dense<0.000000e+00> : vector<16x16xf32>
    %349 = tpu.matmul %344, %346, %cst_145 {dimension_numbers = #tpu.dot_dimension_numbers<[1], [1], [0], [0], [0, 0, 1, 0], [], []>} : vector<16x16xbf16>, vector<16x16xbf16>, vector<16x16xf32> -> vector<16x16xf32>
    %cst_146 = arith.constant dense<0xFF800000> : vector<16xf32>
    %350 = vector.multi_reduction <maximumf>, %349, %cst_146 [1] : vector<16x16xf32> to vector<16xf32>
    %351 = vector.shape_cast %350 : vector<16xf32> to vector<16x1xf32>
    %352 = vector.broadcast %351 : vector<16x1xf32> to vector<16x16xf32>
    %353 = arith.subf %349, %352 : vector<16x16xf32>
    %354 = math.exp %353 : vector<16x16xf32>
    %cst_147 = arith.constant dense<0.000000e+00> : vector<16xf32>
    %355 = vector.multi_reduction <add>, %354, %cst_147 [1] : vector<16x16xf32> to vector<16xf32>
    %356 = vector.shape_cast %355 : vector<16xf32> to vector<16x1xf32>
    %357 = vector.broadcast %356 : vector<16x1xf32> to vector<16x16xf32>
    %358 = arith.divf %354, %357 : vector<16x16xf32>
    %359 = arith.truncf %358 : vector<16x16xf32> to vector<16x16xbf16>
    %cst_148 = arith.constant dense<0.000000e+00> : vector<16x16xf32>
    %360 = tpu.matmul %359, %348, %cst_148 {dimension_numbers = #tpu.dot_dimension_numbers<[1], [0], [0], [1], [0, 0, 1, 1], [], []>} : vector<16x16xbf16>, vector<16x16xbf16>, vector<16x16xf32> -> vector<16x16xf32>
    %361 = vector.extract_strided_slice %299 {offsets = [32, 0], sizes = [16, 64], strides = [1, 1]} : vector<64x64xbf16> to vector<16x64xbf16>
    %362 = arith.truncf %360 : vector<16x16xf32> to vector<16x16xbf16>
    %cst_149 = arith.constant dense<0.000000e+00> : vector<16x64xf32>
    %363 = tpu.matmul %362, %361, %cst_149 {dimension_numbers = #tpu.dot_dimension_numbers<[1], [0], [0], [1], [0, 0, 1, 1], [], []>} : vector<16x16xbf16>, vector<16x64xbf16>, vector<16x64xf32> -> vector<16x64xf32>
    %364 = arith.addf %342, %363 : vector<16x64xf32>
    %365 = vector.extract_strided_slice %297 {offsets = [0, 48], sizes = [16, 16], strides = [1, 1]} : vector<16x192xf32> to vector<16x16xf32>
    %366 = arith.truncf %365 : vector<16x16xf32> to vector<16x16xbf16>
    %367 = vector.extract_strided_slice %297 {offsets = [0, 112], sizes = [16, 16], strides = [1, 1]} : vector<16x192xf32> to vector<16x16xf32>
    %368 = arith.truncf %367 : vector<16x16xf32> to vector<16x16xbf16>
    %369 = vector.extract_strided_slice %297 {offsets = [0, 176], sizes = [16, 16], strides = [1, 1]} : vector<16x192xf32> to vector<16x16xf32>
    %370 = arith.truncf %369 : vector<16x16xf32> to vector<16x16xbf16>
    %cst_150 = arith.constant dense<0.000000e+00> : vector<16x16xf32>
    %371 = tpu.matmul %366, %368, %cst_150 {dimension_numbers = #tpu.dot_dimension_numbers<[1], [1], [0], [0], [0, 0, 1, 0], [], []>} : vector<16x16xbf16>, vector<16x16xbf16>, vector<16x16xf32> -> vector<16x16xf32>
    %cst_151 = arith.constant dense<0xFF800000> : vector<16xf32>
    %372 = vector.multi_reduction <maximumf>, %371, %cst_151 [1] : vector<16x16xf32> to vector<16xf32>
    %373 = vector.shape_cast %372 : vector<16xf32> to vector<16x1xf32>
    %374 = vector.broadcast %373 : vector<16x1xf32> to vector<16x16xf32>
    %375 = arith.subf %371, %374 : vector<16x16xf32>
    %376 = math.exp %375 : vector<16x16xf32>
    %cst_152 = arith.constant dense<0.000000e+00> : vector<16xf32>
    %377 = vector.multi_reduction <add>, %376, %cst_152 [1] : vector<16x16xf32> to vector<16xf32>
    %378 = vector.shape_cast %377 : vector<16xf32> to vector<16x1xf32>
    %379 = vector.broadcast %378 : vector<16x1xf32> to vector<16x16xf32>
    %380 = arith.divf %376, %379 : vector<16x16xf32>
    %381 = arith.truncf %380 : vector<16x16xf32> to vector<16x16xbf16>
    %cst_153 = arith.constant dense<0.000000e+00> : vector<16x16xf32>
    %382 = tpu.matmul %381, %370, %cst_153 {dimension_numbers = #tpu.dot_dimension_numbers<[1], [0], [0], [1], [0, 0, 1, 1], [], []>} : vector<16x16xbf16>, vector<16x16xbf16>, vector<16x16xf32> -> vector<16x16xf32>
    %383 = vector.extract_strided_slice %299 {offsets = [48, 0], sizes = [16, 64], strides = [1, 1]} : vector<64x64xbf16> to vector<16x64xbf16>
    %384 = arith.truncf %382 : vector<16x16xf32> to vector<16x16xbf16>
    %cst_154 = arith.constant dense<0.000000e+00> : vector<16x64xf32>
    %385 = tpu.matmul %384, %383, %cst_154 {dimension_numbers = #tpu.dot_dimension_numbers<[1], [0], [0], [1], [0, 0, 1, 1], [], []>} : vector<16x16xbf16>, vector<16x64xbf16>, vector<16x64xf32> -> vector<16x64xf32>
    %386 = arith.addf %364, %385 : vector<16x64xf32>
    %c2_155 = arith.constant 2 : index
    %c0_156 = arith.constant 0 : index
    %c0_157 = arith.constant 0 : index
    %387 = vector.load %arg13[%c2_155, %c0_156, %c0_157] : memref<4x1x64xf32, #tpu.memory_space<vmem>>, vector<1x1x64xf32>
    %388 = vector.shape_cast %387 : vector<1x1x64xf32> to vector<1x64xf32>
    %389 = vector.broadcast %388 : vector<1x64xf32> to vector<16x64xf32>
    %390 = arith.addf %386, %389 : vector<16x64xf32>
    %c2_158 = arith.constant 2 : index
    %c0_159 = arith.constant 0 : index
    %c0_160 = arith.constant 0 : index
    %391 = vector.load %arg14[%c2_158, %c0_159, %c0_160] : memref<4x64x128xbf16, #tpu.memory_space<vmem>>, vector<1x64x128xbf16>
    %392 = vector.shape_cast %391 : vector<1x64x128xbf16> to vector<64x128xbf16>
    %393 = arith.truncf %289 : vector<16x64xf32> to vector<16x64xbf16>
    %cst_161 = arith.constant dense<0.000000e+00> : vector<16x128xf32>
    %394 = tpu.matmul %393, %392, %cst_161 {dimension_numbers = #tpu.dot_dimension_numbers<[1], [0], [0], [1], [0, 0, 1, 1], [], []>} : vector<16x64xbf16>, vector<64x128xbf16>, vector<16x128xf32> -> vector<16x128xf32>
    %c2_162 = arith.constant 2 : index
    %c0_163 = arith.constant 0 : index
    %c0_164 = arith.constant 0 : index
    %395 = vector.load %arg15[%c2_162, %c0_163, %c0_164] : memref<4x64x128xbf16, #tpu.memory_space<vmem>>, vector<1x64x128xbf16>
    %396 = vector.shape_cast %395 : vector<1x64x128xbf16> to vector<64x128xbf16>
    %397 = arith.truncf %390 : vector<16x64xf32> to vector<16x64xbf16>
    %cst_165 = arith.constant dense<0.000000e+00> : vector<16x128xf32>
    %398 = tpu.matmul %397, %396, %cst_165 {dimension_numbers = #tpu.dot_dimension_numbers<[1], [0], [0], [1], [0, 0, 1, 1], [], []>} : vector<16x64xbf16>, vector<64x128xbf16>, vector<16x128xf32> -> vector<16x128xf32>
    %399 = arith.addf %394, %398 : vector<16x128xf32>
    %c2_166 = arith.constant 2 : index
    %c0_167 = arith.constant 0 : index
    %c0_168 = arith.constant 0 : index
    %400 = vector.load %arg16[%c2_166, %c0_167, %c0_168] : memref<4x1x128xf32, #tpu.memory_space<vmem>>, vector<1x1x128xf32>
    %401 = vector.shape_cast %400 : vector<1x1x128xf32> to vector<1x128xf32>
    %402 = vector.broadcast %401 : vector<1x128xf32> to vector<16x128xf32>
    %403 = arith.addf %399, %402 : vector<16x128xf32>
    %cst_169 = arith.constant 0.000000e+00 : f32
    %404 = vector.broadcast %cst_169 : f32 to vector<16x128xf32>
    %405 = arith.maximumf %403, %404 : vector<16x128xf32>
    %c2_170 = arith.constant 2 : index
    %c0_171 = arith.constant 0 : index
    %c0_172 = arith.constant 0 : index
    %406 = vector.load %arg17[%c2_170, %c0_171, %c0_172] : memref<4x128x64xbf16, #tpu.memory_space<vmem>>, vector<1x128x64xbf16>
    %407 = vector.shape_cast %406 : vector<1x128x64xbf16> to vector<128x64xbf16>
    %c2_173 = arith.constant 2 : index
    %c0_174 = arith.constant 0 : index
    %c0_175 = arith.constant 0 : index
    %408 = vector.load %arg18[%c2_173, %c0_174, %c0_175] : memref<4x1x64xf32, #tpu.memory_space<vmem>>, vector<1x1x64xf32>
    %409 = vector.shape_cast %408 : vector<1x1x64xf32> to vector<1x64xf32>
    %410 = arith.truncf %405 : vector<16x128xf32> to vector<16x128xbf16>
    %cst_176 = arith.constant dense<0.000000e+00> : vector<16x64xf32>
    %411 = tpu.matmul %410, %407, %cst_176 {dimension_numbers = #tpu.dot_dimension_numbers<[1], [0], [0], [1], [0, 0, 1, 1], [], []>} : vector<16x128xbf16>, vector<128x64xbf16>, vector<16x64xf32> -> vector<16x64xf32>
    %412 = vector.broadcast %409 : vector<1x64xf32> to vector<16x64xf32>
    %413 = arith.addf %411, %412 : vector<16x64xf32>
    %414 = arith.addf %289, %413 : vector<16x64xf32>
    %c3 = arith.constant 3 : index
    %c0_177 = arith.constant 0 : index
    %c0_178 = arith.constant 0 : index
    %415 = vector.load %arg10[%c3, %c0_177, %c0_178] : memref<4x64x192xbf16, #tpu.memory_space<vmem>>, vector<1x64x192xbf16>
    %416 = vector.shape_cast %415 : vector<1x64x192xbf16> to vector<64x192xbf16>
    %c3_179 = arith.constant 3 : index
    %c0_180 = arith.constant 0 : index
    %c0_181 = arith.constant 0 : index
    %417 = vector.load %arg11[%c3_179, %c0_180, %c0_181] : memref<4x1x192xf32, #tpu.memory_space<vmem>>, vector<1x1x192xf32>
    %418 = vector.shape_cast %417 : vector<1x1x192xf32> to vector<1x192xf32>
    %419 = arith.truncf %414 : vector<16x64xf32> to vector<16x64xbf16>
    %cst_182 = arith.constant dense<0.000000e+00> : vector<16x192xf32>
    %420 = tpu.matmul %419, %416, %cst_182 {dimension_numbers = #tpu.dot_dimension_numbers<[1], [0], [0], [1], [0, 0, 1, 1], [], []>} : vector<16x64xbf16>, vector<64x192xbf16>, vector<16x192xf32> -> vector<16x192xf32>
    %421 = vector.broadcast %418 : vector<1x192xf32> to vector<16x192xf32>
    %422 = arith.addf %420, %421 : vector<16x192xf32>
    %c3_183 = arith.constant 3 : index
    %c0_184 = arith.constant 0 : index
    %c0_185 = arith.constant 0 : index
    %423 = vector.load %arg12[%c3_183, %c0_184, %c0_185] : memref<4x64x64xbf16, #tpu.memory_space<vmem>>, vector<1x64x64xbf16>
    %424 = vector.shape_cast %423 : vector<1x64x64xbf16> to vector<64x64xbf16>
    %425 = vector.extract_strided_slice %422 {offsets = [0, 0], sizes = [16, 16], strides = [1, 1]} : vector<16x192xf32> to vector<16x16xf32>
    %426 = arith.truncf %425 : vector<16x16xf32> to vector<16x16xbf16>
    %427 = vector.extract_strided_slice %422 {offsets = [0, 64], sizes = [16, 16], strides = [1, 1]} : vector<16x192xf32> to vector<16x16xf32>
    %428 = arith.truncf %427 : vector<16x16xf32> to vector<16x16xbf16>
    %429 = vector.extract_strided_slice %422 {offsets = [0, 128], sizes = [16, 16], strides = [1, 1]} : vector<16x192xf32> to vector<16x16xf32>
    %430 = arith.truncf %429 : vector<16x16xf32> to vector<16x16xbf16>
    %cst_186 = arith.constant dense<0.000000e+00> : vector<16x16xf32>
    %431 = tpu.matmul %426, %428, %cst_186 {dimension_numbers = #tpu.dot_dimension_numbers<[1], [1], [0], [0], [0, 0, 1, 0], [], []>} : vector<16x16xbf16>, vector<16x16xbf16>, vector<16x16xf32> -> vector<16x16xf32>
    %cst_187 = arith.constant dense<0xFF800000> : vector<16xf32>
    %432 = vector.multi_reduction <maximumf>, %431, %cst_187 [1] : vector<16x16xf32> to vector<16xf32>
    %433 = vector.shape_cast %432 : vector<16xf32> to vector<16x1xf32>
    %434 = vector.broadcast %433 : vector<16x1xf32> to vector<16x16xf32>
    %435 = arith.subf %431, %434 : vector<16x16xf32>
    %436 = math.exp %435 : vector<16x16xf32>
    %cst_188 = arith.constant dense<0.000000e+00> : vector<16xf32>
    %437 = vector.multi_reduction <add>, %436, %cst_188 [1] : vector<16x16xf32> to vector<16xf32>
    %438 = vector.shape_cast %437 : vector<16xf32> to vector<16x1xf32>
    %439 = vector.broadcast %438 : vector<16x1xf32> to vector<16x16xf32>
    %440 = arith.divf %436, %439 : vector<16x16xf32>
    %441 = arith.truncf %440 : vector<16x16xf32> to vector<16x16xbf16>
    %cst_189 = arith.constant dense<0.000000e+00> : vector<16x16xf32>
    %442 = tpu.matmul %441, %430, %cst_189 {dimension_numbers = #tpu.dot_dimension_numbers<[1], [0], [0], [1], [0, 0, 1, 1], [], []>} : vector<16x16xbf16>, vector<16x16xbf16>, vector<16x16xf32> -> vector<16x16xf32>
    %443 = vector.extract_strided_slice %424 {offsets = [0, 0], sizes = [16, 64], strides = [1, 1]} : vector<64x64xbf16> to vector<16x64xbf16>
    %444 = arith.truncf %442 : vector<16x16xf32> to vector<16x16xbf16>
    %cst_190 = arith.constant dense<0.000000e+00> : vector<16x64xf32>
    %445 = tpu.matmul %444, %443, %cst_190 {dimension_numbers = #tpu.dot_dimension_numbers<[1], [0], [0], [1], [0, 0, 1, 1], [], []>} : vector<16x16xbf16>, vector<16x64xbf16>, vector<16x64xf32> -> vector<16x64xf32>
    %446 = vector.extract_strided_slice %422 {offsets = [0, 16], sizes = [16, 16], strides = [1, 1]} : vector<16x192xf32> to vector<16x16xf32>
    %447 = arith.truncf %446 : vector<16x16xf32> to vector<16x16xbf16>
    %448 = vector.extract_strided_slice %422 {offsets = [0, 80], sizes = [16, 16], strides = [1, 1]} : vector<16x192xf32> to vector<16x16xf32>
    %449 = arith.truncf %448 : vector<16x16xf32> to vector<16x16xbf16>
    %450 = vector.extract_strided_slice %422 {offsets = [0, 144], sizes = [16, 16], strides = [1, 1]} : vector<16x192xf32> to vector<16x16xf32>
    %451 = arith.truncf %450 : vector<16x16xf32> to vector<16x16xbf16>
    %cst_191 = arith.constant dense<0.000000e+00> : vector<16x16xf32>
    %452 = tpu.matmul %447, %449, %cst_191 {dimension_numbers = #tpu.dot_dimension_numbers<[1], [1], [0], [0], [0, 0, 1, 0], [], []>} : vector<16x16xbf16>, vector<16x16xbf16>, vector<16x16xf32> -> vector<16x16xf32>
    %cst_192 = arith.constant dense<0xFF800000> : vector<16xf32>
    %453 = vector.multi_reduction <maximumf>, %452, %cst_192 [1] : vector<16x16xf32> to vector<16xf32>
    %454 = vector.shape_cast %453 : vector<16xf32> to vector<16x1xf32>
    %455 = vector.broadcast %454 : vector<16x1xf32> to vector<16x16xf32>
    %456 = arith.subf %452, %455 : vector<16x16xf32>
    %457 = math.exp %456 : vector<16x16xf32>
    %cst_193 = arith.constant dense<0.000000e+00> : vector<16xf32>
    %458 = vector.multi_reduction <add>, %457, %cst_193 [1] : vector<16x16xf32> to vector<16xf32>
    %459 = vector.shape_cast %458 : vector<16xf32> to vector<16x1xf32>
    %460 = vector.broadcast %459 : vector<16x1xf32> to vector<16x16xf32>
    %461 = arith.divf %457, %460 : vector<16x16xf32>
    %462 = arith.truncf %461 : vector<16x16xf32> to vector<16x16xbf16>
    %cst_194 = arith.constant dense<0.000000e+00> : vector<16x16xf32>
    %463 = tpu.matmul %462, %451, %cst_194 {dimension_numbers = #tpu.dot_dimension_numbers<[1], [0], [0], [1], [0, 0, 1, 1], [], []>} : vector<16x16xbf16>, vector<16x16xbf16>, vector<16x16xf32> -> vector<16x16xf32>
    %464 = vector.extract_strided_slice %424 {offsets = [16, 0], sizes = [16, 64], strides = [1, 1]} : vector<64x64xbf16> to vector<16x64xbf16>
    %465 = arith.truncf %463 : vector<16x16xf32> to vector<16x16xbf16>
    %cst_195 = arith.constant dense<0.000000e+00> : vector<16x64xf32>
    %466 = tpu.matmul %465, %464, %cst_195 {dimension_numbers = #tpu.dot_dimension_numbers<[1], [0], [0], [1], [0, 0, 1, 1], [], []>} : vector<16x16xbf16>, vector<16x64xbf16>, vector<16x64xf32> -> vector<16x64xf32>
    %467 = arith.addf %445, %466 : vector<16x64xf32>
    %468 = vector.extract_strided_slice %422 {offsets = [0, 32], sizes = [16, 16], strides = [1, 1]} : vector<16x192xf32> to vector<16x16xf32>
    %469 = arith.truncf %468 : vector<16x16xf32> to vector<16x16xbf16>
    %470 = vector.extract_strided_slice %422 {offsets = [0, 96], sizes = [16, 16], strides = [1, 1]} : vector<16x192xf32> to vector<16x16xf32>
    %471 = arith.truncf %470 : vector<16x16xf32> to vector<16x16xbf16>
    %472 = vector.extract_strided_slice %422 {offsets = [0, 160], sizes = [16, 16], strides = [1, 1]} : vector<16x192xf32> to vector<16x16xf32>
    %473 = arith.truncf %472 : vector<16x16xf32> to vector<16x16xbf16>
    %cst_196 = arith.constant dense<0.000000e+00> : vector<16x16xf32>
    %474 = tpu.matmul %469, %471, %cst_196 {dimension_numbers = #tpu.dot_dimension_numbers<[1], [1], [0], [0], [0, 0, 1, 0], [], []>} : vector<16x16xbf16>, vector<16x16xbf16>, vector<16x16xf32> -> vector<16x16xf32>
    %cst_197 = arith.constant dense<0xFF800000> : vector<16xf32>
    %475 = vector.multi_reduction <maximumf>, %474, %cst_197 [1] : vector<16x16xf32> to vector<16xf32>
    %476 = vector.shape_cast %475 : vector<16xf32> to vector<16x1xf32>
    %477 = vector.broadcast %476 : vector<16x1xf32> to vector<16x16xf32>
    %478 = arith.subf %474, %477 : vector<16x16xf32>
    %479 = math.exp %478 : vector<16x16xf32>
    %cst_198 = arith.constant dense<0.000000e+00> : vector<16xf32>
    %480 = vector.multi_reduction <add>, %479, %cst_198 [1] : vector<16x16xf32> to vector<16xf32>
    %481 = vector.shape_cast %480 : vector<16xf32> to vector<16x1xf32>
    %482 = vector.broadcast %481 : vector<16x1xf32> to vector<16x16xf32>
    %483 = arith.divf %479, %482 : vector<16x16xf32>
    %484 = arith.truncf %483 : vector<16x16xf32> to vector<16x16xbf16>
    %cst_199 = arith.constant dense<0.000000e+00> : vector<16x16xf32>
    %485 = tpu.matmul %484, %473, %cst_199 {dimension_numbers = #tpu.dot_dimension_numbers<[1], [0], [0], [1], [0, 0, 1, 1], [], []>} : vector<16x16xbf16>, vector<16x16xbf16>, vector<16x16xf32> -> vector<16x16xf32>
    %486 = vector.extract_strided_slice %424 {offsets = [32, 0], sizes = [16, 64], strides = [1, 1]} : vector<64x64xbf16> to vector<16x64xbf16>
    %487 = arith.truncf %485 : vector<16x16xf32> to vector<16x16xbf16>
    %cst_200 = arith.constant dense<0.000000e+00> : vector<16x64xf32>
    %488 = tpu.matmul %487, %486, %cst_200 {dimension_numbers = #tpu.dot_dimension_numbers<[1], [0], [0], [1], [0, 0, 1, 1], [], []>} : vector<16x16xbf16>, vector<16x64xbf16>, vector<16x64xf32> -> vector<16x64xf32>
    %489 = arith.addf %467, %488 : vector<16x64xf32>
    %490 = vector.extract_strided_slice %422 {offsets = [0, 48], sizes = [16, 16], strides = [1, 1]} : vector<16x192xf32> to vector<16x16xf32>
    %491 = arith.truncf %490 : vector<16x16xf32> to vector<16x16xbf16>
    %492 = vector.extract_strided_slice %422 {offsets = [0, 112], sizes = [16, 16], strides = [1, 1]} : vector<16x192xf32> to vector<16x16xf32>
    %493 = arith.truncf %492 : vector<16x16xf32> to vector<16x16xbf16>
    %494 = vector.extract_strided_slice %422 {offsets = [0, 176], sizes = [16, 16], strides = [1, 1]} : vector<16x192xf32> to vector<16x16xf32>
    %495 = arith.truncf %494 : vector<16x16xf32> to vector<16x16xbf16>
    %cst_201 = arith.constant dense<0.000000e+00> : vector<16x16xf32>
    %496 = tpu.matmul %491, %493, %cst_201 {dimension_numbers = #tpu.dot_dimension_numbers<[1], [1], [0], [0], [0, 0, 1, 0], [], []>} : vector<16x16xbf16>, vector<16x16xbf16>, vector<16x16xf32> -> vector<16x16xf32>
    %cst_202 = arith.constant dense<0xFF800000> : vector<16xf32>
    %497 = vector.multi_reduction <maximumf>, %496, %cst_202 [1] : vector<16x16xf32> to vector<16xf32>
    %498 = vector.shape_cast %497 : vector<16xf32> to vector<16x1xf32>
    %499 = vector.broadcast %498 : vector<16x1xf32> to vector<16x16xf32>
    %500 = arith.subf %496, %499 : vector<16x16xf32>
    %501 = math.exp %500 : vector<16x16xf32>
    %cst_203 = arith.constant dense<0.000000e+00> : vector<16xf32>
    %502 = vector.multi_reduction <add>, %501, %cst_203 [1] : vector<16x16xf32> to vector<16xf32>
    %503 = vector.shape_cast %502 : vector<16xf32> to vector<16x1xf32>
    %504 = vector.broadcast %503 : vector<16x1xf32> to vector<16x16xf32>
    %505 = arith.divf %501, %504 : vector<16x16xf32>
    %506 = arith.truncf %505 : vector<16x16xf32> to vector<16x16xbf16>
    %cst_204 = arith.constant dense<0.000000e+00> : vector<16x16xf32>
    %507 = tpu.matmul %506, %495, %cst_204 {dimension_numbers = #tpu.dot_dimension_numbers<[1], [0], [0], [1], [0, 0, 1, 1], [], []>} : vector<16x16xbf16>, vector<16x16xbf16>, vector<16x16xf32> -> vector<16x16xf32>
    %508 = vector.extract_strided_slice %424 {offsets = [48, 0], sizes = [16, 64], strides = [1, 1]} : vector<64x64xbf16> to vector<16x64xbf16>
    %509 = arith.truncf %507 : vector<16x16xf32> to vector<16x16xbf16>
    %cst_205 = arith.constant dense<0.000000e+00> : vector<16x64xf32>
    %510 = tpu.matmul %509, %508, %cst_205 {dimension_numbers = #tpu.dot_dimension_numbers<[1], [0], [0], [1], [0, 0, 1, 1], [], []>} : vector<16x16xbf16>, vector<16x64xbf16>, vector<16x64xf32> -> vector<16x64xf32>
    %511 = arith.addf %489, %510 : vector<16x64xf32>
    %c3_206 = arith.constant 3 : index
    %c0_207 = arith.constant 0 : index
    %c0_208 = arith.constant 0 : index
    %512 = vector.load %arg13[%c3_206, %c0_207, %c0_208] : memref<4x1x64xf32, #tpu.memory_space<vmem>>, vector<1x1x64xf32>
    %513 = vector.shape_cast %512 : vector<1x1x64xf32> to vector<1x64xf32>
    %514 = vector.broadcast %513 : vector<1x64xf32> to vector<16x64xf32>
    %515 = arith.addf %511, %514 : vector<16x64xf32>
    %c3_209 = arith.constant 3 : index
    %c0_210 = arith.constant 0 : index
    %c0_211 = arith.constant 0 : index
    %516 = vector.load %arg14[%c3_209, %c0_210, %c0_211] : memref<4x64x128xbf16, #tpu.memory_space<vmem>>, vector<1x64x128xbf16>
    %517 = vector.shape_cast %516 : vector<1x64x128xbf16> to vector<64x128xbf16>
    %518 = arith.truncf %414 : vector<16x64xf32> to vector<16x64xbf16>
    %cst_212 = arith.constant dense<0.000000e+00> : vector<16x128xf32>
    %519 = tpu.matmul %518, %517, %cst_212 {dimension_numbers = #tpu.dot_dimension_numbers<[1], [0], [0], [1], [0, 0, 1, 1], [], []>} : vector<16x64xbf16>, vector<64x128xbf16>, vector<16x128xf32> -> vector<16x128xf32>
    %c3_213 = arith.constant 3 : index
    %c0_214 = arith.constant 0 : index
    %c0_215 = arith.constant 0 : index
    %520 = vector.load %arg15[%c3_213, %c0_214, %c0_215] : memref<4x64x128xbf16, #tpu.memory_space<vmem>>, vector<1x64x128xbf16>
    %521 = vector.shape_cast %520 : vector<1x64x128xbf16> to vector<64x128xbf16>
    %522 = arith.truncf %515 : vector<16x64xf32> to vector<16x64xbf16>
    %cst_216 = arith.constant dense<0.000000e+00> : vector<16x128xf32>
    %523 = tpu.matmul %522, %521, %cst_216 {dimension_numbers = #tpu.dot_dimension_numbers<[1], [0], [0], [1], [0, 0, 1, 1], [], []>} : vector<16x64xbf16>, vector<64x128xbf16>, vector<16x128xf32> -> vector<16x128xf32>
    %524 = arith.addf %519, %523 : vector<16x128xf32>
    %c3_217 = arith.constant 3 : index
    %c0_218 = arith.constant 0 : index
    %c0_219 = arith.constant 0 : index
    %525 = vector.load %arg16[%c3_217, %c0_218, %c0_219] : memref<4x1x128xf32, #tpu.memory_space<vmem>>, vector<1x1x128xf32>
    %526 = vector.shape_cast %525 : vector<1x1x128xf32> to vector<1x128xf32>
    %527 = vector.broadcast %526 : vector<1x128xf32> to vector<16x128xf32>
    %528 = arith.addf %524, %527 : vector<16x128xf32>
    %cst_220 = arith.constant 0.000000e+00 : f32
    %529 = vector.broadcast %cst_220 : f32 to vector<16x128xf32>
    %530 = arith.maximumf %528, %529 : vector<16x128xf32>
    %c3_221 = arith.constant 3 : index
    %c0_222 = arith.constant 0 : index
    %c0_223 = arith.constant 0 : index
    %531 = vector.load %arg17[%c3_221, %c0_222, %c0_223] : memref<4x128x64xbf16, #tpu.memory_space<vmem>>, vector<1x128x64xbf16>
    %532 = vector.shape_cast %531 : vector<1x128x64xbf16> to vector<128x64xbf16>
    %c3_224 = arith.constant 3 : index
    %c0_225 = arith.constant 0 : index
    %c0_226 = arith.constant 0 : index
    %533 = vector.load %arg18[%c3_224, %c0_225, %c0_226] : memref<4x1x64xf32, #tpu.memory_space<vmem>>, vector<1x1x64xf32>
    %534 = vector.shape_cast %533 : vector<1x1x64xf32> to vector<1x64xf32>
    %535 = arith.truncf %530 : vector<16x128xf32> to vector<16x128xbf16>
    %cst_227 = arith.constant dense<0.000000e+00> : vector<16x64xf32>
    %536 = tpu.matmul %535, %532, %cst_227 {dimension_numbers = #tpu.dot_dimension_numbers<[1], [0], [0], [1], [0, 0, 1, 1], [], []>} : vector<16x128xbf16>, vector<128x64xbf16>, vector<16x64xf32> -> vector<16x64xf32>
    %537 = vector.broadcast %534 : vector<1x64xf32> to vector<16x64xf32>
    %538 = arith.addf %536, %537 : vector<16x64xf32>
    %539 = arith.addf %414, %538 : vector<16x64xf32>
    %c0_228 = arith.constant 0 : index
    %c0_229 = arith.constant 0 : index
    %540 = vector.load %arg19[%c0_228, %c0_229] : memref<64x64xbf16, #tpu.memory_space<vmem>>, vector<64x64xbf16>
    %c0_230 = arith.constant 0 : index
    %c0_231 = arith.constant 0 : index
    %541 = vector.load %arg20[%c0_230, %c0_231] : memref<1x64xf32, #tpu.memory_space<vmem>>, vector<1x64xf32>
    %542 = arith.truncf %539 : vector<16x64xf32> to vector<16x64xbf16>
    %cst_232 = arith.constant dense<0.000000e+00> : vector<16x64xf32>
    %543 = tpu.matmul %542, %540, %cst_232 {dimension_numbers = #tpu.dot_dimension_numbers<[1], [0], [0], [1], [0, 0, 1, 1], [], []>} : vector<16x64xbf16>, vector<64x64xbf16>, vector<16x64xf32> -> vector<16x64xf32>
    %544 = vector.broadcast %541 : vector<1x64xf32> to vector<16x64xf32>
    %545 = arith.addf %543, %544 : vector<16x64xf32>
    %cst_233 = arith.constant 0.000000e+00 : f32
    %546 = vector.broadcast %cst_233 : f32 to vector<16x64xf32>
    %547 = arith.maximumf %545, %546 : vector<16x64xf32>
    %c0_234 = arith.constant 0 : index
    %c0_235 = arith.constant 0 : index
    %548 = vector.load %arg21[%c0_234, %c0_235] : memref<64x64xbf16, #tpu.memory_space<vmem>>, vector<64x64xbf16>
    %549 = arith.truncf %547 : vector<16x64xf32> to vector<16x64xbf16>
    %cst_236 = arith.constant dense<0.000000e+00> : vector<64x16xf32>
    %550 = tpu.matmul %548, %549, %cst_236 {dimension_numbers = #tpu.dot_dimension_numbers<[1], [1], [0], [0], [0, 0, 1, 0], [], []>} : vector<64x64xbf16>, vector<16x64xbf16>, vector<64x16xf32> -> vector<64x16xf32>
    %c0_237 = arith.constant 0 : index
    %c0_238 = arith.constant 0 : index
    %551 = vector.load %arg22[%c0_237, %c0_238] : memref<64x1xf32, #tpu.memory_space<vmem>>, vector<64x1xf32>
    %552 = vector.broadcast %551 : vector<64x1xf32> to vector<64x16xf32>
    %553 = arith.addf %550, %552 : vector<64x16xf32>
    %cst_239 = arith.constant 0.000000e+00 : f32
    %554 = vector.broadcast %cst_239 : f32 to vector<64x16xf32>
    %555 = arith.maximumf %553, %554 : vector<64x16xf32>
    %c0_240 = arith.constant 0 : index
    %c0_241 = arith.constant 0 : index
    %c0_242 = arith.constant 0 : index
    %556 = vector.load %arg29[%c0_240, %c0_241, %c0_242] : memref<1x64x16xf32, #tpu.memory_space<vmem>>, vector<1x64x16xf32>
    %557 = vector.shape_cast %556 : vector<1x64x16xf32> to vector<64x16xf32>
    %558 = vector.shape_cast %555 : vector<64x16xf32> to vector<1x64x16xf32>
    tpu.vector_store %arg29[%c0_240, %c0_241, %c0_242], %558 {strides = array<i32>} : memref<1x64x16xf32, #tpu.memory_space<vmem>>, vector<1x64x16xf32>,
    %c0_243 = arith.constant 0 : index
    %c0_244 = arith.constant 0 : index
    %559 = vector.load %arg23[%c0_243, %c0_244] : memref<64x64xbf16, #tpu.memory_space<vmem>>, vector<64x64xbf16>
    %c0_245 = arith.constant 0 : index
    %c0_246 = arith.constant 0 : index
    %560 = vector.load %arg24[%c0_245, %c0_246] : memref<1x64xf32, #tpu.memory_space<vmem>>, vector<1x64xf32>
    %561 = arith.truncf %539 : vector<16x64xf32> to vector<16x64xbf16>
    %cst_247 = arith.constant dense<0.000000e+00> : vector<16x64xf32>
    %562 = tpu.matmul %561, %559, %cst_247 {dimension_numbers = #tpu.dot_dimension_numbers<[1], [0], [0], [1], [0, 0, 1, 1], [], []>} : vector<16x64xbf16>, vector<64x64xbf16>, vector<16x64xf32> -> vector<16x64xf32>
    %563 = vector.broadcast %560 : vector<1x64xf32> to vector<16x64xf32>
    %564 = arith.addf %562, %563 : vector<16x64xf32>
    %cst_248 = arith.constant 0.000000e+00 : f32
    %565 = vector.broadcast %cst_248 : f32 to vector<16x64xf32>
    %566 = arith.maximumf %564, %565 : vector<16x64xf32>
    %c0_249 = arith.constant 0 : index
    %c0_250 = arith.constant 0 : index
    %567 = vector.load %arg25[%c0_249, %c0_250] : memref<64x64xbf16, #tpu.memory_space<vmem>>, vector<64x64xbf16>
    %c0_251 = arith.constant 0 : index
    %c0_252 = arith.constant 0 : index
    %568 = vector.load %arg26[%c0_251, %c0_252] : memref<1x64xf32, #tpu.memory_space<vmem>>, vector<1x64xf32>
    %569 = arith.truncf %566 : vector<16x64xf32> to vector<16x64xbf16>
    %cst_253 = arith.constant dense<0.000000e+00> : vector<16x64xf32>
    %570 = tpu.matmul %569, %567, %cst_253 {dimension_numbers = #tpu.dot_dimension_numbers<[1], [0], [0], [1], [0, 0, 1, 1], [], []>} : vector<16x64xbf16>, vector<64x64xbf16>, vector<16x64xf32> -> vector<16x64xf32>
    %571 = vector.broadcast %568 : vector<1x64xf32> to vector<16x64xf32>
    %572 = arith.addf %570, %571 : vector<16x64xf32>
    %cst_254 = arith.constant 0.000000e+00 : f32
    %573 = vector.broadcast %cst_254 : f32 to vector<16x64xf32>
    %574 = arith.maximumf %572, %573 : vector<16x64xf32>
    %c0_255 = arith.constant 0 : index
    %c0_256 = arith.constant 0 : index
    %575 = vector.load %arg27[%c0_255, %c0_256] : memref<64x2xbf16, #tpu.memory_space<vmem>>, vector<64x2xbf16>
    %c0_257 = arith.constant 0 : index
    %c0_258 = arith.constant 0 : index
    %576 = vector.load %arg28[%c0_257, %c0_258] : memref<1x2xf32, #tpu.memory_space<vmem>>, vector<1x2xf32>
    %577 = arith.truncf %574 : vector<16x64xf32> to vector<16x64xbf16>
    %cst_259 = arith.constant dense<0.000000e+00> : vector<16x2xf32>
    %578 = tpu.matmul %577, %575, %cst_259 {dimension_numbers = #tpu.dot_dimension_numbers<[1], [0], [0], [1], [0, 0, 1, 1], [], []>} : vector<16x64xbf16>, vector<64x2xbf16>, vector<16x2xf32> -> vector<16x2xf32>
    %579 = vector.broadcast %576 : vector<1x2xf32> to vector<16x2xf32>
    %580 = arith.addf %578, %579 : vector<16x2xf32>
    %cst_260 = arith.constant -1.000000e+00 : f32
    %cst_261 = arith.constant 1.000000e+00 : f32
    %581 = vector.broadcast %cst_260 : f32 to vector<16x2xf32>
    %582 = arith.maximumf %581, %580 : vector<16x2xf32>
    %583 = vector.broadcast %cst_261 : f32 to vector<16x2xf32>
    %584 = arith.minimumf %583, %582 : vector<16x2xf32>
    %c0_262 = arith.constant 0 : index
    %c0_263 = arith.constant 0 : index
    %c0_264 = arith.constant 0 : index
    %585 = vector.load %arg30[%c0_262, %c0_263, %c0_264] : memref<1x16x2xf32, #tpu.memory_space<vmem>>, vector<1x16x2xf32>
    %586 = vector.shape_cast %585 : vector<1x16x2xf32> to vector<16x2xf32>
    %587 = vector.shape_cast %584 : vector<16x2xf32> to vector<1x16x2xf32>
    tpu.vector_store %arg30[%c0_262, %c0_263, %c0_264], %587 {strides = array<i32>} : memref<1x16x2xf32, #tpu.memory_space<vmem>>, vector<1x16x2xf32>,
    return
  }
  func.func @transform_0(%arg0: i32) -> (i32, i32, i32) {
    %c0_i32 = arith.constant 0 : i32
    %c0_i32_0 = arith.constant 0 : i32
    %c0_i32_1 = arith.constant 0 : i32
    return %arg0, %c0_i32, %c0_i32_0 : i32, i32, i32
  }
  func.func @transform_1(%arg0: i32) -> (i32, i32, i32) {
    %c0_i32 = arith.constant 0 : i32
    %c0_i32_0 = arith.constant 0 : i32
    %c0_i32_1 = arith.constant 0 : i32
    return %arg0, %c0_i32, %c0_i32_0 : i32, i32, i32
  }
  func.func @transform_2(%arg0: i32) -> (i32, i32) {
    %c0_i32 = arith.constant 0 : i32
    %c0_i32_0 = arith.constant 0 : i32
    %c0_i32_1 = arith.constant 0 : i32
    return %c0_i32, %c0_i32_0 : i32, i32
  }
  func.func @transform_3(%arg0: i32) -> (i32, i32) {
    %c0_i32 = arith.constant 0 : i32
    %c0_i32_0 = arith.constant 0 : i32
    %c0_i32_1 = arith.constant 0 : i32
    return %c0_i32, %c0_i32_0 : i32, i32
  }
  func.func @transform_4(%arg0: i32) -> (i32, i32) {
    %c0_i32 = arith.constant 0 : i32
    %c0_i32_0 = arith.constant 0 : i32
    %c0_i32_1 = arith.constant 0 : i32
    return %c0_i32, %c0_i32_0 : i32, i32
  }
  func.func @transform_5(%arg0: i32) -> (i32, i32) {
    %c0_i32 = arith.constant 0 : i32
    %c0_i32_0 = arith.constant 0 : i32
    %c0_i32_1 = arith.constant 0 : i32
    return %c0_i32, %c0_i32_0 : i32, i32
  }
  func.func @transform_6(%arg0: i32) -> (i32, i32) {
    %c0_i32 = arith.constant 0 : i32
    %c0_i32_0 = arith.constant 0 : i32
    %c0_i32_1 = arith.constant 0 : i32
    return %c0_i32, %c0_i32_0 : i32, i32
  }
  func.func @transform_7(%arg0: i32) -> (i32, i32) {
    %c0_i32 = arith.constant 0 : i32
    %c0_i32_0 = arith.constant 0 : i32
    %c0_i32_1 = arith.constant 0 : i32
    return %c0_i32, %c0_i32_0 : i32, i32
  }
  func.func @transform_8(%arg0: i32) -> (i32, i32) {
    %c0_i32 = arith.constant 0 : i32
    %c0_i32_0 = arith.constant 0 : i32
    %c0_i32_1 = arith.constant 0 : i32
    return %c0_i32, %c0_i32_0 : i32, i32
  }
  func.func @transform_9(%arg0: i32) -> (i32, i32, i32) {
    %c0_i32 = arith.constant 0 : i32
    %c0_i32_0 = arith.constant 0 : i32
    %c0_i32_1 = arith.constant 0 : i32
    %c0_i32_2 = arith.constant 0 : i32
    return %c0_i32, %c0_i32_0, %c0_i32_1 : i32, i32, i32
  }
  func.func @transform_10(%arg0: i32) -> (i32, i32, i32) {
    %c0_i32 = arith.constant 0 : i32
    %c0_i32_0 = arith.constant 0 : i32
    %c0_i32_1 = arith.constant 0 : i32
    %c0_i32_2 = arith.constant 0 : i32
    return %c0_i32, %c0_i32_0, %c0_i32_1 : i32, i32, i32
  }
  func.func @transform_11(%arg0: i32) -> (i32, i32, i32) {
    %c0_i32 = arith.constant 0 : i32
    %c0_i32_0 = arith.constant 0 : i32
    %c0_i32_1 = arith.constant 0 : i32
    %c0_i32_2 = arith.constant 0 : i32
    return %c0_i32, %c0_i32_0, %c0_i32_1 : i32, i32, i32
  }
  func.func @transform_12(%arg0: i32) -> (i32, i32, i32) {
    %c0_i32 = arith.constant 0 : i32
    %c0_i32_0 = arith.constant 0 : i32
    %c0_i32_1 = arith.constant 0 : i32
    %c0_i32_2 = arith.constant 0 : i32
    return %c0_i32, %c0_i32_0, %c0_i32_1 : i32, i32, i32
  }
  func.func @transform_13(%arg0: i32) -> (i32, i32, i32) {
    %c0_i32 = arith.constant 0 : i32
    %c0_i32_0 = arith.constant 0 : i32
    %c0_i32_1 = arith.constant 0 : i32
    %c0_i32_2 = arith.constant 0 : i32
    return %c0_i32, %c0_i32_0, %c0_i32_1 : i32, i32, i32
  }
  func.func @transform_14(%arg0: i32) -> (i32, i32, i32) {
    %c0_i32 = arith.constant 0 : i32
    %c0_i32_0 = arith.constant 0 : i32
    %c0_i32_1 = arith.constant 0 : i32
    %c0_i32_2 = arith.constant 0 : i32
    return %c0_i32, %c0_i32_0, %c0_i32_1 : i32, i32, i32
  }
  func.func @transform_15(%arg0: i32) -> (i32, i32, i32) {
    %c0_i32 = arith.constant 0 : i32
    %c0_i32_0 = arith.constant 0 : i32
    %c0_i32_1 = arith.constant 0 : i32
    %c0_i32_2 = arith.constant 0 : i32
    return %c0_i32, %c0_i32_0, %c0_i32_1 : i32, i32, i32
  }
  func.func @transform_16(%arg0: i32) -> (i32, i32, i32) {
    %c0_i32 = arith.constant 0 : i32
    %c0_i32_0 = arith.constant 0 : i32
    %c0_i32_1 = arith.constant 0 : i32
    %c0_i32_2 = arith.constant 0 : i32
    return %c0_i32, %c0_i32_0, %c0_i32_1 : i32, i32, i32
  }
  func.func @transform_17(%arg0: i32) -> (i32, i32, i32) {
    %c0_i32 = arith.constant 0 : i32
    %c0_i32_0 = arith.constant 0 : i32
    %c0_i32_1 = arith.constant 0 : i32
    %c0_i32_2 = arith.constant 0 : i32
    return %c0_i32, %c0_i32_0, %c0_i32_1 : i32, i32, i32
  }
  func.func @transform_18(%arg0: i32) -> (i32, i32) {
    %c0_i32 = arith.constant 0 : i32
    %c0_i32_0 = arith.constant 0 : i32
    %c0_i32_1 = arith.constant 0 : i32
    return %c0_i32, %c0_i32_0 : i32, i32
  }
  func.func @transform_19(%arg0: i32) -> (i32, i32) {
    %c0_i32 = arith.constant 0 : i32
    %c0_i32_0 = arith.constant 0 : i32
    %c0_i32_1 = arith.constant 0 : i32
    return %c0_i32, %c0_i32_0 : i32, i32
  }
  func.func @transform_20(%arg0: i32) -> (i32, i32) {
    %c0_i32 = arith.constant 0 : i32
    %c0_i32_0 = arith.constant 0 : i32
    %c0_i32_1 = arith.constant 0 : i32
    return %c0_i32, %c0_i32_0 : i32, i32
  }
  func.func @transform_21(%arg0: i32) -> (i32, i32) {
    %c0_i32 = arith.constant 0 : i32
    %c0_i32_0 = arith.constant 0 : i32
    %c0_i32_1 = arith.constant 0 : i32
    return %c0_i32, %c0_i32_0 : i32, i32
  }
  func.func @transform_22(%arg0: i32) -> (i32, i32) {
    %c0_i32 = arith.constant 0 : i32
    %c0_i32_0 = arith.constant 0 : i32
    %c0_i32_1 = arith.constant 0 : i32
    return %c0_i32, %c0_i32_0 : i32, i32
  }
  func.func @transform_23(%arg0: i32) -> (i32, i32) {
    %c0_i32 = arith.constant 0 : i32
    %c0_i32_0 = arith.constant 0 : i32
    %c0_i32_1 = arith.constant 0 : i32
    return %c0_i32, %c0_i32_0 : i32, i32
  }
  func.func @transform_24(%arg0: i32) -> (i32, i32) {
    %c0_i32 = arith.constant 0 : i32
    %c0_i32_0 = arith.constant 0 : i32
    %c0_i32_1 = arith.constant 0 : i32
    return %c0_i32, %c0_i32_0 : i32, i32
  }
  func.func @transform_25(%arg0: i32) -> (i32, i32) {
    %c0_i32 = arith.constant 0 : i32
    %c0_i32_0 = arith.constant 0 : i32
    %c0_i32_1 = arith.constant 0 : i32
    return %c0_i32, %c0_i32_0 : i32, i32
  }
  func.func @transform_26(%arg0: i32) -> (i32, i32) {
    %c0_i32 = arith.constant 0 : i32
    %c0_i32_0 = arith.constant 0 : i32
    %c0_i32_1 = arith.constant 0 : i32
    return %c0_i32, %c0_i32_0 : i32, i32
  }
  func.func @transform_27(%arg0: i32) -> (i32, i32) {
    %c0_i32 = arith.constant 0 : i32
    %c0_i32_0 = arith.constant 0 : i32
    %c0_i32_1 = arith.constant 0 : i32
    return %c0_i32, %c0_i32_0 : i32, i32
  }
  func.func @transform_28(%arg0: i32) -> (i32, i32, i32) {
    %c0_i32 = arith.constant 0 : i32
    %c0_i32_0 = arith.constant 0 : i32
    %c0_i32_1 = arith.constant 0 : i32
    return %arg0, %c0_i32, %c0_i32_0 : i32, i32, i32
  }
  func.func @transform_29(%arg0: i32) -> (i32, i32, i32) {
    %c0_i32 = arith.constant 0 : i32
    %c0_i32_0 = arith.constant 0 : i32
    %c0_i32_1 = arith.constant 0 : i32
    return %arg0, %c0_i32, %c0_i32_0 : i32, i32, i32
  }
}

</mosaic_0001>

<llo_original>
// kernel: attentional_gnn_forward.1
$region0: #{attentional_gnn_forward.1}
  #allocation0 [shape = 'u32[]', space=smem, size = 0x4, offset = 0x4, fixed_abs, tag = 'smem constant byte address 0x4 - core index']
  #allocation1 [shape = 'u32[72,128]{1,0:T(1,128)}', space=vmem, size = 0x9000, scoped, tag = 'internal scratch']
  %s0 = inlined_call_operand.smem [shape: u32[30], index: -1, kind: input, shape index: {}]
  %s1 = sld [smem:[%s0]]
  %s2 = scalar_lea.smem %s0, 1
  %s3 = sld [smem:[%s2]]
  %s4 = scalar_lea.smem %s0, 2
  %s5 = sld [smem:[%s4]]
  %s6 = scalar_lea.smem %s0, 3
  %s7 = sld [smem:[%s6]]
  %s8 = scalar_lea.smem %s0, 4
  %s9 = sld [smem:[%s8]]
  %s10 = scalar_lea.smem %s0, 5
  %s11 = sld [smem:[%s10]]
  %s12 = scalar_lea.smem %s0, 6
  %s13 = sld [smem:[%s12]]
  %s14 = scalar_lea.smem %s0, 7
  %s15 = sld [smem:[%s14]]
  %s16 = scalar_lea.smem %s0, 8
  %s17 = sld [smem:[%s16]]
  %s18 = scalar_lea.smem %s0, 9
  %s19 = sld [smem:[%s18]]
  %s20 = scalar_lea.smem %s0, 10
  %s21 = sld [smem:[%s20]]
  %s22 = scalar_lea.smem %s0, 11
  %s23 = sld [smem:[%s22]]
  %s24 = scalar_lea.smem %s0, 12
  %s25 = sld [smem:[%s24]]
  %s26 = scalar_lea.smem %s0, 13
  %s27 = sld [smem:[%s26]]
  %s28 = scalar_lea.smem %s0, 14
  %s29 = sld [smem:[%s28]]
  %s30 = scalar_lea.smem %s0, 15
  %s31 = sld [smem:[%s30]]
  %s32 = scalar_lea.smem %s0, 16
  %s33 = sld [smem:[%s32]]
  %s34 = scalar_lea.smem %s0, 17
  %s35 = sld [smem:[%s34]]
  %s36 = scalar_lea.smem %s0, 18
  %s37 = sld [smem:[%s36]]
  %s38 = scalar_lea.smem %s0, 19
  %s39 = sld [smem:[%s38]]
  %s40 = scalar_lea.smem %s0, 20
  %s41 = sld [smem:[%s40]]
  %s42 = scalar_lea.smem %s0, 21
  %s43 = sld [smem:[%s42]]
  %s44 = scalar_lea.smem %s0, 22
  %s45 = sld [smem:[%s44]]
  %s46 = scalar_lea.smem %s0, 23
  %s47 = sld [smem:[%s46]]
  %s48 = scalar_lea.smem %s0, 24
  %s49 = sld [smem:[%s48]]
  %s50 = scalar_lea.smem %s0, 25
  %s51 = sld [smem:[%s50]]
  %s52 = scalar_lea.smem %s0, 26
  %s53 = sld [smem:[%s52]]
  %s54 = scalar_lea.smem %s0, 27
  %s55 = sld [smem:[%s54]]
  %s56 = scalar_lea.smem %s0, 28
  %s57 = sld [smem:[%s56]]
  %s58 = scalar_lea.smem %s0, 29
  %s59 = sld [smem:[%s58]]
  %60 = xla_tuple %s57, %s59
  %s61 = sld [smem:[#allocation0]]
  $region209: #{attentional_gnn_forward.1} parent=0
    _
  %s63 = ssub.s32 1, %s61
  %s64 = scalar_select 0, %s63, %s61
  $region1: #{attentional_gnn_forward.1} parent=0
    #allocation2 [shape = 'u8[16384]{0}', space=vmem, size = 0x4000, scoped, tag = 'input window, operand 2, single buffered']
    #allocation3 [shape = 's32[2]{0}', space=sflag, size = 0x8, scoped, tag = 'scoped memory for attentional_gnn_forward.1']
    #allocation4 [shape = 'u8[1024]{0}', space=vmem, size = 0x400, scoped, tag = 'input window, operand 3, single buffered']
    #allocation5 [shape = 's32[1]{0}', space=sflag, size = 0x4, scoped, tag = 'scoped memory for attentional_gnn_forward.1']
    #allocation6 [shape = 'u8[16384]{0}', space=vmem, size = 0x4000, scoped, tag = 'input window, operand 5, single buffered']
    #allocation7 [shape = 'u8[512]{0}', space=vmem, size = 0x400, scoped, tag = 'input window, operand 6, single buffered']
    #allocation8 [shape = 's32[1]{0}', space=sflag, size = 0x4, scoped, tag = 'scoped memory for attentional_gnn_forward.1']
    #allocation9 [shape = 'u8[16384]{0}', space=vmem, size = 0x4000, scoped, tag = 'input window, operand 7, single buffered']
    #allocation10 [shape = 'u8[512]{0}', space=vmem, size = 0x400, scoped, tag = 'input window, operand 8, single buffered']
    #allocation11 [shape = 's32[1]{0}', space=sflag, size = 0x4, scoped, tag = 'scoped memory for attentional_gnn_forward.1']
    #allocation12 [shape = 'u8[4096]{0}', space=vmem, size = 0x1000, scoped, tag = 'input window, operand 10, single buffered']
    #allocation13 [shape = 'u8[65536]{0}', space=vmem, size = 0x10000, scoped, tag = 'input window, operand 14, single buffered']
    #allocation14 [shape = 's32[1]{0}', space=sflag, size = 0x4, scoped, tag = 'scoped memory for attentional_gnn_forward.1']
    #allocation15 [shape = 'u8[2048]{0}', space=vmem, size = 0x800, scoped, tag = 'input window, operand 15, single buffered']
    #allocation16 [shape = 'u8[2048]{0}', space=vmem, size = 0x800, scoped, tag = 'input window, operand 17, single buffered']
    #allocation17 [shape = 's32[1]{0}', space=sflag, size = 0x4, scoped, tag = 'scoped memory for attentional_gnn_forward.1']
    #allocation18 [shape = 'u8[16384]{0}', space=vmem, size = 0x4000, scoped, tag = 'input window, operand 18, single buffered']
    #allocation19 [shape = 'u8[16384]{0}', space=vmem, size = 0x4000, scoped, tag = 'input window, operand 20, single buffered']
    #allocation20 [shape = 's32[1]{0}', space=sflag, size = 0x4, scoped, tag = 'scoped memory for attentional_gnn_forward.1']
    #allocation21 [shape = 'u8[16384]{0}', space=vmem, size = 0x4000, scoped, tag = 'input window, operand 22, single buffered']
    #allocation22 [shape = 'u8[16384]{0}', space=vmem, size = 0x4000, scoped, tag = 'input window, operand 24, single buffered']
    #allocation23 [shape = 's32[1]{0}', space=sflag, size = 0x4, scoped, tag = 'scoped memory for attentional_gnn_forward.1']
    %65 = vsyncpa [#allocation3], 0
    %66 = vsyncpa [#allocation5], 0
    %67 = vsyncpa [#allocation8], 0
    %68 = vsyncpa [#allocation11], 0
    %69 = vsyncpa [#allocation14], 0
    %70 = vsyncpa [#allocation17], 0
    %71 = vsyncpa [#allocation20], 0
    %72 = vsyncpa [#allocation23], 0
    loop: start=0, step=1, limit=4
    $region2: #{attentional_gnn_forward.1} parent=1 // loop_pre_header
      _
    $region3: #{attentional_gnn_forward.1} parent=1 // loop_header
      %s74 = sphi 0, %s78
      %p75 = scmp.ge.s32.totalorder %s74, 4
      %s84 = sphi 0, %s86
      %s87 = sphi 0, %s84
      %s88 = sphi 0, %s87
      %s104 = sphi 0, %s88
      %s110 = sphi 0, %s112
      %s113 = sphi 0, %s110
      %s114 = sphi 0, %s113
      %s130 = sphi 0, %s114
      %s134 = sphi 0, %s134
      %s136 = sphi 0, %s134
      %s137 = sphi 0, %s136
      %s151 = sphi 0, %s137
      %s155 = sphi 0, %s155
      %s157 = sphi 0, %s155
      %s158 = sphi 0, %s157
      %s172 = sphi 0, %s158
      %s176 = sphi 0, %s176
      %s178 = sphi 0, %s176
      %s179 = sphi 0, %s178
      %s193 = sphi 0, %s179
      %s197 = sphi 0, %s197
      %s199 = sphi 0, %s197
      %s200 = sphi 0, %s199
      %s214 = sphi 0, %s200
      %s218 = sphi 0, %s218
      %s220 = sphi 0, %s218
      %s221 = sphi 0, %s220
      %s235 = sphi 0, %s221
      %s239 = sphi 0, %s239
      %s241 = sphi 0, %s239
      %s242 = sphi 0, %s241
      %s256 = sphi 0, %s242
      %s260 = sphi 0, %s260
      %s262 = sphi 0, %s260
      %s263 = sphi 0, %s262
      %s277 = sphi 0, %s263
      %s281 = sphi 0, %s281
      %s283 = sphi 0, %s281
      %s284 = sphi 0, %s283
      %s298 = sphi 0, %s284
      %s302 = sphi 0, %s302
      %s304 = sphi 0, %s302
      %s305 = sphi 0, %s304
      %s319 = sphi 0, %s305
      %s323 = sphi 0, %s323
      %s325 = sphi 0, %s323
      %s326 = sphi 0, %s325
      %s340 = sphi 0, %s326
      %s344 = sphi 0, %s344
      %s346 = sphi 0, %s344
      %s347 = sphi 0, %s346
      %s361 = sphi 0, %s347
      %s365 = sphi 0, %s365
      %s367 = sphi 0, %s365
      %s368 = sphi 0, %s367
      %s382 = sphi 0, %s368
      %s386 = sphi 0, %s386
      %s388 = sphi 0, %s386
      %s389 = sphi 0, %s388
      %s403 = sphi 0, %s389
      %s407 = sphi 0, %s407
      %s409 = sphi 0, %s407
      %s410 = sphi 0, %s409
      %s424 = sphi 0, %s410
      %s428 = sphi 0, %s428
      %s430 = sphi 0, %s428
      %s431 = sphi 0, %s430
      %s445 = sphi 0, %s431
      %s449 = sphi 0, %s449
      %s451 = sphi 0, %s449
      %s452 = sphi 0, %s451
      %s466 = sphi 0, %s452
      %s470 = sphi 0, %s470
      %s472 = sphi 0, %s470
      %s473 = sphi 0, %s472
      %s487 = sphi 0, %s473
      %s491 = sphi 0, %s491
      %s493 = sphi 0, %s491
      %s494 = sphi 0, %s493
      %s508 = sphi 0, %s494
      %s512 = sphi 0, %s512
      %s514 = sphi 0, %s512
      %s515 = sphi 0, %s514
      %s529 = sphi 0, %s515
      %s533 = sphi 0, %s533
      %s535 = sphi 0, %s533
      %s536 = sphi 0, %s535
      %s550 = sphi 0, %s536
      %s554 = sphi 0, %s554
      %s556 = sphi 0, %s554
      %s557 = sphi 0, %s556
      %s571 = sphi 0, %s557
      %s575 = sphi 0, %s575
      %s577 = sphi 0, %s575
      %s578 = sphi 0, %s577
      %s592 = sphi 0, %s578
      %s596 = sphi 0, %s596
      %s598 = sphi 0, %s596
      %s599 = sphi 0, %s598
      %s613 = sphi 0, %s599
      %s617 = sphi 0, %s617
      %s619 = sphi 0, %s617
      %s620 = sphi 0, %s619
      %s634 = sphi 0, %s620
      %s638 = sphi 0, %s638
      %s640 = sphi 0, %s638
      %s641 = sphi 0, %s640
      %s655 = sphi 0, %s641
      %s659 = sphi 0, %s659
      %s661 = sphi 0, %s659
      %s662 = sphi 0, %s661
      %s676 = sphi 0, %s662
      %s682 = sphi 0, %s684
      %s685 = sphi 0, %s682
      %s686 = sphi 0, %s685
      %s702 = sphi 0, %s686
      %s708 = sphi 0, %s710
      %s711 = sphi 0, %s708
      %s712 = sphi 0, %s711
      %s728 = sphi 0, %s712
    $region4: #{attentional_gnn_forward.1} parent=1 // loop_header_branch
      %77 = sbr.rel (%p75) target = $region8
    $region5: #{attentional_gnn_forward.1} parent=1 // loop_body
      %s79 = ssub.s32 %s74, 1
      %s80 = ssub.s32 %s74, 2
      %s81 = sadd.s32 %s74, 1
      %s82 = ssub.s32 %s74, %s81
      %p83 = scmp.eq.s32.totalorder %s82, 0
      %s85 = sadd.s32 %s84, 1
      %s86 = scalar_select %p83, %s84, %s85
      %p89 = pneg %p83
      %p90 = scmp.eq.s32.totalorder %s74, 1
      %p91 = por %p89, %p90
      %p92 = scmp.ne.s32.totalorder %s84, %s87
      %p93 = scmp.eq.s32.totalorder %s74, 0
      %p94 = por %p92, %p93
      %p95 = scmp.ne.s32.totalorder %s84, %s87
      %p96 = scmp.eq.s32.totalorder %s79, 1
      %p97 = por %p95, %p96
      %p98 = scmp.ne.s32.totalorder %s87, %s88
      %p99 = scmp.eq.s32.totalorder %s79, 0
      %p100 = por %p98, %p99
      %p101 = scmp.ne.s32.totalorder %s87, %s88
      %p102 = scmp.eq.s32.totalorder %s80, 1
      %p103 = por %p101, %p102
      %p105 = scmp.ne.s32.totalorder %s88, %s104
      %p106 = scmp.eq.s32.totalorder %s80, 0
      %p107 = por %p105, %p106
      %s108 = ssub.s32 %s74, %s81
      %p109 = scmp.eq.s32.totalorder %s108, 0
      %s111 = sadd.s32 %s110, 1
      %s112 = scalar_select %p109, %s110, %s111
      %p115 = pneg %p109
      %p116 = scmp.eq.s32.totalorder %s74, 1
      %p117 = por %p115, %p116
      %p118 = scmp.ne.s32.totalorder %s110, %s113
      %p119 = scmp.eq.s32.totalorder %s74, 0
      %p120 = por %p118, %p119
      %p121 = scmp.ne.s32.totalorder %s110, %s113
      %p122 = scmp.eq.s32.totalorder %s79, 1
      %p123 = por %p121, %p122
      %p124 = scmp.ne.s32.totalorder %s113, %s114
      %p125 = scmp.eq.s32.totalorder %s79, 0
      %p126 = por %p124, %p125
      %p127 = scmp.ne.s32.totalorder %s113, %s114
      %p128 = scmp.eq.s32.totalorder %s80, 1
      %p129 = por %p127, %p128
      %p131 = scmp.ne.s32.totalorder %s114, %s130
      %p132 = scmp.eq.s32.totalorder %s80, 0
      %p133 = por %p131, %p132
      %s135 = sadd.s32 %s134, 1
      %p138 = scmp.eq.s32.totalorder %s74, 1
      %p139 = scmp.ne.s32.totalorder %s134, %s136
      %p140 = scmp.eq.s32.totalorder %s74, 0
      %p141 = por %p139, %p140
      %p142 = scmp.ne.s32.totalorder %s134, %s136
      %p143 = scmp.eq.s32.totalorder %s79, 1
      %p144 = por %p142, %p143
      %p145 = scmp.ne.s32.totalorder %s136, %s137
      %p146 = scmp.eq.s32.totalorder %s79, 0
      %p147 = por %p145, %p146
      %p148 = scmp.ne.s32.totalorder %s136, %s137
      %p149 = scmp.eq.s32.totalorder %s80, 1
      %p150 = por %p148, %p149
      %p152 = scmp.ne.s32.totalorder %s137, %s151
      %p153 = scmp.eq.s32.totalorder %s80, 0
      %p154 = por %p152, %p153
      %s156 = sadd.s32 %s155, 1
      %p159 = scmp.eq.s32.totalorder %s74, 1
      %p160 = scmp.ne.s32.totalorder %s155, %s157
      %p161 = scmp.eq.s32.totalorder %s74, 0
      %p162 = por %p160, %p161
      %p163 = scmp.ne.s32.totalorder %s155, %s157
      %p164 = scmp.eq.s32.totalorder %s79, 1
      %p165 = por %p163, %p164
      %p166 = scmp.ne.s32.totalorder %s157, %s158
      %p167 = scmp.eq.s32.totalorder %s79, 0
      %p168 = por %p166, %p167
      %p169 = scmp.ne.s32.totalorder %s157, %s158
      %p170 = scmp.eq.s32.totalorder %s80, 1
      %p171 = por %p169, %p170
      %p173 = scmp.ne.s32.totalorder %s158, %s172
      %p174 = scmp.eq.s32.totalorder %s80, 0
      %p175 = por %p173, %p174
      %s177 = sadd.s32 %s176, 1
      %p180 = scmp.eq.s32.totalorder %s74, 1
      %p181 = scmp.ne.s32.totalorder %s176, %s178
      %p182 = scmp.eq.s32.totalorder %s74, 0
      %p183 = por %p181, %p182
      %p184 = scmp.ne.s32.totalorder %s176, %s178
      %p185 = scmp.eq.s32.totalorder %s79, 1
      %p186 = por %p184, %p185
      %p187 = scmp.ne.s32.totalorder %s178, %s179
      %p188 = scmp.eq.s32.totalorder %s79, 0
      %p189 = por %p187, %p188
      %p190 = scmp.ne.s32.totalorder %s178, %s179
      %p191 = scmp.eq.s32.totalorder %s80, 1
      %p192 = por %p190, %p191
      %p194 = scmp.ne.s32.totalorder %s179, %s193
      %p195 = scmp.eq.s32.totalorder %s80, 0
      %p196 = por %p194, %p195
      %s198 = sadd.s32 %s197, 1
      %p201 = scmp.eq.s32.totalorder %s74, 1
      %p202 = scmp.ne.s32.totalorder %s197, %s199
      %p203 = scmp.eq.s32.totalorder %s74, 0
      %p204 = por %p202, %p203
      %p205 = scmp.ne.s32.totalorder %s197, %s199
      %p206 = scmp.eq.s32.totalorder %s79, 1
      %p207 = por %p205, %p206
      %p208 = scmp.ne.s32.totalorder %s199, %s200
      %p209 = scmp.eq.s32.totalorder %s79, 0
      %p210 = por %p208, %p209
      %p211 = scmp.ne.s32.totalorder %s199, %s200
      %p212 = scmp.eq.s32.totalorder %s80, 1
      %p213 = por %p211, %p212
      %p215 = scmp.ne.s32.totalorder %s200, %s214
      %p216 = scmp.eq.s32.totalorder %s80, 0
      %p217 = por %p215, %p216
      %s219 = sadd.s32 %s218, 1
      %p222 = scmp.eq.s32.totalorder %s74, 1
      %p223 = scmp.ne.s32.totalorder %s218, %s220
      %p224 = scmp.eq.s32.totalorder %s74, 0
      %p225 = por %p223, %p224
      %p226 = scmp.ne.s32.totalorder %s218, %s220
      %p227 = scmp.eq.s32.totalorder %s79, 1
      %p228 = por %p226, %p227
      %p229 = scmp.ne.s32.totalorder %s220, %s221
      %p230 = scmp.eq.s32.totalorder %s79, 0
      %p231 = por %p229, %p230
      %p232 = scmp.ne.s32.totalorder %s220, %s221
      %p233 = scmp.eq.s32.totalorder %s80, 1
      %p234 = por %p232, %p233
      %p236 = scmp.ne.s32.totalorder %s221, %s235
      %p237 = scmp.eq.s32.totalorder %s80, 0
      %p238 = por %p236, %p237
      %s240 = sadd.s32 %s239, 1
      %p243 = scmp.eq.s32.totalorder %s74, 1
      %p244 = scmp.ne.s32.totalorder %s239, %s241
      %p245 = scmp.eq.s32.totalorder %s74, 0
      %p246 = por %p244, %p245
      %p247 = scmp.ne.s32.totalorder %s239, %s241
      %p248 = scmp.eq.s32.totalorder %s79, 1
      %p249 = por %p247, %p248
      %p250 = scmp.ne.s32.totalorder %s241, %s242
      %p251 = scmp.eq.s32.totalorder %s79, 0
      %p252 = por %p250, %p251
      %p253 = scmp.ne.s32.totalorder %s241, %s242
      %p254 = scmp.eq.s32.totalorder %s80, 1
      %p255 = por %p253, %p254
      %p257 = scmp.ne.s32.totalorder %s242, %s256
      %p258 = scmp.eq.s32.totalorder %s80, 0
      %p259 = por %p257, %p258
      %s261 = sadd.s32 %s260, 1
      %p264 = scmp.eq.s32.totalorder %s74, 1
      %p265 = scmp.ne.s32.totalorder %s260, %s262
      %p266 = scmp.eq.s32.totalorder %s74, 0
      %p267 = por %p265, %p266
      %p268 = scmp.ne.s32.totalorder %s260, %s262
      %p269 = scmp.eq.s32.totalorder %s79, 1
      %p270 = por %p268, %p269
      %p271 = scmp.ne.s32.totalorder %s262, %s263
      %p272 = scmp.eq.s32.totalorder %s79, 0
      %p273 = por %p271, %p272
      %p274 = scmp.ne.s32.totalorder %s262, %s263
      %p275 = scmp.eq.s32.totalorder %s80, 1
      %p276 = por %p274, %p275
      %p278 = scmp.ne.s32.totalorder %s263, %s277
      %p279 = scmp.eq.s32.totalorder %s80, 0
      %p280 = por %p278, %p279
      %s282 = sadd.s32 %s281, 1
      %p285 = scmp.eq.s32.totalorder %s74, 1
      %p286 = scmp.ne.s32.totalorder %s281, %s283
      %p287 = scmp.eq.s32.totalorder %s74, 0
      %p288 = por %p286, %p287
      %p289 = scmp.ne.s32.totalorder %s281, %s283
      %p290 = scmp.eq.s32.totalorder %s79, 1
      %p291 = por %p289, %p290
      %p292 = scmp.ne.s32.totalorder %s283, %s284
      %p293 = scmp.eq.s32.totalorder %s79, 0
      %p294 = por %p292, %p293
      %p295 = scmp.ne.s32.totalorder %s283, %s284
      %p296 = scmp.eq.s32.totalorder %s80, 1
      %p297 = por %p295, %p296
      %p299 = scmp.ne.s32.totalorder %s284, %s298
      %p300 = scmp.eq.s32.totalorder %s80, 0
      %p301 = por %p299, %p300
      %s303 = sadd.s32 %s302, 1
      %p306 = scmp.eq.s32.totalorder %s74, 1
      %p307 = scmp.ne.s32.totalorder %s302, %s304
      %p308 = scmp.eq.s32.totalorder %s74, 0
      %p309 = por %p307, %p308
      %p310 = scmp.ne.s32.totalorder %s302, %s304
      %p311 = scmp.eq.s32.totalorder %s79, 1
      %p312 = por %p310, %p311
      %p313 = scmp.ne.s32.totalorder %s304, %s305
      %p314 = scmp.eq.s32.totalorder %s79, 0
      %p315 = por %p313, %p314
      %p316 = scmp.ne.s32.totalorder %s304, %s305
      %p317 = scmp.eq.s32.totalorder %s80, 1
      %p318 = por %p316, %p317
      %p320 = scmp.ne.s32.totalorder %s305, %s319
      %p321 = scmp.eq.s32.totalorder %s80, 0
      %p322 = por %p320, %p321
      %s324 = sadd.s32 %s323, 1
      %p327 = scmp.eq.s32.totalorder %s74, 1
      %p328 = scmp.ne.s32.totalorder %s323, %s325
      %p329 = scmp.eq.s32.totalorder %s74, 0
      %p330 = por %p328, %p329
      %p331 = scmp.ne.s32.totalorder %s323, %s325
      %p332 = scmp.eq.s32.totalorder %s79, 1
      %p333 = por %p331, %p332
      %p334 = scmp.ne.s32.totalorder %s325, %s326
      %p335 = scmp.eq.s32.totalorder %s79, 0
      %p336 = por %p334, %p335
      %p337 = scmp.ne.s32.totalorder %s325, %s326
      %p338 = scmp.eq.s32.totalorder %s80, 1
      %p339 = por %p337, %p338
      %p341 = scmp.ne.s32.totalorder %s326, %s340
      %p342 = scmp.eq.s32.totalorder %s80, 0
      %p343 = por %p341, %p342
      %s345 = sadd.s32 %s344, 1
      %p348 = scmp.eq.s32.totalorder %s74, 1
      %p349 = scmp.ne.s32.totalorder %s344, %s346
      %p350 = scmp.eq.s32.totalorder %s74, 0
      %p351 = por %p349, %p350
      %p352 = scmp.ne.s32.totalorder %s344, %s346
      %p353 = scmp.eq.s32.totalorder %s79, 1
      %p354 = por %p352, %p353
      %p355 = scmp.ne.s32.totalorder %s346, %s347
      %p356 = scmp.eq.s32.totalorder %s79, 0
      %p357 = por %p355, %p356
      %p358 = scmp.ne.s32.totalorder %s346, %s347
      %p359 = scmp.eq.s32.totalorder %s80, 1
      %p360 = por %p358, %p359
      %p362 = scmp.ne.s32.totalorder %s347, %s361
      %p363 = scmp.eq.s32.totalorder %s80, 0
      %p364 = por %p362, %p363
      %s366 = sadd.s32 %s365, 1
      %p369 = scmp.eq.s32.totalorder %s74, 1
      %p370 = scmp.ne.s32.totalorder %s365, %s367
      %p371 = scmp.eq.s32.totalorder %s74, 0
      %p372 = por %p370, %p371
      %p373 = scmp.ne.s32.totalorder %s365, %s367
      %p374 = scmp.eq.s32.totalorder %s79, 1
      %p375 = por %p373, %p374
      %p376 = scmp.ne.s32.totalorder %s367, %s368
      %p377 = scmp.eq.s32.totalorder %s79, 0
      %p378 = por %p376, %p377
      %p379 = scmp.ne.s32.totalorder %s367, %s368
      %p380 = scmp.eq.s32.totalorder %s80, 1
      %p381 = por %p379, %p380
      %p383 = scmp.ne.s32.totalorder %s368, %s382
      %p384 = scmp.eq.s32.totalorder %s80, 0
      %p385 = por %p383, %p384
      %s387 = sadd.s32 %s386, 1
      %p390 = scmp.eq.s32.totalorder %s74, 1
      %p391 = scmp.ne.s32.totalorder %s386, %s388
      %p392 = scmp.eq.s32.totalorder %s74, 0
      %p393 = por %p391, %p392
      %p394 = scmp.ne.s32.totalorder %s386, %s388
      %p395 = scmp.eq.s32.totalorder %s79, 1
      %p396 = por %p394, %p395
      %p397 = scmp.ne.s32.totalorder %s388, %s389
      %p398 = scmp.eq.s32.totalorder %s79, 0
      %p399 = por %p397, %p398
      %p400 = scmp.ne.s32.totalorder %s388, %s389
      %p401 = scmp.eq.s32.totalorder %s80, 1
      %p402 = por %p400, %p401
      %p404 = scmp.ne.s32.totalorder %s389, %s403
      %p405 = scmp.eq.s32.totalorder %s80, 0
      %p406 = por %p404, %p405
      %s408 = sadd.s32 %s407, 1
      %p411 = scmp.eq.s32.totalorder %s74, 1
      %p412 = scmp.ne.s32.totalorder %s407, %s409
      %p413 = scmp.eq.s32.totalorder %s74, 0
      %p414 = por %p412, %p413
      %p415 = scmp.ne.s32.totalorder %s407, %s409
      %p416 = scmp.eq.s32.totalorder %s79, 1
      %p417 = por %p415, %p416
      %p418 = scmp.ne.s32.totalorder %s409, %s410
      %p419 = scmp.eq.s32.totalorder %s79, 0
      %p420 = por %p418, %p419
      %p421 = scmp.ne.s32.totalorder %s409, %s410
      %p422 = scmp.eq.s32.totalorder %s80, 1
      %p423 = por %p421, %p422
      %p425 = scmp.ne.s32.totalorder %s410, %s424
      %p426 = scmp.eq.s32.totalorder %s80, 0
      %p427 = por %p425, %p426
      %s429 = sadd.s32 %s428, 1
      %p432 = scmp.eq.s32.totalorder %s74, 1
      %p433 = scmp.ne.s32.totalorder %s428, %s430
      %p434 = scmp.eq.s32.totalorder %s74, 0
      %p435 = por %p433, %p434
      %p436 = scmp.ne.s32.totalorder %s428, %s430
      %p437 = scmp.eq.s32.totalorder %s79, 1
      %p438 = por %p436, %p437
      %p439 = scmp.ne.s32.totalorder %s430, %s431
      %p440 = scmp.eq.s32.totalorder %s79, 0
      %p441 = por %p439, %p440
      %p442 = scmp.ne.s32.totalorder %s430, %s431
      %p443 = scmp.eq.s32.totalorder %s80, 1
      %p444 = por %p442, %p443
      %p446 = scmp.ne.s32.totalorder %s431, %s445
      %p447 = scmp.eq.s32.totalorder %s80, 0
      %p448 = por %p446, %p447
      %s450 = sadd.s32 %s449, 1
      %p453 = scmp.eq.s32.totalorder %s74, 1
      %p454 = scmp.ne.s32.totalorder %s449, %s451
      %p455 = scmp.eq.s32.totalorder %s74, 0
      %p456 = por %p454, %p455
      %p457 = scmp.ne.s32.totalorder %s449, %s451
      %p458 = scmp.eq.s32.totalorder %s79, 1
      %p459 = por %p457, %p458
      %p460 = scmp.ne.s32.totalorder %s451, %s452
      %p461 = scmp.eq.s32.totalorder %s79, 0
      %p462 = por %p460, %p461
      %p463 = scmp.ne.s32.totalorder %s451, %s452
      %p464 = scmp.eq.s32.totalorder %s80, 1
      %p465 = por %p463, %p464
      %p467 = scmp.ne.s32.totalorder %s452, %s466
      %p468 = scmp.eq.s32.totalorder %s80, 0
      %p469 = por %p467, %p468
      %s471 = sadd.s32 %s470, 1
      %p474 = scmp.eq.s32.totalorder %s74, 1
      %p475 = scmp.ne.s32.totalorder %s470, %s472
      %p476 = scmp.eq.s32.totalorder %s74, 0
      %p477 = por %p475, %p476
      %p478 = scmp.ne.s32.totalorder %s470, %s472
      %p479 = scmp.eq.s32.totalorder %s79, 1
      %p480 = por %p478, %p479
      %p481 = scmp.ne.s32.totalorder %s472, %s473
      %p482 = scmp.eq.s32.totalorder %s79, 0
      %p483 = por %p481, %p482
      %p484 = scmp.ne.s32.totalorder %s472, %s473
      %p485 = scmp.eq.s32.totalorder %s80, 1
      %p486 = por %p484, %p485
      %p488 = scmp.ne.s32.totalorder %s473, %s487
      %p489 = scmp.eq.s32.totalorder %s80, 0
      %p490 = por %p488, %p489
      %s492 = sadd.s32 %s491, 1
      %p495 = scmp.eq.s32.totalorder %s74, 1
      %p496 = scmp.ne.s32.totalorder %s491, %s493
      %p497 = scmp.eq.s32.totalorder %s74, 0
      %p498 = por %p496, %p497
      %p499 = scmp.ne.s32.totalorder %s491, %s493
      %p500 = scmp.eq.s32.totalorder %s79, 1
      %p501 = por %p499, %p500
      %p502 = scmp.ne.s32.totalorder %s493, %s494
      %p503 = scmp.eq.s32.totalorder %s79, 0
      %p504 = por %p502, %p503
      %p505 = scmp.ne.s32.totalorder %s493, %s494
      %p506 = scmp.eq.s32.totalorder %s80, 1
      %p507 = por %p505, %p506
      %p509 = scmp.ne.s32.totalorder %s494, %s508
      %p510 = scmp.eq.s32.totalorder %s80, 0
      %p511 = por %p509, %p510
      %s513 = sadd.s32 %s512, 1
      %p516 = scmp.eq.s32.totalorder %s74, 1
      %p517 = scmp.ne.s32.totalorder %s512, %s514
      %p518 = scmp.eq.s32.totalorder %s74, 0
      %p519 = por %p517, %p518
      %p520 = scmp.ne.s32.totalorder %s512, %s514
      %p521 = scmp.eq.s32.totalorder %s79, 1
      %p522 = por %p520, %p521
      %p523 = scmp.ne.s32.totalorder %s514, %s515
      %p524 = scmp.eq.s32.totalorder %s79, 0
      %p525 = por %p523, %p524
      %p526 = scmp.ne.s32.totalorder %s514, %s515
      %p527 = scmp.eq.s32.totalorder %s80, 1
      %p528 = por %p526, %p527
      %p530 = scmp.ne.s32.totalorder %s515, %s529
      %p531 = scmp.eq.s32.totalorder %s80, 0
      %p532 = por %p530, %p531
      %s534 = sadd.s32 %s533, 1
      %p537 = scmp.eq.s32.totalorder %s74, 1
      %p538 = scmp.ne.s32.totalorder %s533, %s535
      %p539 = scmp.eq.s32.totalorder %s74, 0
      %p540 = por %p538, %p539
      %p541 = scmp.ne.s32.totalorder %s533, %s535
      %p542 = scmp.eq.s32.totalorder %s79, 1
      %p543 = por %p541, %p542
      %p544 = scmp.ne.s32.totalorder %s535, %s536
      %p545 = scmp.eq.s32.totalorder %s79, 0
      %p546 = por %p544, %p545
      %p547 = scmp.ne.s32.totalorder %s535, %s536
      %p548 = scmp.eq.s32.totalorder %s80, 1
      %p549 = por %p547, %p548
      %p551 = scmp.ne.s32.totalorder %s536, %s550
      %p552 = scmp.eq.s32.totalorder %s80, 0
      %p553 = por %p551, %p552
      %s555 = sadd.s32 %s554, 1
      %p558 = scmp.eq.s32.totalorder %s74, 1
      %p559 = scmp.ne.s32.totalorder %s554, %s556
      %p560 = scmp.eq.s32.totalorder %s74, 0
      %p561 = por %p559, %p560
      %p562 = scmp.ne.s32.totalorder %s554, %s556
      %p563 = scmp.eq.s32.totalorder %s79, 1
      %p564 = por %p562, %p563
      %p565 = scmp.ne.s32.totalorder %s556, %s557
      %p566 = scmp.eq.s32.totalorder %s79, 0
      %p567 = por %p565, %p566
      %p568 = scmp.ne.s32.totalorder %s556, %s557
      %p569 = scmp.eq.s32.totalorder %s80, 1
      %p570 = por %p568, %p569
      %p572 = scmp.ne.s32.totalorder %s557, %s571
      %p573 = scmp.eq.s32.totalorder %s80, 0
      %p574 = por %p572, %p573
      %s576 = sadd.s32 %s575, 1
      %p579 = scmp.eq.s32.totalorder %s74, 1
      %p580 = scmp.ne.s32.totalorder %s575, %s577
      %p581 = scmp.eq.s32.totalorder %s74, 0
      %p582 = por %p580, %p581
      %p583 = scmp.ne.s32.totalorder %s575, %s577
      %p584 = scmp.eq.s32.totalorder %s79, 1
      %p585 = por %p583, %p584
      %p586 = scmp.ne.s32.totalorder %s577, %s578
      %p587 = scmp.eq.s32.totalorder %s79, 0
      %p588 = por %p586, %p587
      %p589 = scmp.ne.s32.totalorder %s577, %s578
      %p590 = scmp.eq.s32.totalorder %s80, 1
      %p591 = por %p589, %p590
      %p593 = scmp.ne.s32.totalorder %s578, %s592
      %p594 = scmp.eq.s32.totalorder %s80, 0
      %p595 = por %p593, %p594
      %s597 = sadd.s32 %s596, 1
      %p600 = scmp.eq.s32.totalorder %s74, 1
      %p601 = scmp.ne.s32.totalorder %s596, %s598
      %p602 = scmp.eq.s32.totalorder %s74, 0
      %p603 = por %p601, %p602
      %p604 = scmp.ne.s32.totalorder %s596, %s598
      %p605 = scmp.eq.s32.totalorder %s79, 1
      %p606 = por %p604, %p605
      %p607 = scmp.ne.s32.totalorder %s598, %s599
      %p608 = scmp.eq.s32.totalorder %s79, 0
      %p609 = por %p607, %p608
      %p610 = scmp.ne.s32.totalorder %s598, %s599
      %p611 = scmp.eq.s32.totalorder %s80, 1
      %p612 = por %p610, %p611
      %p614 = scmp.ne.s32.totalorder %s599, %s613
      %p615 = scmp.eq.s32.totalorder %s80, 0
      %p616 = por %p614, %p615
      %s618 = sadd.s32 %s617, 1
      %p621 = scmp.eq.s32.totalorder %s74, 1
      %p622 = scmp.ne.s32.totalorder %s617, %s619
      %p623 = scmp.eq.s32.totalorder %s74, 0
      %p624 = por %p622, %p623
      %p625 = scmp.ne.s32.totalorder %s617, %s619
      %p626 = scmp.eq.s32.totalorder %s79, 1
      %p627 = por %p625, %p626
      %p628 = scmp.ne.s32.totalorder %s619, %s620
      %p629 = scmp.eq.s32.totalorder %s79, 0
      %p630 = por %p628, %p629
      %p631 = scmp.ne.s32.totalorder %s619, %s620
      %p632 = scmp.eq.s32.totalorder %s80, 1
      %p633 = por %p631, %p632
      %p635 = scmp.ne.s32.totalorder %s620, %s634
      %p636 = scmp.eq.s32.totalorder %s80, 0
      %p637 = por %p635, %p636
      %s639 = sadd.s32 %s638, 1
      %p642 = scmp.eq.s32.totalorder %s74, 1
      %p643 = scmp.ne.s32.totalorder %s638, %s640
      %p644 = scmp.eq.s32.totalorder %s74, 0
      %p645 = por %p643, %p644
      %p646 = scmp.ne.s32.totalorder %s638, %s640
      %p647 = scmp.eq.s32.totalorder %s79, 1
      %p648 = por %p646, %p647
      %p649 = scmp.ne.s32.totalorder %s640, %s641
      %p650 = scmp.eq.s32.totalorder %s79, 0
      %p651 = por %p649, %p650
      %p652 = scmp.ne.s32.totalorder %s640, %s641
      %p653 = scmp.eq.s32.totalorder %s80, 1
      %p654 = por %p652, %p653
      %p656 = scmp.ne.s32.totalorder %s641, %s655
      %p657 = scmp.eq.s32.totalorder %s80, 0
      %p658 = por %p656, %p657
      %s660 = sadd.s32 %s659, 1
      %p663 = scmp.eq.s32.totalorder %s74, 1
      %p664 = scmp.ne.s32.totalorder %s659, %s661
      %p665 = scmp.eq.s32.totalorder %s74, 0
      %p666 = por %p664, %p665
      %p667 = scmp.ne.s32.totalorder %s659, %s661
      %p668 = scmp.eq.s32.totalorder %s79, 1
      %p669 = por %p667, %p668
      %p670 = scmp.ne.s32.totalorder %s661, %s662
      %p671 = scmp.eq.s32.totalorder %s79, 0
      %p672 = por %p670, %p671
      %p673 = scmp.ne.s32.totalorder %s661, %s662
      %p674 = scmp.eq.s32.totalorder %s80, 1
      %p675 = por %p673, %p674
      %p677 = scmp.ne.s32.totalorder %s662, %s676
      %p678 = scmp.eq.s32.totalorder %s80, 0
      %p679 = por %p677, %p678
      %s680 = ssub.s32 %s74, %s81
      %p681 = scmp.eq.s32.totalorder %s680, 0
      %s683 = sadd.s32 %s682, 1
      %s684 = scalar_select %p681, %s682, %s683
      %p687 = pneg %p681
      %p688 = scmp.eq.s32.totalorder %s74, 1
      %p689 = por %p687, %p688
      %p690 = scmp.ne.s32.totalorder %s682, %s685
      %p691 = scmp.eq.s32.totalorder %s74, 0
      %p692 = por %p690, %p691
      %p693 = scmp.ne.s32.totalorder %s682, %s685
      %p694 = scmp.eq.s32.totalorder %s79, 1
      %p695 = por %p693, %p694
      %p696 = scmp.ne.s32.totalorder %s685, %s686
      %p697 = scmp.eq.s32.totalorder %s79, 0
      %p698 = por %p696, %p697
      %p699 = scmp.ne.s32.totalorder %s685, %s686
      %p700 = scmp.eq.s32.totalorder %s80, 1
      %p701 = por %p699, %p700
      %p703 = scmp.ne.s32.totalorder %s686, %s702
      %p704 = scmp.eq.s32.totalorder %s80, 0
      %p705 = por %p703, %p704
      %s706 = ssub.s32 %s74, %s81
      %p707 = scmp.eq.s32.totalorder %s706, 0
      %s709 = sadd.s32 %s708, 1
      %s710 = scalar_select %p707, %s708, %s709
      %p713 = pneg %p707
      %p714 = scmp.eq.s32.totalorder %s74, 1
      %p715 = por %p713, %p714
      %p716 = scmp.ne.s32.totalorder %s708, %s711
      %p717 = scmp.eq.s32.totalorder %s74, 0
      %p718 = por %p716, %p717
      %p719 = scmp.ne.s32.totalorder %s708, %s711
      %p720 = scmp.eq.s32.totalorder %s79, 1
      %p721 = por %p719, %p720
      %p722 = scmp.ne.s32.totalorder %s711, %s712
      %p723 = scmp.eq.s32.totalorder %s79, 0
      %p724 = por %p722, %p723
      %p725 = scmp.ne.s32.totalorder %s711, %s712
      %p726 = scmp.eq.s32.totalorder %s80, 1
      %p727 = por %p725, %p726
      %p729 = scmp.ne.s32.totalorder %s712, %s728
      %p730 = scmp.eq.s32.totalorder %s80, 0
      %p731 = por %p729, %p730
      %p732 = scmp.le.s32.totalorder 1, %s74
      %p733 = scmp.lt.s32.totalorder %s74, 3
      %p734 = pnand %p732, %p733
      %p735 = pneg %p734
      // Predicated region
      $region9: #{attentional_gnn_forward.1} parent=5 // pred_check
        _
      $region10: #{attentional_gnn_forward.1} parent=5 // pred_check_branch
        %737 = sbr.rel (%p734) target = $region12
      $region11: #{attentional_gnn_forward.1} parent=5 // pred_region
        %s738 = ssub.s32 %s74, 1
        // Predicated region
        $region13: #{attentional_gnn_forward.1} parent=11 // pred_check
          %p739 = pneg %p147
        $region14: #{attentional_gnn_forward.1} parent=11 // pred_check_branch
          %741 = sbr.rel (%p739) target = $region16
        $region15: #{attentional_gnn_forward.1} parent=11 // pred_region
          %743 = vsyncadd [#allocation3], 0
          %s744 = sshll.u32 %s5, 4
          %s745 = int_to_ptr.hbm [resolvable:$true] %s744
          %s746 = sshll.u32 [#allocation2], 4
          %s747 = int_to_ptr.vmem [resolvable:$true] %s746
          %752 = dma.hbm_to_vmem [thread:$0]  %s745, 512, %s747, [#allocation3], 64, 64, 4
        $region16: #{attentional_gnn_forward.1} parent=11 // pred_fallthru
          _
        // Predicated region
        $region17: #{attentional_gnn_forward.1} parent=11 // pred_check
          %p753 = pneg %p168
        $region18: #{attentional_gnn_forward.1} parent=11 // pred_check_branch
          %755 = sbr.rel (%p753) target = $region20
        $region19: #{attentional_gnn_forward.1} parent=11 // pred_region
          %757 = vsyncadd [#allocation5], 0
          %s759 = sshll.u32 %s7, 4
          %s760 = int_to_ptr.hbm [resolvable:$true] %s759
          %s761 = sshll.u32 [#allocation4], 4
          %s762 = int_to_ptr.vmem [resolvable:$true] %s761
          %764 = dma.hbm_to_vmem [thread:$0]  %s760, 32, %s762, [#allocation5]
        $region20: #{attentional_gnn_forward.1} parent=11 // pred_fallthru
          _
        // Predicated region
        $region21: #{attentional_gnn_forward.1} parent=11 // pred_check
          %p765 = pneg %p189
        $region22: #{attentional_gnn_forward.1} parent=11 // pred_check_branch
          %767 = sbr.rel (%p765) target = $region24
        $region23: #{attentional_gnn_forward.1} parent=11 // pred_region
          _
        $region24: #{attentional_gnn_forward.1} parent=11 // pred_fallthru
          _
        // Predicated region
        $region25: #{attentional_gnn_forward.1} parent=11 // pred_check
          %p768 = pneg %p210
        $region26: #{attentional_gnn_forward.1} parent=11 // pred_check_branch
          %770 = sbr.rel (%p768) target = $region28
        $region27: #{attentional_gnn_forward.1} parent=11 // pred_region
          %772 = vsyncadd [#allocation5], 0
          %s773 = sshll.u32 %s11, 4
          %s774 = int_to_ptr.hbm [resolvable:$true] %s773
          %s775 = sshll.u32 [#allocation6], 4
          %s776 = int_to_ptr.vmem [resolvable:$true] %s775
          %781 = dma.hbm_to_vmem [thread:$0]  %s774, 512, %s776, [#allocation5], 64, 64, 4
        $region28: #{attentional_gnn_forward.1} parent=11 // pred_fallthru
          _
        // Predicated region
        $region29: #{attentional_gnn_forward.1} parent=11 // pred_check
          %p782 = pneg %p231
        $region30: #{attentional_gnn_forward.1} parent=11 // pred_check_branch
          %784 = sbr.rel (%p782) target = $region32
        $region31: #{attentional_gnn_forward.1} parent=11 // pred_region
          %786 = vsyncadd [#allocation8], 0
          %s788 = sshll.u32 %s13, 4
          %s789 = int_to_ptr.hbm [resolvable:$true] %s788
          %s790 = sshll.u32 [#allocation7], 4
          %s791 = int_to_ptr.vmem [resolvable:$true] %s790
          %793 = dma.hbm_to_vmem [thread:$0]  %s789, 16, %s791, [#allocation8]
        $region32: #{attentional_gnn_forward.1} parent=11 // pred_fallthru
          _
        // Predicated region
        $region33: #{attentional_gnn_forward.1} parent=11 // pred_check
          %p794 = pneg %p252
        $region34: #{attentional_gnn_forward.1} parent=11 // pred_check_branch
          %796 = sbr.rel (%p794) target = $region36
        $region35: #{attentional_gnn_forward.1} parent=11 // pred_region
          %798 = vsyncadd [#allocation8], 0
          %s799 = sshll.u32 %s15, 4
          %s800 = int_to_ptr.hbm [resolvable:$true] %s799
          %s801 = sshll.u32 [#allocation9], 4
          %s802 = int_to_ptr.vmem [resolvable:$true] %s801
          %807 = dma.hbm_to_vmem [thread:$0]  %s800, 512, %s802, [#allocation8], 64, 64, 4
        $region36: #{attentional_gnn_forward.1} parent=11 // pred_fallthru
          _
        // Predicated region
        $region37: #{attentional_gnn_forward.1} parent=11 // pred_check
          %p808 = pneg %p273
        $region38: #{attentional_gnn_forward.1} parent=11 // pred_check_branch
          %810 = sbr.rel (%p808) target = $region40
        $region39: #{attentional_gnn_forward.1} parent=11 // pred_region
          %812 = vsyncadd [#allocation11], 0
          %s814 = sshll.u32 %s17, 4
          %s815 = int_to_ptr.hbm [resolvable:$true] %s814
          %s816 = sshll.u32 [#allocation10], 4
          %s817 = int_to_ptr.vmem [resolvable:$true] %s816
          %819 = dma.hbm_to_vmem [thread:$0]  %s815, 16, %s817, [#allocation11]
        $region40: #{attentional_gnn_forward.1} parent=11 // pred_fallthru
          _
        // Predicated region
        $region41: #{attentional_gnn_forward.1} parent=11 // pred_check
          %p820 = pneg %p294
        $region42: #{attentional_gnn_forward.1} parent=11 // pred_check_branch
          %822 = sbr.rel (%p820) target = $region44
        $region43: #{attentional_gnn_forward.1} parent=11 // pred_region
          _
        $region44: #{attentional_gnn_forward.1} parent=11 // pred_fallthru
          _
        // Predicated region
        $region45: #{attentional_gnn_forward.1} parent=11 // pred_check
          %p823 = pneg %p315
        $region46: #{attentional_gnn_forward.1} parent=11 // pred_check_branch
          %825 = sbr.rel (%p823) target = $region48
        $region47: #{attentional_gnn_forward.1} parent=11 // pred_region
          %827 = vsyncadd [#allocation11], 0
          %s828 = sshll.u32 %s21, 4
          %s829 = int_to_ptr.hbm [resolvable:$true] %s828
          %s830 = sshll.u32 [#allocation12], 4
          %s831 = int_to_ptr.vmem [resolvable:$true] %s830
          %836 = dma.hbm_to_vmem [thread:$0]  %s829, 128, %s831, [#allocation11], 32, 32, 2
        $region48: #{attentional_gnn_forward.1} parent=11 // pred_fallthru
          _
        // Predicated region
        $region49: #{attentional_gnn_forward.1} parent=11 // pred_check
          %p837 = pneg %p336
        $region50: #{attentional_gnn_forward.1} parent=11 // pred_check_branch
          %839 = sbr.rel (%p837) target = $region52
        $region51: #{attentional_gnn_forward.1} parent=11 // pred_region
          _
        $region52: #{attentional_gnn_forward.1} parent=11 // pred_fallthru
          _
        // Predicated region
        $region53: #{attentional_gnn_forward.1} parent=11 // pred_check
          %p840 = pneg %p357
        $region54: #{attentional_gnn_forward.1} parent=11 // pred_check_branch
          %842 = sbr.rel (%p840) target = $region56
        $region55: #{attentional_gnn_forward.1} parent=11 // pred_region
          _
        $region56: #{attentional_gnn_forward.1} parent=11 // pred_fallthru
          _
        // Predicated region
        $region57: #{attentional_gnn_forward.1} parent=11 // pred_check
          %p843 = pneg %p378
        $region58: #{attentional_gnn_forward.1} parent=11 // pred_check_branch
          %845 = sbr.rel (%p843) target = $region60
        $region59: #{attentional_gnn_forward.1} parent=11 // pred_region
          _
        $region60: #{attentional_gnn_forward.1} parent=11 // pred_fallthru
          _
        // Predicated region
        $region61: #{attentional_gnn_forward.1} parent=11 // pred_check
          %p846 = pneg %p399
        $region62: #{attentional_gnn_forward.1} parent=11 // pred_check_branch
          %848 = sbr.rel (%p846) target = $region64
        $region63: #{attentional_gnn_forward.1} parent=11 // pred_region
          %850 = vsyncadd [#allocation14], 0
          %s851 = sshll.u32 %s29, 4
          %s852 = int_to_ptr.hbm [resolvable:$true] %s851
          %s853 = sshll.u32 [#allocation13], 4
          %s854 = int_to_ptr.vmem [resolvable:$true] %s853
          %859 = dma.hbm_to_vmem [thread:$0]  %s852, 2048, %s854, [#allocation14], 64, 64, 4
        $region64: #{attentional_gnn_forward.1} parent=11 // pred_fallthru
          _
        // Predicated region
        $region65: #{attentional_gnn_forward.1} parent=11 // pred_check
          %p860 = pneg %p420
        $region66: #{attentional_gnn_forward.1} parent=11 // pred_check_branch
          %862 = sbr.rel (%p860) target = $region68
        $region67: #{attentional_gnn_forward.1} parent=11 // pred_region
          %864 = vsyncadd [#allocation14], 0
          %s865 = sshll.u32 %s31, 4
          %s866 = int_to_ptr.hbm [resolvable:$true] %s865
          %s867 = sshll.u32 [#allocation15], 4
          %s868 = int_to_ptr.vmem [resolvable:$true] %s867
          %873 = dma.hbm_to_vmem [thread:$0]  %s866, 64, %s868, [#allocation14], 16, 16, 1
        $region68: #{attentional_gnn_forward.1} parent=11 // pred_fallthru
          _
        // Predicated region
        $region69: #{attentional_gnn_forward.1} parent=11 // pred_check
          %p874 = pneg %p441
        $region70: #{attentional_gnn_forward.1} parent=11 // pred_check_branch
          %876 = sbr.rel (%p874) target = $region72
        $region71: #{attentional_gnn_forward.1} parent=11 // pred_region
          _
        $region72: #{attentional_gnn_forward.1} parent=11 // pred_fallthru
          _
        // Predicated region
        $region73: #{attentional_gnn_forward.1} parent=11 // pred_check
          %p877 = pneg %p462
        $region74: #{attentional_gnn_forward.1} parent=11 // pred_check_branch
          %879 = sbr.rel (%p877) target = $region76
        $region75: #{attentional_gnn_forward.1} parent=11 // pred_region
          %881 = vsyncadd [#allocation17], 0
          %s882 = sshll.u32 %s35, 4
          %s883 = int_to_ptr.hbm [resolvable:$true] %s882
          %s884 = sshll.u32 [#allocation16], 4
          %s885 = int_to_ptr.vmem [resolvable:$true] %s884
          %890 = dma.hbm_to_vmem [thread:$0]  %s883, 64, %s885, [#allocation17], 16, 16, 1
        $region76: #{attentional_gnn_forward.1} parent=11 // pred_fallthru
          _
        // Predicated region
        $region77: #{attentional_gnn_forward.1} parent=11 // pred_check
          %p891 = pneg %p483
        $region78: #{attentional_gnn_forward.1} parent=11 // pred_check_branch
          %893 = sbr.rel (%p891) target = $region80
        $region79: #{attentional_gnn_forward.1} parent=11 // pred_region
          %895 = vsyncadd [#allocation17], 0
          %s896 = sshll.u32 %s37, 4
          %s897 = int_to_ptr.hbm [resolvable:$true] %s896
          %s898 = sshll.u32 [#allocation18], 4
          %s899 = int_to_ptr.vmem [resolvable:$true] %s898
          %904 = dma.hbm_to_vmem [thread:$0]  %s897, 512, %s899, [#allocation17], 64, 64, 4
        $region80: #{attentional_gnn_forward.1} parent=11 // pred_fallthru
          _
        // Predicated region
        $region81: #{attentional_gnn_forward.1} parent=11 // pred_check
          %p905 = pneg %p504
        $region82: #{attentional_gnn_forward.1} parent=11 // pred_check_branch
          %907 = sbr.rel (%p905) target = $region84
        $region83: #{attentional_gnn_forward.1} parent=11 // pred_region
          _
        $region84: #{attentional_gnn_forward.1} parent=11 // pred_fallthru
          _
        // Predicated region
        $region85: #{attentional_gnn_forward.1} parent=11 // pred_check
          %p908 = pneg %p525
        $region86: #{attentional_gnn_forward.1} parent=11 // pred_check_branch
          %910 = sbr.rel (%p908) target = $region88
        $region87: #{attentional_gnn_forward.1} parent=11 // pred_region
          %912 = vsyncadd [#allocation20], 0
          %s913 = sshll.u32 %s41, 4
          %s914 = int_to_ptr.hbm [resolvable:$true] %s913
          %s915 = sshll.u32 [#allocation19], 4
          %s916 = int_to_ptr.vmem [resolvable:$true] %s915
          %921 = dma.hbm_to_vmem [thread:$0]  %s914, 512, %s916, [#allocation20], 64, 64, 4
        $region88: #{attentional_gnn_forward.1} parent=11 // pred_fallthru
          _
        // Predicated region
        $region89: #{attentional_gnn_forward.1} parent=11 // pred_check
          %p922 = pneg %p546
        $region90: #{attentional_gnn_forward.1} parent=11 // pred_check_branch
          %924 = sbr.rel (%p922) target = $region92
        $region91: #{attentional_gnn_forward.1} parent=11 // pred_region
          _
        $region92: #{attentional_gnn_forward.1} parent=11 // pred_fallthru
          _
        // Predicated region
        $region93: #{attentional_gnn_forward.1} parent=11 // pred_check
          %p925 = pneg %p567
        $region94: #{attentional_gnn_forward.1} parent=11 // pred_check_branch
          %927 = sbr.rel (%p925) target = $region96
        $region95: #{attentional_gnn_forward.1} parent=11 // pred_region
          %929 = vsyncadd [#allocation20], 0
          %s930 = sshll.u32 %s45, 4
          %s931 = int_to_ptr.hbm [resolvable:$true] %s930
          %s932 = sshll.u32 [#allocation21], 4
          %s933 = int_to_ptr.vmem [resolvable:$true] %s932
          %938 = dma.hbm_to_vmem [thread:$0]  %s931, 512, %s933, [#allocation20], 64, 64, 4
        $region96: #{attentional_gnn_forward.1} parent=11 // pred_fallthru
          _
        // Predicated region
        $region97: #{attentional_gnn_forward.1} parent=11 // pred_check
          %p939 = pneg %p588
        $region98: #{attentional_gnn_forward.1} parent=11 // pred_check_branch
          %941 = sbr.rel (%p939) target = $region100
        $region99: #{attentional_gnn_forward.1} parent=11 // pred_region
          _
        $region100: #{attentional_gnn_forward.1} parent=11 // pred_fallthru
          _
        // Predicated region
        $region101: #{attentional_gnn_forward.1} parent=11 // pred_check
          %p942 = pneg %p609
        $region102: #{attentional_gnn_forward.1} parent=11 // pred_check_branch
          %944 = sbr.rel (%p942) target = $region104
        $region103: #{attentional_gnn_forward.1} parent=11 // pred_region
          %946 = vsyncadd [#allocation23], 0
          %s947 = sshll.u32 %s49, 4
          %s948 = int_to_ptr.hbm [resolvable:$true] %s947
          %s949 = sshll.u32 [#allocation22], 4
          %s950 = int_to_ptr.vmem [resolvable:$true] %s949
          %955 = dma.hbm_to_vmem [thread:$0]  %s948, 512, %s950, [#allocation23], 64, 64, 4
        $region104: #{attentional_gnn_forward.1} parent=11 // pred_fallthru
          _
        // Predicated region
        $region105: #{attentional_gnn_forward.1} parent=11 // pred_check
          %p956 = pneg %p630
        $region106: #{attentional_gnn_forward.1} parent=11 // pred_check_branch
          %958 = sbr.rel (%p956) target = $region108
        $region107: #{attentional_gnn_forward.1} parent=11 // pred_region
          _
        $region108: #{attentional_gnn_forward.1} parent=11 // pred_fallthru
          _
        // Predicated region
        $region109: #{attentional_gnn_forward.1} parent=11 // pred_check
          %p959 = pneg %p651
        $region110: #{attentional_gnn_forward.1} parent=11 // pred_check_branch
          %961 = sbr.rel (%p959) target = $region112
        $region111: #{attentional_gnn_forward.1} parent=11 // pred_region
          _
        $region112: #{attentional_gnn_forward.1} parent=11 // pred_fallthru
          _
        // Predicated region
        $region113: #{attentional_gnn_forward.1} parent=11 // pred_check
          %p962 = pneg %p672
        $region114: #{attentional_gnn_forward.1} parent=11 // pred_check_branch
          %964 = sbr.rel (%p962) target = $region116
        $region115: #{attentional_gnn_forward.1} parent=11 // pred_region
          _
        $region116: #{attentional_gnn_forward.1} parent=11 // pred_fallthru
          _
      $region12: #{attentional_gnn_forward.1} parent=5 // pred_fallthru
        _
      %p965 = scmp.lt.s32.totalorder %s74, 2
      // Predicated region
      $region117: #{attentional_gnn_forward.1} parent=5 // pred_check
        %p966 = pneg %p965
      $region118: #{attentional_gnn_forward.1} parent=5 // pred_check_branch
        %968 = sbr.rel (%p966) target = $region120
      $region119: #{attentional_gnn_forward.1} parent=5 // pred_region
        // Predicated region
        $region121: #{attentional_gnn_forward.1} parent=119 // pred_check
          %p969 = pneg %p94
        $region122: #{attentional_gnn_forward.1} parent=119 // pred_check_branch
          %971 = sbr.rel (%p969) target = $region124
        $region123: #{attentional_gnn_forward.1} parent=119 // pred_region
          %p972 = scmp.lt.s32.totalorder %s74, 1
          %s973 = scalar_select %p972, %s74, 1
          %s974 = smul.addr %s973, 8
          %s975 = smul.addr %s974, 8
          %s976 = scalar_lea.vmem %s1, %s975
        $region124: #{attentional_gnn_forward.1} parent=119 // pred_fallthru
          _
        // Predicated region
        $region125: #{attentional_gnn_forward.1} parent=119 // pred_check
          %p977 = pneg %p120
        $region126: #{attentional_gnn_forward.1} parent=119 // pred_check_branch
          %979 = sbr.rel (%p977) target = $region128
        $region127: #{attentional_gnn_forward.1} parent=119 // pred_region
          %p980 = scmp.lt.s32.totalorder %s74, 1
          %s981 = scalar_select %p980, %s74, 1
          %s982 = smul.addr %s981, 2
          %s983 = smul.addr %s982, 8
          %s984 = scalar_lea.vmem %s3, %s983
        $region128: #{attentional_gnn_forward.1} parent=119 // pred_fallthru
          _
      $region120: #{attentional_gnn_forward.1} parent=5 // pred_fallthru
        _
      %p985 = scmp.le.s32.totalorder 1, %s74
      %p986 = scmp.lt.s32.totalorder %s74, 3
      %p987 = pnand %p985, %p986
      %p988 = pneg %p987
      // Predicated region
      $region129: #{attentional_gnn_forward.1} parent=5 // pred_check
        _
      $region130: #{attentional_gnn_forward.1} parent=5 // pred_check_branch
        %990 = sbr.rel (%p987) target = $region132
      $region131: #{attentional_gnn_forward.1} parent=5 // pred_region
        %s991 = ssub.s32 %s74, 1
        // Predicated region
        $region133: #{attentional_gnn_forward.1} parent=131 // pred_check
          %p992 = pneg %p147
        $region134: #{attentional_gnn_forward.1} parent=131 // pred_check_branch
          %994 = sbr.rel (%p992) target = $region136
        $region135: #{attentional_gnn_forward.1} parent=131 // pred_region
          %996 = dma.done [#allocation3], 512
        $region136: #{attentional_gnn_forward.1} parent=131 // pred_fallthru
          _
        // Predicated region
        $region137: #{attentional_gnn_forward.1} parent=131 // pred_check
          %p997 = pneg %p168
        $region138: #{attentional_gnn_forward.1} parent=131 // pred_check_branch
          %999 = sbr.rel (%p997) target = $region140
        $region139: #{attentional_gnn_forward.1} parent=131 // pred_region
          %1001 = dma.done [#allocation5], 32
        $region140: #{attentional_gnn_forward.1} parent=131 // pred_fallthru
          _
        // Predicated region
        $region141: #{attentional_gnn_forward.1} parent=131 // pred_check
          %p1002 = pneg %p210
        $region142: #{attentional_gnn_forward.1} parent=131 // pred_check_branch
          %1004 = sbr.rel (%p1002) target = $region144
        $region143: #{attentional_gnn_forward.1} parent=131 // pred_region
          %1006 = dma.done [#allocation5], 512
        $region144: #{attentional_gnn_forward.1} parent=131 // pred_fallthru
          _
        // Predicated region
        $region145: #{attentional_gnn_forward.1} parent=131 // pred_check
          %p1007 = pneg %p231
        $region146: #{attentional_gnn_forward.1} parent=131 // pred_check_branch
          %1009 = sbr.rel (%p1007) target = $region148
        $region147: #{attentional_gnn_forward.1} parent=131 // pred_region
          %1011 = dma.done [#allocation8], 16
        $region148: #{attentional_gnn_forward.1} parent=131 // pred_fallthru
          _
        // Predicated region
        $region149: #{attentional_gnn_forward.1} parent=131 // pred_check
          %p1012 = pneg %p252
        $region150: #{attentional_gnn_forward.1} parent=131 // pred_check_branch
          %1014 = sbr.rel (%p1012) target = $region152
        $region151: #{attentional_gnn_forward.1} parent=131 // pred_region
          %1016 = dma.done [#allocation8], 512
        $region152: #{attentional_gnn_forward.1} parent=131 // pred_fallthru
          _
        // Predicated region
        $region153: #{attentional_gnn_forward.1} parent=131 // pred_check
          %p1017 = pneg %p273
        $region154: #{attentional_gnn_forward.1} parent=131 // pred_check_branch
          %1019 = sbr.rel (%p1017) target = $region156
        $region155: #{attentional_gnn_forward.1} parent=131 // pred_region
          %1021 = dma.done [#allocation11], 16
        $region156: #{attentional_gnn_forward.1} parent=131 // pred_fallthru
          _
        // Predicated region
        $region157: #{attentional_gnn_forward.1} parent=131 // pred_check
          %p1022 = pneg %p315
        $region158: #{attentional_gnn_forward.1} parent=131 // pred_check_branch
          %1024 = sbr.rel (%p1022) target = $region160
        $region159: #{attentional_gnn_forward.1} parent=131 // pred_region
          %1026 = dma.done [#allocation11], 128
        $region160: #{attentional_gnn_forward.1} parent=131 // pred_fallthru
          _
        // Predicated region
        $region161: #{attentional_gnn_forward.1} parent=131 // pred_check
          %p1027 = pneg %p399
        $region162: #{attentional_gnn_forward.1} parent=131 // pred_check_branch
          %1029 = sbr.rel (%p1027) target = $region164
        $region163: #{attentional_gnn_forward.1} parent=131 // pred_region
          %1031 = dma.done [#allocation14], 2048
        $region164: #{attentional_gnn_forward.1} parent=131 // pred_fallthru
          _
        // Predicated region
        $region165: #{attentional_gnn_forward.1} parent=131 // pred_check
          %p1032 = pneg %p420
        $region166: #{attentional_gnn_forward.1} parent=131 // pred_check_branch
          %1034 = sbr.rel (%p1032) target = $region168
        $region167: #{attentional_gnn_forward.1} parent=131 // pred_region
          %1036 = dma.done [#allocation14], 64
        $region168: #{attentional_gnn_forward.1} parent=131 // pred_fallthru
          _
        // Predicated region
        $region169: #{attentional_gnn_forward.1} parent=131 // pred_check
          %p1037 = pneg %p462
        $region170: #{attentional_gnn_forward.1} parent=131 // pred_check_branch
          %1039 = sbr.rel (%p1037) target = $region172
        $region171: #{attentional_gnn_forward.1} parent=131 // pred_region
          %1041 = dma.done [#allocation17], 64
        $region172: #{attentional_gnn_forward.1} parent=131 // pred_fallthru
          _
        // Predicated region
        $region173: #{attentional_gnn_forward.1} parent=131 // pred_check
          %p1042 = pneg %p483
        $region174: #{attentional_gnn_forward.1} parent=131 // pred_check_branch
          %1044 = sbr.rel (%p1042) target = $region176
        $region175: #{attentional_gnn_forward.1} parent=131 // pred_region
          %1046 = dma.done [#allocation17], 512
        $region176: #{attentional_gnn_forward.1} parent=131 // pred_fallthru
          _
        // Predicated region
        $region177: #{attentional_gnn_forward.1} parent=131 // pred_check
          %p1047 = pneg %p525
        $region178: #{attentional_gnn_forward.1} parent=131 // pred_check_branch
          %1049 = sbr.rel (%p1047) target = $region180
        $region179: #{attentional_gnn_forward.1} parent=131 // pred_region
          %1051 = dma.done [#allocation20], 512
        $region180: #{attentional_gnn_forward.1} parent=131 // pred_fallthru
          _
        // Predicated region
        $region181: #{attentional_gnn_forward.1} parent=131 // pred_check
          %p1052 = pneg %p567
        $region182: #{attentional_gnn_forward.1} parent=131 // pred_check_branch
          %1054 = sbr.rel (%p1052) target = $region184
        $region183: #{attentional_gnn_forward.1} parent=131 // pred_region
          %1056 = dma.done [#allocation20], 512
        $region184: #{attentional_gnn_forward.1} parent=131 // pred_fallthru
          _
        // Predicated region
        $region185: #{attentional_gnn_forward.1} parent=131 // pred_check
          %p1057 = pneg %p609
        $region186: #{attentional_gnn_forward.1} parent=131 // pred_check_branch
          %1059 = sbr.rel (%p1057) target = $region188
        $region187: #{attentional_gnn_forward.1} parent=131 // pred_region
          %1061 = dma.done [#allocation23], 512
        $region188: #{attentional_gnn_forward.1} parent=131 // pred_fallthru
          _
        %p1062 = scmp.lt.s32.totalorder %s79, 1
        %s1063 = scalar_select %p1062, %s79, 1
        %s1064 = smul.addr %s1063, 8
        %s1065 = smul.addr %s1064, 8
        %s1066 = scalar_lea.vmem %s1, %s1065
        %p1067 = pneg %p100
        %p1068 = pneg %p97
        %p1069 = scmp.lt.s32.totalorder %s79, 1
        %s1070 = scalar_select %p1069, %s79, 1
        %s1071 = smul.addr %s1070, 2
        %s1072 = smul.addr %s1071, 8
        %s1073 = scalar_lea.vmem %s3, %s1072
        %p1074 = pneg %p126
        %p1075 = pneg %p123
        %p1076 = pneg %p147
        %p1077 = pneg %p144
        %p1078 = pneg %p168
        %p1079 = pneg %p165
        %p1080 = pneg %p189
        %p1081 = pneg %p186
        %p1082 = pneg %p210
        %p1083 = pneg %p207
        %p1084 = pneg %p231
        %p1085 = pneg %p228
        %p1086 = pneg %p252
        %p1087 = pneg %p249
        %p1088 = pneg %p273
        %p1089 = pneg %p270
        %p1090 = pneg %p294
        %p1091 = pneg %p291
        %p1092 = pneg %p315
        %p1093 = pneg %p312
        %p1094 = pneg %p336
        %p1095 = pneg %p333
        %p1096 = pneg %p357
        %p1097 = pneg %p354
        %p1098 = pneg %p378
        %p1099 = pneg %p375
        %p1100 = pneg %p399
        %p1101 = pneg %p396
        %p1102 = pneg %p420
        %p1103 = pneg %p417
        %p1104 = pneg %p441
        %p1105 = pneg %p438
        %p1106 = pneg %p462
        %p1107 = pneg %p459
        %p1108 = pneg %p483
        %p1109 = pneg %p480
        %p1110 = pneg %p504
        %p1111 = pneg %p501
        %p1112 = pneg %p525
        %p1113 = pneg %p522
        %p1114 = pneg %p546
        %p1115 = pneg %p543
        %p1116 = pneg %p567
        %p1117 = pneg %p564
        %p1118 = pneg %p588
        %p1119 = pneg %p585
        %p1120 = pneg %p609
        %p1121 = pneg %p606
        %p1122 = pneg %p630
        %p1123 = pneg %p627
        %p1124 = pneg %p651
        %p1125 = pneg %p648
        %p1126 = pneg %p672
        %p1127 = pneg %p669
        %p1128 = pneg %p698
        %p1129 = pneg %p695
        %p1130 = scmp.lt.s32.totalorder %s79, 1
        %s1131 = scalar_select %p1130, %s79, 1
        %s1132 = smul.addr %s1131, 8
        %s1133 = smul.addr %s1132, 8
        %s1134 = scalar_lea.vmem %s57, %s1133
        %p1135 = pneg %p724
        %p1136 = pneg %p721
        %p1137 = scmp.lt.s32.totalorder %s79, 1
        %s1138 = scalar_select %p1137, %s79, 1
        %s1139 = smul.addr %s1138, 2
        %s1140 = smul.addr %s1139, 8
        %s1141 = scalar_lea.vmem %s59, %s1140
        %p1142 = scmp.lt.s32.totalorder %s79, 1
        %s1143 = scalar_select %p1142, %s79, 1
        %s1144 = smul.addr %s1143, 8
        %s1145 = smul.addr %s1144, 8
        %s1146 = scalar_lea.vmem %s1, %s1145
        %p1147 = scmp.lt.s32.totalorder %s79, 1
        %s1148 = scalar_select %p1147, %s79, 1
        %s1149 = smul.addr %s1148, 2
        %s1150 = smul.addr %s1149, 8
        %s1151 = scalar_lea.vmem %s3, %s1150
        %p1152 = scmp.lt.s32.totalorder %s79, 1
        %s1153 = scalar_select %p1152, %s79, 1
        %s1154 = smul.addr %s1153, 8
        %s1155 = smul.addr %s1154, 8
        %s1156 = scalar_lea.vmem %s57, %s1155
        %p1157 = scmp.lt.s32.totalorder %s79, 1
        %s1158 = scalar_select %p1157, %s79, 1
        %s1159 = smul.addr %s1158, 2
        %s1160 = smul.addr %s1159, 8
        %s1161 = scalar_lea.vmem %s59, %s1160
        %v1163 = vld [vmem:[#allocation4] sm:$0x3]
        %v1164 = vld [vmem:[%s1146] sm:$0xff]
        %v1165 = vld [vmem:[%s1146 + $0x8] sm:$0xff]
        %v1166 = vld [vmem:[%s1146 + $0x10] sm:$0xff]
        %v1167 = vld [vmem:[%s1146 + $0x18] sm:$0xff]
        %v1168 = vld [vmem:[%s1146 + $0x20] sm:$0xff]
        %v1169 = vld [vmem:[%s1146 + $0x28] sm:$0xff]
        %v1170 = vld [vmem:[%s1146 + $0x30] sm:$0xff]
        %v1171 = vld [vmem:[%s1146 + $0x38] sm:$0xff]
        %1172 = vxpose.xlu0.b32.start [1/16] %v1164, 128
        %1173 = vxpose.xlu0.b32.cont [2/16] %v1165, 128
        %1174 = vxpose.xlu0.b32.cont [3/16] %v1166, 128
        %1175 = vxpose.xlu0.b32.cont [4/16] %v1167, 128
        %1176 = vxpose.xlu0.b32.cont [5/16] %v1168, 128
        %1177 = vxpose.xlu0.b32.cont [6/16] %v1169, 128
        %1178 = vxpose.xlu0.b32.cont [7/16] %v1170, 128
        %1179 = vxpose.xlu0.b32.cont [8/16] %v1171, 128
        %1180 = vxpose.xlu0.b32.cont [9/16] 0.0, 128
        %1181 = vxpose.xlu0.b32.cont [10/16] 0.0, 128
        %1182 = vxpose.xlu0.b32.cont [11/16] 0.0, 128
        %1183 = vxpose.xlu0.b32.cont [12/16] 0.0, 128
        %1184 = vxpose.xlu0.b32.cont [13/16] 0.0, 128
        %1185 = vxpose.xlu0.b32.cont [14/16] 0.0, 128
        %1186 = vxpose.xlu0.b32.cont [15/16] 0.0, 128
        %1187 = vxpose.xlu0.b32.end [16/16] 0.0, 128
        %v1188 = vpop.trf.xlu0
        %v1189 = vpop.trf.xlu0
        %v1190 = vpop.trf.xlu0
        %v1191 = vpop.trf.xlu0
        %v1192 = vpop.trf.xlu0
        %v1193 = vpop.trf.xlu0
        %v1194 = vpop.trf.xlu0
        %v1195 = vpop.trf.xlu0
        %v1196 = vpop.trf.xlu0
        %v1197 = vpop.trf.xlu0
        %v1198 = vpop.trf.xlu0
        %v1199 = vpop.trf.xlu0
        %v1200 = vpop.trf.xlu0
        %v1201 = vpop.trf.xlu0
        %v1202 = vpop.trf.xlu0
        %v1203 = vpop.trf.xlu0
        %v1204 = vld [vmem:[%s1151] sm:$0xff]
        %v1205 = vld [vmem:[%s1151 + $0x8] sm:$0xff]
        %v1206 = vld [vmem:[#allocation2] sm:$0xf]
        %v1207 = vld [vmem:[#allocation2 + $0x4] sm:$0xf]
        %v1208 = vld [vmem:[#allocation2 + $0x8] sm:$0xf]
        %v1209 = vld [vmem:[#allocation2 + $0xc] sm:$0xf]
        %v1210 = vld [vmem:[#allocation2 + $0x10] sm:$0xf]
        %v1211 = vld [vmem:[#allocation2 + $0x14] sm:$0xf]
        %v1212 = vld [vmem:[#allocation2 + $0x18] sm:$0xf]
        %v1213 = vld [vmem:[#allocation2 + $0x1c] sm:$0xf]
        %v1214 = vpack.c.bf16 %v1189, %v1188
        %1216 = vset.pattern.permute.xlu0 0
        %1217 = vperm.xlu0 %1216, %v1204
        %v1218 = vpop.permute.xlu0 %1217
        %1221 = vset.pattern.permute.xlu0 0
        %1222 = vperm.xlu0 %1221, %v1205
        %v1223 = vpop.permute.xlu0 %1222
        %v1225 = vperm.slane %v1163, 0
        %v1226 = vmul.f32 %v1218, %v1225
        %v1227 = vmul.f32 %v1223, %v1225
        %v1236 = vunpack.c.l.b16 %v1206
        %v1237 = vunpack.c.l.b16 %v1207
        %v1238 = vunpack.c.l.b16 %v1208
        %v1239 = vunpack.c.l.b16 %v1209
        %v1240 = vunpack.c.l.b16 %v1210
        %v1241 = vunpack.c.l.b16 %v1211
        %v1242 = vunpack.c.l.b16 %v1212
        %v1243 = vunpack.c.l.b16 %v1213
        %v1244 = vpack.c.b16 %v1237, %v1236
        %v1245 = vpack.c.b16 %v1239, %v1238
        %v1246 = vpack.c.b16 %v1241, %v1240
        %v1247 = vpack.c.b16 %v1243, %v1242
        %vm1252 = vcmask 523264
        %v1254 = vsel %vm1252, %v1214, 0
        %1256 = vmatpush.bf16.msra.mxu0 0
        %1257 = vmatpush.bf16.msra.mxu0 0
        %1258 = vmatpush.bf16.msra.mxu0 0
        %1259 = vmatpush.bf16.msra.mxu0 0
        %1260 = vmatpush.bf16.msra.mxu0 %v1247
        %1261 = vmatpush.bf16.msra.mxu0 %v1246
        %1262 = vmatpush.bf16.msra.mxu0 %v1245
        %1263 = vmatpush.bf16.msra.mxu0 %v1244
        %1264 = vmatmul.bf16.gmra.mxu0 %v1254
        %v1265 = vpop.f32.mrf.mxu0
        %v1266 = vadd.f32 %v1226, %v1265
        %v1267 = vpop.f32.mrf.mxu0
        %v1268 = vadd.f32 %v1227, %v1267
        %1269 = vdwg.mxu0
        %1270 = vset.pattern.permute.xlu0 1
        %1271 = vperm.xlu0 %1270, %v1204
        %v1272 = vpop.permute.xlu0 %1271
        %1274 = vset.pattern.permute.xlu0 1
        %1275 = vperm.xlu0 %1274, %v1205
        %v1276 = vpop.permute.xlu0 %1275
        %v1278 = vperm.slane %v1163, 1
        %v1279 = vmul.f32 %v1272, %v1278
        %v1280 = vmul.f32 %v1276, %v1278
        %v1281 = vadd.f32 %v1266, %v1279
        %v1282 = vadd.f32 %v1268, %v1280
        %v1283 = vld [vmem:[%s9] sm:$0x1]
        %v1285 = vperm.slane %v1283, 0
        %v1287 = vadd.f32 %v1281, %v1285
        %v1288 = vadd.f32 %v1282, %v1285
        %v1289 = vmax.f32 %v1287, 0.0
        %v1290 = vmax.f32 %v1288, 0.0
        %v1291 = vld [vmem:[#allocation6] sm:$0xf]
        %v1292 = vld [vmem:[#allocation6 + $0x4] sm:$0xf]
        %v1293 = vld [vmem:[#allocation6 + $0x8] sm:$0xf]
        %v1294 = vld [vmem:[#allocation6 + $0xc] sm:$0xf]
        %v1295 = vld [vmem:[#allocation6 + $0x10] sm:$0xf]
        %v1296 = vld [vmem:[#allocation6 + $0x14] sm:$0xf]
        %v1297 = vld [vmem:[#allocation6 + $0x18] sm:$0xf]
        %v1298 = vld [vmem:[#allocation6 + $0x1c] sm:$0xf]
        %v1299 = vld [vmem:[#allocation7] sm:$0x1]
        %v1300 = vpack.c.bf16 %v1290, %v1289
        %v1302 = vperm.slane %v1299, 0
        %v1312 = vunpack.c.l.b16 %v1291
        %v1313 = vunpack.c.l.b16 %v1292
        %v1314 = vunpack.c.l.b16 %v1293
        %v1315 = vunpack.c.l.b16 %v1294
        %v1316 = vunpack.c.l.b16 %v1295
        %v1317 = vunpack.c.l.b16 %v1296
        %v1318 = vunpack.c.l.b16 %v1297
        %v1319 = vunpack.c.l.b16 %v1298
        %v1320 = vpack.c.b16 %v1313, %v1312
        %v1321 = vpack.c.b16 %v1315, %v1314
        %v1322 = vpack.c.b16 %v1317, %v1316
        %v1323 = vpack.c.b16 %v1319, %v1318
        %v1329 = vsel %vm1252, %v1300, 0
        %1331 = vmatpush.bf16.msra.mxu0 0
        %1332 = vmatpush.bf16.msra.mxu0 0
        %1333 = vmatpush.bf16.msra.mxu0 0
        %1334 = vmatpush.bf16.msra.mxu0 0
        %1335 = vmatpush.bf16.msra.mxu0 %v1323
        %1336 = vmatpush.bf16.msra.mxu0 %v1322
        %1337 = vmatpush.bf16.msra.mxu0 %v1321
        %1338 = vmatpush.bf16.msra.mxu0 %v1320
        %1339 = vmatmul.bf16.gmra.mxu0 %v1329
        %v1340 = vpop.f32.mrf.mxu0
        %v1341 = vadd.f32 %v1302, %v1340
        %v1342 = vpop.f32.mrf.mxu0
        %v1343 = vadd.f32 %v1302, %v1342
        %1344 = vdwg.mxu0
        %v1345 = vmax.f32 %v1341, 0.0
        %v1346 = vmax.f32 %v1343, 0.0
        %v1347 = vld [vmem:[#allocation9] sm:$0xf]
        %v1348 = vld [vmem:[#allocation9 + $0x4] sm:$0xf]
        %v1349 = vld [vmem:[#allocation9 + $0x8] sm:$0xf]
        %v1350 = vld [vmem:[#allocation9 + $0xc] sm:$0xf]
        %v1351 = vld [vmem:[#allocation9 + $0x10] sm:$0xf]
        %v1352 = vld [vmem:[#allocation9 + $0x14] sm:$0xf]
        %v1353 = vld [vmem:[#allocation9 + $0x18] sm:$0xf]
        %v1354 = vld [vmem:[#allocation9 + $0x1c] sm:$0xf]
        %v1355 = vld [vmem:[#allocation10] sm:$0x1]
        %v1356 = vpack.c.bf16 %v1346, %v1345
        %v1358 = vperm.slane %v1355, 0
        %v1368 = vunpack.c.l.b16 %v1347
        %v1369 = vunpack.c.l.b16 %v1348
        %v1370 = vunpack.c.l.b16 %v1349
        %v1371 = vunpack.c.l.b16 %v1350
        %v1372 = vunpack.c.l.b16 %v1351
        %v1373 = vunpack.c.l.b16 %v1352
        %v1374 = vunpack.c.l.b16 %v1353
        %v1375 = vunpack.c.l.b16 %v1354
        %v1376 = vpack.c.b16 %v1369, %v1368
        %v1377 = vpack.c.b16 %v1371, %v1370
        %v1378 = vpack.c.b16 %v1373, %v1372
        %v1379 = vpack.c.b16 %v1375, %v1374
        %v1385 = vsel %vm1252, %v1356, 0
        %1387 = vmatpush.bf16.msra.mxu0 0
        %1388 = vmatpush.bf16.msra.mxu0 0
        %1389 = vmatpush.bf16.msra.mxu0 0
        %1390 = vmatpush.bf16.msra.mxu0 0
        %1391 = vmatpush.bf16.msra.mxu0 %v1379
        %1392 = vmatpush.bf16.msra.mxu0 %v1378
        %1393 = vmatpush.bf16.msra.mxu0 %v1377
        %1394 = vmatpush.bf16.msra.mxu0 %v1376
        %1395 = vmatmul.bf16.gmra.mxu0 %v1385
        %v1396 = vpop.f32.mrf.mxu0
        %v1397 = vadd.f32 %v1358, %v1396
        %v1398 = vpop.f32.mrf.mxu0
        %v1399 = vadd.f32 %v1358, %v1398
        %1400 = vdwg.mxu0
        %v1401 = vld [vmem:[%s19] sm:$0xff]
        %v1402 = vld [vmem:[%s19 + $0x8] sm:$0xff]
        %v1403 = vld [vmem:[%s19 + $0x10] sm:$0xff]
        %v1404 = vld [vmem:[%s19 + $0x18] sm:$0xff]
        %v1405 = vld [vmem:[%s19 + $0x20] sm:$0xff]
        %v1406 = vld [vmem:[%s19 + $0x28] sm:$0xff]
        %v1407 = vld [vmem:[%s19 + $0x30] sm:$0xff]
        %v1408 = vld [vmem:[%s19 + $0x38] sm:$0xff]
        %v1409 = vld [vmem:[#allocation12] sm:$0x3]
        %v1410 = vpack.c.bf16 %v1399, %v1397
        %v1412 = vperm.slane %v1409, 0
        %v1413 = vperm.slane %v1409, 1
        %v1424 = vunpack.c.l.b16 %v1401
        %v1425 = vunpack.c.h.b16 %v1401
        %v1426 = vunpack.c.l.b16 %v1402
        %v1427 = vunpack.c.h.b16 %v1402
        %v1428 = vunpack.c.l.b16 %v1403
        %v1429 = vunpack.c.h.b16 %v1403
        %v1430 = vunpack.c.l.b16 %v1404
        %v1431 = vunpack.c.h.b16 %v1404
        %v1432 = vunpack.c.l.b16 %v1405
        %v1433 = vunpack.c.h.b16 %v1405
        %v1434 = vunpack.c.l.b16 %v1406
        %v1435 = vunpack.c.h.b16 %v1406
        %v1436 = vunpack.c.l.b16 %v1407
        %v1437 = vunpack.c.h.b16 %v1407
        %v1438 = vunpack.c.l.b16 %v1408
        %v1439 = vunpack.c.h.b16 %v1408
        %v1440 = vpack.c.b16 %v1426, %v1424
        %v1441 = vpack.c.b16 %v1427, %v1425
        %v1442 = vpack.c.b16 %v1430, %v1428
        %v1443 = vpack.c.b16 %v1431, %v1429
        %v1444 = vpack.c.b16 %v1434, %v1432
        %v1445 = vpack.c.b16 %v1435, %v1433
        %v1446 = vpack.c.b16 %v1438, %v1436
        %v1447 = vpack.c.b16 %v1439, %v1437
        %v1457 = vsel %vm1252, %v1410, 0
        %1459 = vmatpush.bf16.msra.mxu0 0
        %1460 = vmatpush.bf16.msra.mxu0 0
        %1461 = vmatpush.bf16.msra.mxu0 0
        %1462 = vmatpush.bf16.msra.mxu0 0
        %1463 = vmatpush.bf16.msra.mxu0 %v1446
        %1464 = vmatpush.bf16.msra.mxu0 %v1444
        %1465 = vmatpush.bf16.msra.mxu0 %v1442
        %1466 = vmatpush.bf16.msra.mxu0 %v1440
        %1467 = vmatmul.bf16.gmra.mxu0 %v1457
        %v1468 = vpop.f32.mrf.mxu0
        %v1469 = vadd.f32 %v1412, %v1468
        %v1470 = vpop.f32.mrf.mxu0
        %v1471 = vadd.f32 %v1412, %v1470
        %1472 = vdwg.mxu0
        %1473 = vmatpush.bf16.msra.mxu0 0
        %1474 = vmatpush.bf16.msra.mxu0 0
        %1475 = vmatpush.bf16.msra.mxu0 0
        %1476 = vmatpush.bf16.msra.mxu0 0
        %1477 = vmatpush.bf16.msra.mxu0 %v1447
        %1478 = vmatpush.bf16.msra.mxu0 %v1445
        %1479 = vmatpush.bf16.msra.mxu0 %v1443
        %1480 = vmatpush.bf16.msra.mxu0 %v1441
        %1481 = vmatmul.bf16.gmra.mxu0 %v1457
        %v1482 = vpop.f32.mrf.mxu0
        %v1483 = vadd.f32 %v1413, %v1482
        %v1484 = vpop.f32.mrf.mxu0
        %v1485 = vadd.f32 %v1413, %v1484
        %1486 = vdwg.mxu0
        %v1487 = vld [vmem:[%s23] sm:$0xf]
        %v1488 = vld [vmem:[%s23 + $0x4] sm:$0xf]
        %v1489 = vld [vmem:[%s23 + $0x8] sm:$0xf]
        %v1490 = vld [vmem:[%s23 + $0xc] sm:$0xf]
        %v1491 = vld [vmem:[%s23 + $0x10] sm:$0xf]
        %v1492 = vld [vmem:[%s23 + $0x14] sm:$0xf]
        %v1493 = vld [vmem:[%s23 + $0x18] sm:$0xf]
        %v1494 = vld [vmem:[%s23 + $0x1c] sm:$0xf]
        %v1495 = vpack.c.bf16 %v1471, %v1469
        %v1496 = vpack.c.bf16 %v1485, %v1483
        %1498 = vrot.lane.b32.xlu0 %v1495, 64
        %v1499 = vpop.permute.xlu0 %1498
        %vm1500 = vcmask 130048
        %v1502 = vsel %vm1500, %v1495, 0
        %v1505 = vsel %vm1500, %v1499, 0
        %1507 = vmatpush.bf16.xpose.msra.mxu0 0
        %1508 = vmatpush.bf16.xpose.msra.mxu0 0
        %1509 = vmatpush.bf16.xpose.msra.mxu0 0
        %1510 = vmatpush.bf16.xpose.msra.mxu0 0
        %1511 = vmatpush.bf16.xpose.msra.mxu0 0
        %1512 = vmatpush.bf16.xpose.msra.mxu0 0
        %1513 = vmatpush.bf16.xpose.msra.mxu0 0
        %1514 = vmatpush.bf16.xpose.msra.mxu0 %v1505
        %1515 = vmatmul.bf16.gmra.mxu0 %v1502
        %v1516 = vpop.f32.mrf.mxu0
        %v1517 = vadd.f32 0.0, %v1516
        %v1518 = vpop.f32.mrf.mxu0
        %v1519 = vadd.f32 0.0, %v1518
        %1520 = vdwg.mxu0
        %v1521 = vsel %vm1500, %v1517, -inf
        %1522 = vmax.xlane.f32.xlu0 %v1521
        %v1523 = vpop.xlane.xlu0 %1522
        %v1524 = vsel %vm1500, %v1519, -inf
        %1525 = vmax.xlane.f32.xlu0 %v1524
        %v1526 = vpop.xlane.xlu0 %1525
        %v1527 = vsub.f32 %v1517, %v1523
        %v1528 = vsub.f32 %v1519, %v1526
        %v1529 = vmul.f32 %v1527, 1.442695
        %v1530 = vpow.pop %v1529
        %v1531 = vmul.f32 %v1528, 1.442695
        %v1532 = vpow.pop %v1531
        %v1533 = vsel %vm1500, %v1530, 0.0
        %1534 = vadd.xlane.f32.xlu0 %v1533
        %v1535 = vpop.xlane.xlu0 %1534
        %v1536 = vsel %vm1500, %v1532, 0.0
        %1537 = vadd.xlane.f32.xlu0 %v1536
        %v1538 = vpop.xlane.xlu0 %1537
        %v1539 = vrcp.pop %v1535
        %v1540 = vmul.f32 %v1535, %v1539
        %v1541 = vsub.f32 1.0, %v1540
        %v1542 = vmul.f32 %v1539, %v1541
        %v1543 = vadd.f32 %v1539, %v1542
        %vm1544 = vweird.f32 %v1535
        %vm1545 = vweird.f32 %v1539
        %vm1546 = vmor %vm1544, %vm1545
        %v1547 = vsel %vm1546, %v1539, %v1543
        %v1548 = vand.u32 2147483647, %v1535
        %vm1549 = vcmp.eq.f32.partialorder %v1548, 8.507059e+37
        %v1550 = vand.u32 %v1535, 2147483648
        %v1551 = vor.u32 1.1754944e-38, %v1550
        %v1552 = vsel %vm1549, %v1551, %v1547
        %v1553 = vmul.f32 %v1530, %v1552
        %v1554 = vrcp.pop %v1538
        %v1555 = vmul.f32 %v1538, %v1554
        %v1556 = vsub.f32 1.0, %v1555
        %v1557 = vmul.f32 %v1554, %v1556
        %v1558 = vadd.f32 %v1554, %v1557
        %vm1559 = vweird.f32 %v1538
        %vm1560 = vweird.f32 %v1554
        %vm1561 = vmor %vm1559, %vm1560
        %v1562 = vsel %vm1561, %v1554, %v1558
        %v1563 = vand.u32 2147483647, %v1538
        %vm1564 = vcmp.eq.f32.partialorder %v1563, 8.507059e+37
        %v1565 = vand.u32 %v1538, 2147483648
        %v1566 = vor.u32 1.1754944e-38, %v1565
        %v1567 = vsel %vm1564, %v1566, %v1562
        %v1568 = vmul.f32 %v1532, %v1567
        %v1569 = vpack.c.bf16 %v1568, %v1553
        %v1571 = vsel %vm1500, %v1569, 0
        %1573 = vmatpush.bf16.msra.mxu0 0
        %1574 = vmatpush.bf16.msra.mxu0 0
        %1575 = vmatpush.bf16.msra.mxu0 0
        %1576 = vmatpush.bf16.msra.mxu0 0
        %1577 = vmatpush.bf16.msra.mxu0 0
        %1578 = vmatpush.bf16.msra.mxu0 0
        %1579 = vmatpush.bf16.msra.mxu0 0
        %1580 = vmatpush.bf16.msra.mxu0 %v1496
        %1581 = vmatmul.bf16.gmra.mxu0 %v1571
        %v1582 = vpop.f32.mrf.mxu0
        %v1583 = vadd.f32 0.0, %v1582
        %v1584 = vpop.f32.mrf.mxu0
        %v1585 = vadd.f32 0.0, %v1584
        %1586 = vdwg.mxu0
        %v1587 = vpack.c.bf16 %v1585, %v1583
        %1588 = vrot.lane.b32.xlu0 %v1495, 112
        %v1589 = vpop.permute.xlu0 %1588
        %1590 = vrot.lane.b32.xlu0 %v1495, 48
        %v1591 = vpop.permute.xlu0 %1590
        %v1593 = vsel %vm1500, %v1589, 0
        %v1596 = vsel %vm1500, %v1591, 0
        %1598 = vmatpush.bf16.xpose.msra.mxu0 0
        %1599 = vmatpush.bf16.xpose.msra.mxu0 0
        %1600 = vmatpush.bf16.xpose.msra.mxu0 0
        %1601 = vmatpush.bf16.xpose.msra.mxu0 0
        %1602 = vmatpush.bf16.xpose.msra.mxu0 0
        %1603 = vmatpush.bf16.xpose.msra.mxu0 0
        %1604 = vmatpush.bf16.xpose.msra.mxu0 0
        %1605 = vmatpush.bf16.xpose.msra.mxu0 %v1596
        %1606 = vmatmul.bf16.gmra.mxu0 %v1593
        %v1607 = vpop.f32.mrf.mxu0
        %v1608 = vadd.f32 0.0, %v1607
        %v1609 = vpop.f32.mrf.mxu0
        %v1610 = vadd.f32 0.0, %v1609
        %1611 = vdwg.mxu0
        %v1612 = vsel %vm1500, %v1608, -inf
        %1613 = vmax.xlane.f32.xlu0 %v1612
        %v1614 = vpop.xlane.xlu0 %1613
        %v1615 = vsel %vm1500, %v1610, -inf
        %1616 = vmax.xlane.f32.xlu0 %v1615
        %v1617 = vpop.xlane.xlu0 %1616
        %v1618 = vsub.f32 %v1608, %v1614
        %v1619 = vsub.f32 %v1610, %v1617
        %v1620 = vmul.f32 %v1618, 1.442695
        %v1621 = vpow.pop %v1620
        %v1622 = vmul.f32 %v1619, 1.442695
        %v1623 = vpow.pop %v1622
        %v1624 = vsel %vm1500, %v1621, 0.0
        %1625 = vadd.xlane.f32.xlu0 %v1624
        %v1626 = vpop.xlane.xlu0 %1625
        %v1627 = vsel %vm1500, %v1623, 0.0
        %1628 = vadd.xlane.f32.xlu0 %v1627
        %v1629 = vpop.xlane.xlu0 %1628
        %v1630 = vrcp.pop %v1626
        %v1631 = vmul.f32 %v1626, %v1630
        %v1632 = vsub.f32 1.0, %v1631
        %v1633 = vmul.f32 %v1630, %v1632
        %v1634 = vadd.f32 %v1630, %v1633
        %vm1635 = vweird.f32 %v1626
        %vm1636 = vweird.f32 %v1630
        %vm1637 = vmor %vm1635, %vm1636
        %v1638 = vsel %vm1637, %v1630, %v1634
        %v1639 = vand.u32 2147483647, %v1626
        %vm1640 = vcmp.eq.f32.partialorder %v1639, 8.507059e+37
        %v1641 = vand.u32 %v1626, 2147483648
        %v1642 = vor.u32 1.1754944e-38, %v1641
        %v1643 = vsel %vm1640, %v1642, %v1638
        %v1644 = vmul.f32 %v1621, %v1643
        %v1645 = vrcp.pop %v1629
        %v1646 = vmul.f32 %v1629, %v1645
        %v1647 = vsub.f32 1.0, %v1646
        %v1648 = vmul.f32 %v1645, %v1647
        %v1649 = vadd.f32 %v1645, %v1648
        %vm1650 = vweird.f32 %v1629
        %vm1651 = vweird.f32 %v1645
        %vm1652 = vmor %vm1650, %vm1651
        %v1653 = vsel %vm1652, %v1645, %v1649
        %v1654 = vand.u32 2147483647, %v1629
        %vm1655 = vcmp.eq.f32.partialorder %v1654, 8.507059e+37
        %v1656 = vand.u32 %v1629, 2147483648
        %v1657 = vor.u32 1.1754944e-38, %v1656
        %v1658 = vsel %vm1655, %v1657, %v1653
        %v1659 = vmul.f32 %v1623, %v1658
        %v1660 = vpack.c.bf16 %v1659, %v1644
        %1662 = vrot.lane.b32.xlu0 %v1496, 112
        %v1663 = vpop.permute.xlu0 %1662
        %v1666 = vsel %vm1500, %v1660, 0
        %1668 = vmatpush.bf16.msra.mxu0 0
        %1669 = vmatpush.bf16.msra.mxu0 0
        %1670 = vmatpush.bf16.msra.mxu0 0
        %1671 = vmatpush.bf16.msra.mxu0 0
        %1672 = vmatpush.bf16.msra.mxu0 0
        %1673 = vmatpush.bf16.msra.mxu0 0
        %1674 = vmatpush.bf16.msra.mxu0 0
        %1675 = vmatpush.bf16.msra.mxu0 %v1663
        %1676 = vmatmul.bf16.gmra.mxu0 %v1666
        %v1677 = vpop.f32.mrf.mxu0
        %v1678 = vadd.f32 0.0, %v1677
        %v1679 = vpop.f32.mrf.mxu0
        %v1680 = vadd.f32 0.0, %v1679
        %1681 = vdwg.mxu0
        %v1682 = vpack.c.bf16 %v1680, %v1678
        %v1685 = vunpack.c.l.b16 %v1489
        %v1686 = vunpack.c.l.b16 %v1490
        %v1687 = vpack.c.b16 %v1686, %v1685
        %v1690 = vsel %vm1500, %v1682, 0
        %1692 = vmatpush.bf16.msra.mxu0 0
        %1693 = vmatpush.bf16.msra.mxu0 0
        %1694 = vmatpush.bf16.msra.mxu0 0
        %1695 = vmatpush.bf16.msra.mxu0 0
        %1696 = vmatpush.bf16.msra.mxu0 0
        %1697 = vmatpush.bf16.msra.mxu0 0
        %1698 = vmatpush.bf16.msra.mxu0 0
        %1699 = vmatpush.bf16.msra.mxu0 %v1687
        %1700 = vmatmul.bf16.gmra.mxu0 %v1690
        %v1701 = vpop.f32.mrf.mxu0
        %v1702 = vadd.f32 0.0, %v1701
        %v1703 = vpop.f32.mrf.mxu0
        %v1704 = vadd.f32 0.0, %v1703
        %1705 = vdwg.mxu0
        %v1708 = vunpack.c.l.b16 %v1487
        %v1709 = vunpack.c.l.b16 %v1488
        %v1710 = vpack.c.b16 %v1709, %v1708
        %v1713 = vsel %vm1500, %v1587, 0
        %1715 = vmatpush.bf16.msra.mxu0 0
        %1716 = vmatpush.bf16.msra.mxu0 0
        %1717 = vmatpush.bf16.msra.mxu0 0
        %1718 = vmatpush.bf16.msra.mxu0 0
        %1719 = vmatpush.bf16.msra.mxu0 0
        %1720 = vmatpush.bf16.msra.mxu0 0
        %1721 = vmatpush.bf16.msra.mxu0 0
        %1722 = vmatpush.bf16.msra.mxu0 %v1710
        %1723 = vmatmul.bf16.gmra.mxu0 %v1713
        %v1724 = vpop.f32.mrf.mxu0
        %v1725 = vadd.f32 %v1702, %v1724
        %v1726 = vpop.f32.mrf.mxu0
        %v1727 = vadd.f32 %v1704, %v1726
        %1728 = vdwg.mxu0
        %1729 = vrot.lane.b32.xlu0 %v1495, 96
        %v1730 = vpop.permute.xlu0 %1729
        %1731 = vrot.lane.b32.xlu0 %v1495, 32
        %v1732 = vpop.permute.xlu0 %1731
        %v1734 = vsel %vm1500, %v1730, 0
        %v1737 = vsel %vm1500, %v1732, 0
        %1739 = vmatpush.bf16.xpose.msra.mxu0 0
        %1740 = vmatpush.bf16.xpose.msra.mxu0 0
        %1741 = vmatpush.bf16.xpose.msra.mxu0 0
        %1742 = vmatpush.bf16.xpose.msra.mxu0 0
        %1743 = vmatpush.bf16.xpose.msra.mxu0 0
        %1744 = vmatpush.bf16.xpose.msra.mxu0 0
        %1745 = vmatpush.bf16.xpose.msra.mxu0 0
        %1746 = vmatpush.bf16.xpose.msra.mxu0 %v1737
        %1747 = vmatmul.bf16.gmra.mxu0 %v1734
        %v1748 = vpop.f32.mrf.mxu0
        %v1749 = vadd.f32 0.0, %v1748
        %v1750 = vpop.f32.mrf.mxu0
        %v1751 = vadd.f32 0.0, %v1750
        %1752 = vdwg.mxu0
        %v1753 = vsel %vm1500, %v1749, -inf
        %1754 = vmax.xlane.f32.xlu0 %v1753
        %v1755 = vpop.xlane.xlu0 %1754
        %v1756 = vsel %vm1500, %v1751, -inf
        %1757 = vmax.xlane.f32.xlu0 %v1756
        %v1758 = vpop.xlane.xlu0 %1757
        %v1759 = vsub.f32 %v1749, %v1755
        %v1760 = vsub.f32 %v1751, %v1758
        %v1761 = vmul.f32 %v1759, 1.442695
        %v1762 = vpow.pop %v1761
        %v1763 = vmul.f32 %v1760, 1.442695
        %v1764 = vpow.pop %v1763
        %v1765 = vsel %vm1500, %v1762, 0.0
        %1766 = vadd.xlane.f32.xlu0 %v1765
        %v1767 = vpop.xlane.xlu0 %1766
        %v1768 = vsel %vm1500, %v1764, 0.0
        %1769 = vadd.xlane.f32.xlu0 %v1768
        %v1770 = vpop.xlane.xlu0 %1769
        %v1771 = vrcp.pop %v1767
        %v1772 = vmul.f32 %v1767, %v1771
        %v1773 = vsub.f32 1.0, %v1772
        %v1774 = vmul.f32 %v1771, %v1773
        %v1775 = vadd.f32 %v1771, %v1774
        %vm1776 = vweird.f32 %v1767
        %vm1777 = vweird.f32 %v1771
        %vm1778 = vmor %vm1776, %vm1777
        %v1779 = vsel %vm1778, %v1771, %v1775
        %v1780 = vand.u32 2147483647, %v1767
        %vm1781 = vcmp.eq.f32.partialorder %v1780, 8.507059e+37
        %v1782 = vand.u32 %v1767, 2147483648
        %v1783 = vor.u32 1.1754944e-38, %v1782
        %v1784 = vsel %vm1781, %v1783, %v1779
        %v1785 = vmul.f32 %v1762, %v1784
        %v1786 = vrcp.pop %v1770
        %v1787 = vmul.f32 %v1770, %v1786
        %v1788 = vsub.f32 1.0, %v1787
        %v1789 = vmul.f32 %v1786, %v1788
        %v1790 = vadd.f32 %v1786, %v1789
        %vm1791 = vweird.f32 %v1770
        %vm1792 = vweird.f32 %v1786
        %vm1793 = vmor %vm1791, %vm1792
        %v1794 = vsel %vm1793, %v1786, %v1790
        %v1795 = vand.u32 2147483647, %v1770
        %vm1796 = vcmp.eq.f32.partialorder %v1795, 8.507059e+37
        %v1797 = vand.u32 %v1770, 2147483648
        %v1798 = vor.u32 1.1754944e-38, %v1797
        %v1799 = vsel %vm1796, %v1798, %v1794
        %v1800 = vmul.f32 %v1764, %v1799
        %v1801 = vpack.c.bf16 %v1800, %v1785
        %1802 = vrot.lane.b32.xlu0 %v1496, 96
        %v1803 = vpop.permute.xlu0 %1802
        %v1806 = vsel %vm1500, %v1801, 0
        %1808 = vmatpush.bf16.msra.mxu0 0
        %1809 = vmatpush.bf16.msra.mxu0 0
        %1810 = vmatpush.bf16.msra.mxu0 0
        %1811 = vmatpush.bf16.msra.mxu0 0
        %1812 = vmatpush.bf16.msra.mxu0 0
        %1813 = vmatpush.bf16.msra.mxu0 0
        %1814 = vmatpush.bf16.msra.mxu0 0
        %1815 = vmatpush.bf16.msra.mxu0 %v1803
        %1816 = vmatmul.bf16.gmra.mxu0 %v1806
        %v1817 = vpop.f32.mrf.mxu0
        %v1818 = vadd.f32 0.0, %v1817
        %v1819 = vpop.f32.mrf.mxu0
        %v1820 = vadd.f32 0.0, %v1819
        %1821 = vdwg.mxu0
        %v1822 = vpack.c.bf16 %v1820, %v1818
        %v1825 = vunpack.c.l.b16 %v1491
        %v1826 = vunpack.c.l.b16 %v1492
        %v1827 = vpack.c.b16 %v1826, %v1825
        %v1830 = vsel %vm1500, %v1822, 0
        %1832 = vmatpush.bf16.msra.mxu0 0
        %1833 = vmatpush.bf16.msra.mxu0 0
        %1834 = vmatpush.bf16.msra.mxu0 0
        %1835 = vmatpush.bf16.msra.mxu0 0
        %1836 = vmatpush.bf16.msra.mxu0 0
        %1837 = vmatpush.bf16.msra.mxu0 0
        %1838 = vmatpush.bf16.msra.mxu0 0
        %1839 = vmatpush.bf16.msra.mxu0 %v1827
        %1840 = vmatmul.bf16.gmra.mxu0 %v1830
        %v1841 = vpop.f32.mrf.mxu0
        %v1842 = vadd.f32 0.0, %v1841
        %v1843 = vpop.f32.mrf.mxu0
        %v1844 = vadd.f32 0.0, %v1843
        %1845 = vdwg.mxu0
        %v1846 = vadd.f32 %v1725, %v1842
        %v1847 = vadd.f32 %v1727, %v1844
        %1848 = vrot.lane.b32.xlu0 %v1495, 80
        %v1849 = vpop.permute.xlu0 %1848
        %1850 = vrot.lane.b32.xlu0 %v1495, 16
        %v1851 = vpop.permute.xlu0 %1850
        %v1853 = vsel %vm1500, %v1849, 0
        %v1856 = vsel %vm1500, %v1851, 0
        %1858 = vmatpush.bf16.xpose.msra.mxu0 0
        %1859 = vmatpush.bf16.xpose.msra.mxu0 0
        %1860 = vmatpush.bf16.xpose.msra.mxu0 0
        %1861 = vmatpush.bf16.xpose.msra.mxu0 0
        %1862 = vmatpush.bf16.xpose.msra.mxu0 0
        %1863 = vmatpush.bf16.xpose.msra.mxu0 0
        %1864 = vmatpush.bf16.xpose.msra.mxu0 0
        %1865 = vmatpush.bf16.xpose.msra.mxu0 %v1856
        %1866 = vmatmul.bf16.gmra.mxu0 %v1853
        %v1867 = vpop.f32.mrf.mxu0
        %v1868 = vadd.f32 0.0, %v1867
        %v1869 = vpop.f32.mrf.mxu0
        %v1870 = vadd.f32 0.0, %v1869
        %1871 = vdwg.mxu0
        %v1872 = vsel %vm1500, %v1868, -inf
        %1873 = vmax.xlane.f32.xlu0 %v1872
        %v1874 = vpop.xlane.xlu0 %1873
        %v1875 = vsel %vm1500, %v1870, -inf
        %1876 = vmax.xlane.f32.xlu0 %v1875
        %v1877 = vpop.xlane.xlu0 %1876
        %v1878 = vsub.f32 %v1868, %v1874
        %v1879 = vsub.f32 %v1870, %v1877
        %v1880 = vmul.f32 %v1878, 1.442695
        %v1881 = vpow.pop %v1880
        %v1882 = vmul.f32 %v1879, 1.442695
        %v1883 = vpow.pop %v1882
        %v1884 = vsel %vm1500, %v1881, 0.0
        %1885 = vadd.xlane.f32.xlu0 %v1884
        %v1886 = vpop.xlane.xlu0 %1885
        %v1887 = vsel %vm1500, %v1883, 0.0
        %1888 = vadd.xlane.f32.xlu0 %v1887
        %v1889 = vpop.xlane.xlu0 %1888
        %v1890 = vrcp.pop %v1886
        %v1891 = vmul.f32 %v1886, %v1890
        %v1892 = vsub.f32 1.0, %v1891
        %v1893 = vmul.f32 %v1890, %v1892
        %v1894 = vadd.f32 %v1890, %v1893
        %vm1895 = vweird.f32 %v1886
        %vm1896 = vweird.f32 %v1890
        %vm1897 = vmor %vm1895, %vm1896
        %v1898 = vsel %vm1897, %v1890, %v1894
        %v1899 = vand.u32 2147483647, %v1886
        %vm1900 = vcmp.eq.f32.partialorder %v1899, 8.507059e+37
        %v1901 = vand.u32 %v1886, 2147483648
        %v1902 = vor.u32 1.1754944e-38, %v1901
        %v1903 = vsel %vm1900, %v1902, %v1898
        %v1904 = vmul.f32 %v1881, %v1903
        %v1905 = vrcp.pop %v1889
        %v1906 = vmul.f32 %v1889, %v1905
        %v1907 = vsub.f32 1.0, %v1906
        %v1908 = vmul.f32 %v1905, %v1907
        %v1909 = vadd.f32 %v1905, %v1908
        %vm1910 = vweird.f32 %v1889
        %vm1911 = vweird.f32 %v1905
        %vm1912 = vmor %vm1910, %vm1911
        %v1913 = vsel %vm1912, %v1905, %v1909
        %v1914 = vand.u32 2147483647, %v1889
        %vm1915 = vcmp.eq.f32.partialorder %v1914, 8.507059e+37
        %v1916 = vand.u32 %v1889, 2147483648
        %v1917 = vor.u32 1.1754944e-38, %v1916
        %v1918 = vsel %vm1915, %v1917, %v1913
        %v1919 = vmul.f32 %v1883, %v1918
        %v1920 = vpack.c.bf16 %v1919, %v1904
        %1921 = vrot.lane.b32.xlu0 %v1496, 80
        %v1922 = vpop.permute.xlu0 %1921
        %v1925 = vsel %vm1500, %v1920, 0
        %1927 = vmatpush.bf16.msra.mxu0 0
        %1928 = vmatpush.bf16.msra.mxu0 0
        %1929 = vmatpush.bf16.msra.mxu0 0
        %1930 = vmatpush.bf16.msra.mxu0 0
        %1931 = vmatpush.bf16.msra.mxu0 0
        %1932 = vmatpush.bf16.msra.mxu0 0
        %1933 = vmatpush.bf16.msra.mxu0 0
        %1934 = vmatpush.bf16.msra.mxu0 %v1922
        %1935 = vmatmul.bf16.gmra.mxu0 %v1925
        %v1936 = vpop.f32.mrf.mxu0
        %v1937 = vadd.f32 0.0, %v1936
        %v1938 = vpop.f32.mrf.mxu0
        %v1939 = vadd.f32 0.0, %v1938
        %1940 = vdwg.mxu0
        %v1941 = vpack.c.bf16 %v1939, %v1937
        %v1944 = vunpack.c.l.b16 %v1493
        %v1945 = vunpack.c.l.b16 %v1494
        %v1946 = vpack.c.b16 %v1945, %v1944
        %v1949 = vsel %vm1500, %v1941, 0
        %1951 = vmatpush.bf16.msra.mxu0 0
        %1952 = vmatpush.bf16.msra.mxu0 0
        %1953 = vmatpush.bf16.msra.mxu0 0
        %1954 = vmatpush.bf16.msra.mxu0 0
        %1955 = vmatpush.bf16.msra.mxu0 0
        %1956 = vmatpush.bf16.msra.mxu0 0
        %1957 = vmatpush.bf16.msra.mxu0 0
        %1958 = vmatpush.bf16.msra.mxu0 %v1946
        %1959 = vmatmul.bf16.gmra.mxu0 %v1949
        %v1960 = vpop.f32.mrf.mxu0
        %v1961 = vadd.f32 0.0, %v1960
        %v1962 = vpop.f32.mrf.mxu0
        %v1963 = vadd.f32 0.0, %v1962
        %1964 = vdwg.mxu0
        %v1965 = vadd.f32 %v1846, %v1961
        %v1966 = vadd.f32 %v1847, %v1963
        %v1967 = vld [vmem:[%s25] sm:$0x1]
        %v1969 = vperm.slane %v1967, 0
        %v1971 = vadd.f32 %v1965, %v1969
        %v1972 = vadd.f32 %v1966, %v1969
        %v1973 = vld [vmem:[%s27] sm:$0xf]
        %v1974 = vld [vmem:[%s27 + $0x4] sm:$0xf]
        %v1975 = vld [vmem:[%s27 + $0x8] sm:$0xf]
        %v1976 = vld [vmem:[%s27 + $0xc] sm:$0xf]
        %v1977 = vld [vmem:[%s27 + $0x10] sm:$0xf]
        %v1978 = vld [vmem:[%s27 + $0x14] sm:$0xf]
        %v1979 = vld [vmem:[%s27 + $0x18] sm:$0xf]
        %v1980 = vld [vmem:[%s27 + $0x1c] sm:$0xf]
        %v1981 = vld [vmem:[#allocation13] sm:$0xf]
        %v1982 = vld [vmem:[#allocation13 + $0x4] sm:$0xf]
        %v1983 = vld [vmem:[#allocation13 + $0x8] sm:$0xf]
        %v1984 = vld [vmem:[#allocation13 + $0xc] sm:$0xf]
        %v1985 = vld [vmem:[#allocation13 + $0x10] sm:$0xf]
        %v1986 = vld [vmem:[#allocation13 + $0x14] sm:$0xf]
        %v1987 = vld [vmem:[#allocation13 + $0x18] sm:$0xf]
        %v1988 = vld [vmem:[#allocation13 + $0x1c] sm:$0xf]
        %v1989 = vpack.c.bf16 %v1972, %v1971
        %v1998 = vunpack.c.l.b16 %v1981
        %v1999 = vunpack.c.l.b16 %v1982
        %v2000 = vunpack.c.l.b16 %v1983
        %v2001 = vunpack.c.l.b16 %v1984
        %v2002 = vunpack.c.l.b16 %v1985
        %v2003 = vunpack.c.l.b16 %v1986
        %v2004 = vunpack.c.l.b16 %v1987
        %v2005 = vunpack.c.l.b16 %v1988
        %v2006 = vpack.c.b16 %v1999, %v1998
        %v2007 = vpack.c.b16 %v2001, %v2000
        %v2008 = vpack.c.b16 %v2003, %v2002
        %v2009 = vpack.c.b16 %v2005, %v2004
        %v2015 = vsel %vm1252, %v1989, 0
        %2017 = vmatpush.bf16.msra.mxu0 0
        %2018 = vmatpush.bf16.msra.mxu0 0
        %2019 = vmatpush.bf16.msra.mxu0 0
        %2020 = vmatpush.bf16.msra.mxu0 0
        %2021 = vmatpush.bf16.msra.mxu0 %v2009
        %2022 = vmatpush.bf16.msra.mxu0 %v2008
        %2023 = vmatpush.bf16.msra.mxu0 %v2007
        %2024 = vmatpush.bf16.msra.mxu0 %v2006
        %2025 = vmatmul.bf16.gmra.mxu0 %v2015
        %v2026 = vpop.f32.mrf.mxu0
        %v2027 = vadd.f32 0.0, %v2026
        %v2028 = vpop.f32.mrf.mxu0
        %v2029 = vadd.f32 0.0, %v2028
        %2030 = vdwg.mxu0
        %v2039 = vunpack.c.l.b16 %v1973
        %v2040 = vunpack.c.l.b16 %v1974
        %v2041 = vunpack.c.l.b16 %v1975
        %v2042 = vunpack.c.l.b16 %v1976
        %v2043 = vunpack.c.l.b16 %v1977
        %v2044 = vunpack.c.l.b16 %v1978
        %v2045 = vunpack.c.l.b16 %v1979
        %v2046 = vunpack.c.l.b16 %v1980
        %v2047 = vpack.c.b16 %v2040, %v2039
        %v2048 = vpack.c.b16 %v2042, %v2041
        %v2049 = vpack.c.b16 %v2044, %v2043
        %v2050 = vpack.c.b16 %v2046, %v2045
        %2055 = vmatpush.bf16.msra.mxu0 0
        %2056 = vmatpush.bf16.msra.mxu0 0
        %2057 = vmatpush.bf16.msra.mxu0 0
        %2058 = vmatpush.bf16.msra.mxu0 0
        %2059 = vmatpush.bf16.msra.mxu0 %v2050
        %2060 = vmatpush.bf16.msra.mxu0 %v2049
        %2061 = vmatpush.bf16.msra.mxu0 %v2048
        %2062 = vmatpush.bf16.msra.mxu0 %v2047
        %2063 = vmatmul.bf16.gmra.mxu0 %v1457
        %v2064 = vpop.f32.mrf.mxu0
        %v2065 = vadd.f32 %v2027, %v2064
        %v2066 = vpop.f32.mrf.mxu0
        %v2067 = vadd.f32 %v2029, %v2066
        %2068 = vdwg.mxu0
        %v2069 = vld [vmem:[#allocation15] sm:$0x1]
        %v2071 = vperm.slane %v2069, 0
        %v2073 = vadd.f32 %v2065, %v2071
        %v2074 = vadd.f32 %v2067, %v2071
        %v2075 = vmax.f32 %v2073, 0.0
        %v2076 = vmax.f32 %v2074, 0.0
        %v2077 = vld [vmem:[%s33] sm:$0xf]
        %v2078 = vld [vmem:[%s33 + $0x4] sm:$0xf]
        %v2079 = vld [vmem:[%s33 + $0x8] sm:$0xf]
        %v2080 = vld [vmem:[%s33 + $0xc] sm:$0xf]
        %v2081 = vld [vmem:[%s33 + $0x10] sm:$0xf]
        %v2082 = vld [vmem:[%s33 + $0x14] sm:$0xf]
        %v2083 = vld [vmem:[%s33 + $0x18] sm:$0xf]
        %v2084 = vld [vmem:[%s33 + $0x1c] sm:$0xf]
        %v2085 = vld [vmem:[%s33 + $0x20] sm:$0xf]
        %v2086 = vld [vmem:[%s33 + $0x24] sm:$0xf]
        %v2087 = vld [vmem:[%s33 + $0x28] sm:$0xf]
        %v2088 = vld [vmem:[%s33 + $0x2c] sm:$0xf]
        %v2089 = vld [vmem:[%s33 + $0x30] sm:$0xf]
        %v2090 = vld [vmem:[%s33 + $0x34] sm:$0xf]
        %v2091 = vld [vmem:[%s33 + $0x38] sm:$0xf]
        %v2092 = vld [vmem:[%s33 + $0x3c] sm:$0xf]
        %v2093 = vld [vmem:[#allocation16] sm:$0x1]
        %v2094 = vpack.c.bf16 %v2076, %v2075
        %v2096 = vperm.slane %v2093, 0
        %v2114 = vunpack.c.l.b16 %v2077
        %v2115 = vunpack.c.l.b16 %v2078
        %v2116 = vunpack.c.l.b16 %v2079
        %v2117 = vunpack.c.l.b16 %v2080
        %v2118 = vunpack.c.l.b16 %v2081
        %v2119 = vunpack.c.l.b16 %v2082
        %v2120 = vunpack.c.l.b16 %v2083
        %v2121 = vunpack.c.l.b16 %v2084
        %v2122 = vunpack.c.l.b16 %v2085
        %v2123 = vunpack.c.l.b16 %v2086
        %v2124 = vunpack.c.l.b16 %v2087
        %v2125 = vunpack.c.l.b16 %v2088
        %v2126 = vunpack.c.l.b16 %v2089
        %v2127 = vunpack.c.l.b16 %v2090
        %v2128 = vunpack.c.l.b16 %v2091
        %v2129 = vunpack.c.l.b16 %v2092
        %v2130 = vpack.c.b16 %v2115, %v2114
        %v2131 = vpack.c.b16 %v2117, %v2116
        %v2132 = vpack.c.b16 %v2119, %v2118
        %v2133 = vpack.c.b16 %v2121, %v2120
        %v2134 = vpack.c.b16 %v2123, %v2122
        %v2135 = vpack.c.b16 %v2125, %v2124
        %v2136 = vpack.c.b16 %v2127, %v2126
        %v2137 = vpack.c.b16 %v2129, %v2128
        %2146 = vmatpush.bf16.msra.mxu0 %v2137
        %2147 = vmatpush.bf16.msra.mxu0 %v2136
        %2148 = vmatpush.bf16.msra.mxu0 %v2135
        %2149 = vmatpush.bf16.msra.mxu0 %v2134
        %2150 = vmatpush.bf16.msra.mxu0 %v2133
        %2151 = vmatpush.bf16.msra.mxu0 %v2132
        %2152 = vmatpush.bf16.msra.mxu0 %v2131
        %2153 = vmatpush.bf16.msra.mxu0 %v2130
        %2154 = vmatmul.bf16.gmra.mxu0 %v2094
        %v2155 = vpop.f32.mrf.mxu0
        %v2156 = vadd.f32 %v2096, %v2155
        %v2157 = vpop.f32.mrf.mxu0
        %v2158 = vadd.f32 %v2096, %v2157
        %2159 = vdwg.mxu0
        %v2160 = vadd.f32 %v1397, %v2156
        %v2161 = vadd.f32 %v1399, %v2158
        %s2162 = scalar_lea.vmem %s19, 64
        %v2163 = vld [vmem:[%s2162] sm:$0xff]
        %v2164 = vld [vmem:[%s2162 + $0x8] sm:$0xff]
        %v2165 = vld [vmem:[%s2162 + $0x10] sm:$0xff]
        %v2166 = vld [vmem:[%s2162 + $0x18] sm:$0xff]
        %v2167 = vld [vmem:[%s2162 + $0x20] sm:$0xff]
        %v2168 = vld [vmem:[%s2162 + $0x28] sm:$0xff]
        %v2169 = vld [vmem:[%s2162 + $0x30] sm:$0xff]
        %v2170 = vld [vmem:[%s2162 + $0x38] sm:$0xff]
        %s2171 = scalar_lea.vmem [#allocation12], 2
        %v2172 = vld [vmem:[%s2171] sm:$0x3]
        %v2173 = vpack.c.bf16 %v2161, %v2160
        %v2175 = vperm.slane %v2172, 0
        %v2176 = vperm.slane %v2172, 1
        %v2187 = vunpack.c.l.b16 %v2163
        %v2188 = vunpack.c.h.b16 %v2163
        %v2189 = vunpack.c.l.b16 %v2164
        %v2190 = vunpack.c.h.b16 %v2164
        %v2191 = vunpack.c.l.b16 %v2165
        %v2192 = vunpack.c.h.b16 %v2165
        %v2193 = vunpack.c.l.b16 %v2166
        %v2194 = vunpack.c.h.b16 %v2166
        %v2195 = vunpack.c.l.b16 %v2167
        %v2196 = vunpack.c.h.b16 %v2167
        %v2197 = vunpack.c.l.b16 %v2168
        %v2198 = vunpack.c.h.b16 %v2168
        %v2199 = vunpack.c.l.b16 %v2169
        %v2200 = vunpack.c.h.b16 %v2169
        %v2201 = vunpack.c.l.b16 %v2170
        %v2202 = vunpack.c.h.b16 %v2170
        %v2203 = vpack.c.b16 %v2189, %v2187
        %v2204 = vpack.c.b16 %v2190, %v2188
        %v2205 = vpack.c.b16 %v2193, %v2191
        %v2206 = vpack.c.b16 %v2194, %v2192
        %v2207 = vpack.c.b16 %v2197, %v2195
        %v2208 = vpack.c.b16 %v2198, %v2196
        %v2209 = vpack.c.b16 %v2201, %v2199
        %v2210 = vpack.c.b16 %v2202, %v2200
        %v2220 = vsel %vm1252, %v2173, 0
        %2222 = vmatpush.bf16.msra.mxu0 0
        %2223 = vmatpush.bf16.msra.mxu0 0
        %2224 = vmatpush.bf16.msra.mxu0 0
        %2225 = vmatpush.bf16.msra.mxu0 0
        %2226 = vmatpush.bf16.msra.mxu0 %v2209
        %2227 = vmatpush.bf16.msra.mxu0 %v2207
        %2228 = vmatpush.bf16.msra.mxu0 %v2205
        %2229 = vmatpush.bf16.msra.mxu0 %v2203
        %2230 = vmatmul.bf16.gmra.mxu0 %v2220
        %v2231 = vpop.f32.mrf.mxu0
        %v2232 = vadd.f32 %v2175, %v2231
        %v2233 = vpop.f32.mrf.mxu0
        %v2234 = vadd.f32 %v2175, %v2233
        %2235 = vdwg.mxu0
        %2236 = vmatpush.bf16.msra.mxu0 0
        %2237 = vmatpush.bf16.msra.mxu0 0
        %2238 = vmatpush.bf16.msra.mxu0 0
        %2239 = vmatpush.bf16.msra.mxu0 0
        %2240 = vmatpush.bf16.msra.mxu0 %v2210
        %2241 = vmatpush.bf16.msra.mxu0 %v2208
        %2242 = vmatpush.bf16.msra.mxu0 %v2206
        %2243 = vmatpush.bf16.msra.mxu0 %v2204
        %2244 = vmatmul.bf16.gmra.mxu0 %v2220
        %v2245 = vpop.f32.mrf.mxu0
        %v2246 = vadd.f32 %v2176, %v2245
        %v2247 = vpop.f32.mrf.mxu0
        %v2248 = vadd.f32 %v2176, %v2247
        %2249 = vdwg.mxu0
        %s2250 = scalar_lea.vmem %s23, 32
        %v2251 = vld [vmem:[%s2250] sm:$0xf]
        %v2252 = vld [vmem:[%s2250 + $0x4] sm:$0xf]
        %v2253 = vld [vmem:[%s2250 + $0x8] sm:$0xf]
        %v2254 = vld [vmem:[%s2250 + $0xc] sm:$0xf]
        %v2255 = vld [vmem:[%s2250 + $0x10] sm:$0xf]
        %v2256 = vld [vmem:[%s2250 + $0x14] sm:$0xf]
        %v2257 = vld [vmem:[%s2250 + $0x18] sm:$0xf]
        %v2258 = vld [vmem:[%s2250 + $0x1c] sm:$0xf]
        %v2259 = vpack.c.bf16 %v2234, %v2232
        %v2260 = vpack.c.bf16 %v2248, %v2246
        %2262 = vrot.lane.b32.xlu0 %v2259, 64
        %v2263 = vpop.permute.xlu0 %2262
        %v2265 = vsel %vm1500, %v2259, 0
        %v2268 = vsel %vm1500, %v2263, 0
        %2270 = vmatpush.bf16.xpose.msra.mxu0 0
        %2271 = vmatpush.bf16.xpose.msra.mxu0 0
        %2272 = vmatpush.bf16.xpose.msra.mxu0 0
        %2273 = vmatpush.bf16.xpose.msra.mxu0 0
        %2274 = vmatpush.bf16.xpose.msra.mxu0 0
        %2275 = vmatpush.bf16.xpose.msra.mxu0 0
        %2276 = vmatpush.bf16.xpose.msra.mxu0 0
        %2277 = vmatpush.bf16.xpose.msra.mxu0 %v2268
        %2278 = vmatmul.bf16.gmra.mxu0 %v2265
        %v2279 = vpop.f32.mrf.mxu0
        %v2280 = vadd.f32 0.0, %v2279
        %v2281 = vpop.f32.mrf.mxu0
        %v2282 = vadd.f32 0.0, %v2281
        %2283 = vdwg.mxu0
        %v2284 = vsel %vm1500, %v2280, -inf
        %2285 = vmax.xlane.f32.xlu0 %v2284
        %v2286 = vpop.xlane.xlu0 %2285
        %v2287 = vsel %vm1500, %v2282, -inf
        %2288 = vmax.xlane.f32.xlu0 %v2287
        %v2289 = vpop.xlane.xlu0 %2288
        %v2290 = vsub.f32 %v2280, %v2286
        %v2291 = vsub.f32 %v2282, %v2289
        %v2292 = vmul.f32 %v2290, 1.442695
        %v2293 = vpow.pop %v2292
        %v2294 = vmul.f32 %v2291, 1.442695
        %v2295 = vpow.pop %v2294
        %v2296 = vsel %vm1500, %v2293, 0.0
        %2297 = vadd.xlane.f32.xlu0 %v2296
        %v2298 = vpop.xlane.xlu0 %2297
        %v2299 = vsel %vm1500, %v2295, 0.0
        %2300 = vadd.xlane.f32.xlu0 %v2299
        %v2301 = vpop.xlane.xlu0 %2300
        %v2302 = vrcp.pop %v2298
        %v2303 = vmul.f32 %v2298, %v2302
        %v2304 = vsub.f32 1.0, %v2303
        %v2305 = vmul.f32 %v2302, %v2304
        %v2306 = vadd.f32 %v2302, %v2305
        %vm2307 = vweird.f32 %v2298
        %vm2308 = vweird.f32 %v2302
        %vm2309 = vmor %vm2307, %vm2308
        %v2310 = vsel %vm2309, %v2302, %v2306
        %v2311 = vand.u32 2147483647, %v2298
        %vm2312 = vcmp.eq.f32.partialorder %v2311, 8.507059e+37
        %v2313 = vand.u32 %v2298, 2147483648
        %v2314 = vor.u32 1.1754944e-38, %v2313
        %v2315 = vsel %vm2312, %v2314, %v2310
        %v2316 = vmul.f32 %v2293, %v2315
        %v2317 = vrcp.pop %v2301
        %v2318 = vmul.f32 %v2301, %v2317
        %v2319 = vsub.f32 1.0, %v2318
        %v2320 = vmul.f32 %v2317, %v2319
        %v2321 = vadd.f32 %v2317, %v2320
        %vm2322 = vweird.f32 %v2301
        %vm2323 = vweird.f32 %v2317
        %vm2324 = vmor %vm2322, %vm2323
        %v2325 = vsel %vm2324, %v2317, %v2321
        %v2326 = vand.u32 2147483647, %v2301
        %vm2327 = vcmp.eq.f32.partialorder %v2326, 8.507059e+37
        %v2328 = vand.u32 %v2301, 2147483648
        %v2329 = vor.u32 1.1754944e-38, %v2328
        %v2330 = vsel %vm2327, %v2329, %v2325
        %v2331 = vmul.f32 %v2295, %v2330
        %v2332 = vpack.c.bf16 %v2331, %v2316
        %v2334 = vsel %vm1500, %v2332, 0
        %2336 = vmatpush.bf16.msra.mxu0 0
        %2337 = vmatpush.bf16.msra.mxu0 0
        %2338 = vmatpush.bf16.msra.mxu0 0
        %2339 = vmatpush.bf16.msra.mxu0 0
        %2340 = vmatpush.bf16.msra.mxu0 0
        %2341 = vmatpush.bf16.msra.mxu0 0
        %2342 = vmatpush.bf16.msra.mxu0 0
        %2343 = vmatpush.bf16.msra.mxu0 %v2260
        %2344 = vmatmul.bf16.gmra.mxu0 %v2334
        %v2345 = vpop.f32.mrf.mxu0
        %v2346 = vadd.f32 0.0, %v2345
        %v2347 = vpop.f32.mrf.mxu0
        %v2348 = vadd.f32 0.0, %v2347
        %2349 = vdwg.mxu0
        %v2350 = vpack.c.bf16 %v2348, %v2346
        %2351 = vrot.lane.b32.xlu0 %v2259, 112
        %v2352 = vpop.permute.xlu0 %2351
        %2353 = vrot.lane.b32.xlu0 %v2259, 48
        %v2354 = vpop.permute.xlu0 %2353
        %v2356 = vsel %vm1500, %v2352, 0
        %v2359 = vsel %vm1500, %v2354, 0
        %2361 = vmatpush.bf16.xpose.msra.mxu0 0
        %2362 = vmatpush.bf16.xpose.msra.mxu0 0
        %2363 = vmatpush.bf16.xpose.msra.mxu0 0
        %2364 = vmatpush.bf16.xpose.msra.mxu0 0
        %2365 = vmatpush.bf16.xpose.msra.mxu0 0
        %2366 = vmatpush.bf16.xpose.msra.mxu0 0
        %2367 = vmatpush.bf16.xpose.msra.mxu0 0
        %2368 = vmatpush.bf16.xpose.msra.mxu0 %v2359
        %2369 = vmatmul.bf16.gmra.mxu0 %v2356
        %v2370 = vpop.f32.mrf.mxu0
        %v2371 = vadd.f32 0.0, %v2370
        %v2372 = vpop.f32.mrf.mxu0
        %v2373 = vadd.f32 0.0, %v2372
        %2374 = vdwg.mxu0
        %v2375 = vsel %vm1500, %v2371, -inf
        %2376 = vmax.xlane.f32.xlu0 %v2375
        %v2377 = vpop.xlane.xlu0 %2376
        %v2378 = vsel %vm1500, %v2373, -inf
        %2379 = vmax.xlane.f32.xlu0 %v2378
        %v2380 = vpop.xlane.xlu0 %2379
        %v2381 = vsub.f32 %v2371, %v2377
        %v2382 = vsub.f32 %v2373, %v2380
        %v2383 = vmul.f32 %v2381, 1.442695
        %v2384 = vpow.pop %v2383
        %v2385 = vmul.f32 %v2382, 1.442695
        %v2386 = vpow.pop %v2385
        %v2387 = vsel %vm1500, %v2384, 0.0
        %2388 = vadd.xlane.f32.xlu0 %v2387
        %v2389 = vpop.xlane.xlu0 %2388
        %v2390 = vsel %vm1500, %v2386, 0.0
        %2391 = vadd.xlane.f32.xlu0 %v2390
        %v2392 = vpop.xlane.xlu0 %2391
        %v2393 = vrcp.pop %v2389
        %v2394 = vmul.f32 %v2389, %v2393
        %v2395 = vsub.f32 1.0, %v2394
        %v2396 = vmul.f32 %v2393, %v2395
        %v2397 = vadd.f32 %v2393, %v2396
        %vm2398 = vweird.f32 %v2389
        %vm2399 = vweird.f32 %v2393
        %vm2400 = vmor %vm2398, %vm2399
        %v2401 = vsel %vm2400, %v2393, %v2397
        %v2402 = vand.u32 2147483647, %v2389
        %vm2403 = vcmp.eq.f32.partialorder %v2402, 8.507059e+37
        %v2404 = vand.u32 %v2389, 2147483648
        %v2405 = vor.u32 1.1754944e-38, %v2404
        %v2406 = vsel %vm2403, %v2405, %v2401
        %v2407 = vmul.f32 %v2384, %v2406
        %v2408 = vrcp.pop %v2392
        %v2409 = vmul.f32 %v2392, %v2408
        %v2410 = vsub.f32 1.0, %v2409
        %v2411 = vmul.f32 %v2408, %v2410
        %v2412 = vadd.f32 %v2408, %v2411
        %vm2413 = vweird.f32 %v2392
        %vm2414 = vweird.f32 %v2408
        %vm2415 = vmor %vm2413, %vm2414
        %v2416 = vsel %vm2415, %v2408, %v2412
        %v2417 = vand.u32 2147483647, %v2392
        %vm2418 = vcmp.eq.f32.partialorder %v2417, 8.507059e+37
        %v2419 = vand.u32 %v2392, 2147483648
        %v2420 = vor.u32 1.1754944e-38, %v2419
        %v2421 = vsel %vm2418, %v2420, %v2416
        %v2422 = vmul.f32 %v2386, %v2421
        %v2423 = vpack.c.bf16 %v2422, %v2407
        %2425 = vrot.lane.b32.xlu0 %v2260, 112
        %v2426 = vpop.permute.xlu0 %2425
        %v2429 = vsel %vm1500, %v2423, 0
        %2431 = vmatpush.bf16.msra.mxu0 0
        %2432 = vmatpush.bf16.msra.mxu0 0
        %2433 = vmatpush.bf16.msra.mxu0 0
        %2434 = vmatpush.bf16.msra.mxu0 0
        %2435 = vmatpush.bf16.msra.mxu0 0
        %2436 = vmatpush.bf16.msra.mxu0 0
        %2437 = vmatpush.bf16.msra.mxu0 0
        %2438 = vmatpush.bf16.msra.mxu0 %v2426
        %2439 = vmatmul.bf16.gmra.mxu0 %v2429
        %v2440 = vpop.f32.mrf.mxu0
        %v2441 = vadd.f32 0.0, %v2440
        %v2442 = vpop.f32.mrf.mxu0
        %v2443 = vadd.f32 0.0, %v2442
        %2444 = vdwg.mxu0
        %v2445 = vpack.c.bf16 %v2443, %v2441
        %v2448 = vunpack.c.l.b16 %v2253
        %v2449 = vunpack.c.l.b16 %v2254
        %v2450 = vpack.c.b16 %v2449, %v2448
        %v2453 = vsel %vm1500, %v2445, 0
        %2455 = vmatpush.bf16.msra.mxu0 0
        %2456 = vmatpush.bf16.msra.mxu0 0
        %2457 = vmatpush.bf16.msra.mxu0 0
        %2458 = vmatpush.bf16.msra.mxu0 0
        %2459 = vmatpush.bf16.msra.mxu0 0
        %2460 = vmatpush.bf16.msra.mxu0 0
        %2461 = vmatpush.bf16.msra.mxu0 0
        %2462 = vmatpush.bf16.msra.mxu0 %v2450
        %2463 = vmatmul.bf16.gmra.mxu0 %v2453
        %v2464 = vpop.f32.mrf.mxu0
        %v2465 = vadd.f32 0.0, %v2464
        %v2466 = vpop.f32.mrf.mxu0
        %v2467 = vadd.f32 0.0, %v2466
        %2468 = vdwg.mxu0
        %v2471 = vunpack.c.l.b16 %v2251
        %v2472 = vunpack.c.l.b16 %v2252
        %v2473 = vpack.c.b16 %v2472, %v2471
        %v2476 = vsel %vm1500, %v2350, 0
        %2478 = vmatpush.bf16.msra.mxu0 0
        %2479 = vmatpush.bf16.msra.mxu0 0
        %2480 = vmatpush.bf16.msra.mxu0 0
        %2481 = vmatpush.bf16.msra.mxu0 0
        %2482 = vmatpush.bf16.msra.mxu0 0
        %2483 = vmatpush.bf16.msra.mxu0 0
        %2484 = vmatpush.bf16.msra.mxu0 0
        %2485 = vmatpush.bf16.msra.mxu0 %v2473
        %2486 = vmatmul.bf16.gmra.mxu0 %v2476
        %v2487 = vpop.f32.mrf.mxu0
        %v2488 = vadd.f32 %v2465, %v2487
        %v2489 = vpop.f32.mrf.mxu0
        %v2490 = vadd.f32 %v2467, %v2489
        %2491 = vdwg.mxu0
        %2492 = vrot.lane.b32.xlu0 %v2259, 96
        %v2493 = vpop.permute.xlu0 %2492
        %2494 = vrot.lane.b32.xlu0 %v2259, 32
        %v2495 = vpop.permute.xlu0 %2494
        %v2497 = vsel %vm1500, %v2493, 0
        %v2500 = vsel %vm1500, %v2495, 0
        %2502 = vmatpush.bf16.xpose.msra.mxu0 0
        %2503 = vmatpush.bf16.xpose.msra.mxu0 0
        %2504 = vmatpush.bf16.xpose.msra.mxu0 0
        %2505 = vmatpush.bf16.xpose.msra.mxu0 0
        %2506 = vmatpush.bf16.xpose.msra.mxu0 0
        %2507 = vmatpush.bf16.xpose.msra.mxu0 0
        %2508 = vmatpush.bf16.xpose.msra.mxu0 0
        %2509 = vmatpush.bf16.xpose.msra.mxu0 %v2500
        %2510 = vmatmul.bf16.gmra.mxu0 %v2497
        %v2511 = vpop.f32.mrf.mxu0
        %v2512 = vadd.f32 0.0, %v2511
        %v2513 = vpop.f32.mrf.mxu0
        %v2514 = vadd.f32 0.0, %v2513
        %2515 = vdwg.mxu0
        %v2516 = vsel %vm1500, %v2512, -inf
        %2517 = vmax.xlane.f32.xlu0 %v2516
        %v2518 = vpop.xlane.xlu0 %2517
        %v2519 = vsel %vm1500, %v2514, -inf
        %2520 = vmax.xlane.f32.xlu0 %v2519
        %v2521 = vpop.xlane.xlu0 %2520
        %v2522 = vsub.f32 %v2512, %v2518
        %v2523 = vsub.f32 %v2514, %v2521
        %v2524 = vmul.f32 %v2522, 1.442695
        %v2525 = vpow.pop %v2524
        %v2526 = vmul.f32 %v2523, 1.442695
        %v2527 = vpow.pop %v2526
        %v2528 = vsel %vm1500, %v2525, 0.0
        %2529 = vadd.xlane.f32.xlu0 %v2528
        %v2530 = vpop.xlane.xlu0 %2529
        %v2531 = vsel %vm1500, %v2527, 0.0
        %2532 = vadd.xlane.f32.xlu0 %v2531
        %v2533 = vpop.xlane.xlu0 %2532
        %v2534 = vrcp.pop %v2530
        %v2535 = vmul.f32 %v2530, %v2534
        %v2536 = vsub.f32 1.0, %v2535
        %v2537 = vmul.f32 %v2534, %v2536
        %v2538 = vadd.f32 %v2534, %v2537
        %vm2539 = vweird.f32 %v2530
        %vm2540 = vweird.f32 %v2534
        %vm2541 = vmor %vm2539, %vm2540
        %v2542 = vsel %vm2541, %v2534, %v2538
        %v2543 = vand.u32 2147483647, %v2530
        %vm2544 = vcmp.eq.f32.partialorder %v2543, 8.507059e+37
        %v2545 = vand.u32 %v2530, 2147483648
        %v2546 = vor.u32 1.1754944e-38, %v2545
        %v2547 = vsel %vm2544, %v2546, %v2542
        %v2548 = vmul.f32 %v2525, %v2547
        %v2549 = vrcp.pop %v2533
        %v2550 = vmul.f32 %v2533, %v2549
        %v2551 = vsub.f32 1.0, %v2550
        %v2552 = vmul.f32 %v2549, %v2551
        %v2553 = vadd.f32 %v2549, %v2552
        %vm2554 = vweird.f32 %v2533
        %vm2555 = vweird.f32 %v2549
        %vm2556 = vmor %vm2554, %vm2555
        %v2557 = vsel %vm2556, %v2549, %v2553
        %v2558 = vand.u32 2147483647, %v2533
        %vm2559 = vcmp.eq.f32.partialorder %v2558, 8.507059e+37
        %v2560 = vand.u32 %v2533, 2147483648
        %v2561 = vor.u32 1.1754944e-38, %v2560
        %v2562 = vsel %vm2559, %v2561, %v2557
        %v2563 = vmul.f32 %v2527, %v2562
        %v2564 = vpack.c.bf16 %v2563, %v2548
        %2565 = vrot.lane.b32.xlu0 %v2260, 96
        %v2566 = vpop.permute.xlu0 %2565
        %v2569 = vsel %vm1500, %v2564, 0
        %2571 = vmatpush.bf16.msra.mxu0 0
        %2572 = vmatpush.bf16.msra.mxu0 0
        %2573 = vmatpush.bf16.msra.mxu0 0
        %2574 = vmatpush.bf16.msra.mxu0 0
        %2575 = vmatpush.bf16.msra.mxu0 0
        %2576 = vmatpush.bf16.msra.mxu0 0
        %2577 = vmatpush.bf16.msra.mxu0 0
        %2578 = vmatpush.bf16.msra.mxu0 %v2566
        %2579 = vmatmul.bf16.gmra.mxu0 %v2569
        %v2580 = vpop.f32.mrf.mxu0
        %v2581 = vadd.f32 0.0, %v2580
        %v2582 = vpop.f32.mrf.mxu0
        %v2583 = vadd.f32 0.0, %v2582
        %2584 = vdwg.mxu0
        %v2585 = vpack.c.bf16 %v2583, %v2581
        %v2588 = vunpack.c.l.b16 %v2255
        %v2589 = vunpack.c.l.b16 %v2256
        %v2590 = vpack.c.b16 %v2589, %v2588
        %v2593 = vsel %vm1500, %v2585, 0
        %2595 = vmatpush.bf16.msra.mxu0 0
        %2596 = vmatpush.bf16.msra.mxu0 0
        %2597 = vmatpush.bf16.msra.mxu0 0
        %2598 = vmatpush.bf16.msra.mxu0 0
        %2599 = vmatpush.bf16.msra.mxu0 0
        %2600 = vmatpush.bf16.msra.mxu0 0
        %2601 = vmatpush.bf16.msra.mxu0 0
        %2602 = vmatpush.bf16.msra.mxu0 %v2590
        %2603 = vmatmul.bf16.gmra.mxu0 %v2593
        %v2604 = vpop.f32.mrf.mxu0
        %v2605 = vadd.f32 0.0, %v2604
        %v2606 = vpop.f32.mrf.mxu0
        %v2607 = vadd.f32 0.0, %v2606
        %2608 = vdwg.mxu0
        %v2609 = vadd.f32 %v2488, %v2605
        %v2610 = vadd.f32 %v2490, %v2607
        %2611 = vrot.lane.b32.xlu0 %v2259, 80
        %v2612 = vpop.permute.xlu0 %2611
        %2613 = vrot.lane.b32.xlu0 %v2259, 16
        %v2614 = vpop.permute.xlu0 %2613
        %v2616 = vsel %vm1500, %v2612, 0
        %v2619 = vsel %vm1500, %v2614, 0
        %2621 = vmatpush.bf16.xpose.msra.mxu0 0
        %2622 = vmatpush.bf16.xpose.msra.mxu0 0
        %2623 = vmatpush.bf16.xpose.msra.mxu0 0
        %2624 = vmatpush.bf16.xpose.msra.mxu0 0
        %2625 = vmatpush.bf16.xpose.msra.mxu0 0
        %2626 = vmatpush.bf16.xpose.msra.mxu0 0
        %2627 = vmatpush.bf16.xpose.msra.mxu0 0
        %2628 = vmatpush.bf16.xpose.msra.mxu0 %v2619
        %2629 = vmatmul.bf16.gmra.mxu0 %v2616
        %v2630 = vpop.f32.mrf.mxu0
        %v2631 = vadd.f32 0.0, %v2630
        %v2632 = vpop.f32.mrf.mxu0
        %v2633 = vadd.f32 0.0, %v2632
        %2634 = vdwg.mxu0
        %v2635 = vsel %vm1500, %v2631, -inf
        %2636 = vmax.xlane.f32.xlu0 %v2635
        %v2637 = vpop.xlane.xlu0 %2636
        %v2638 = vsel %vm1500, %v2633, -inf
        %2639 = vmax.xlane.f32.xlu0 %v2638
        %v2640 = vpop.xlane.xlu0 %2639
        %v2641 = vsub.f32 %v2631, %v2637
        %v2642 = vsub.f32 %v2633, %v2640
        %v2643 = vmul.f32 %v2641, 1.442695
        %v2644 = vpow.pop %v2643
        %v2645 = vmul.f32 %v2642, 1.442695
        %v2646 = vpow.pop %v2645
        %v2647 = vsel %vm1500, %v2644, 0.0
        %2648 = vadd.xlane.f32.xlu0 %v2647
        %v2649 = vpop.xlane.xlu0 %2648
        %v2650 = vsel %vm1500, %v2646, 0.0
        %2651 = vadd.xlane.f32.xlu0 %v2650
        %v2652 = vpop.xlane.xlu0 %2651
        %v2653 = vrcp.pop %v2649
        %v2654 = vmul.f32 %v2649, %v2653
        %v2655 = vsub.f32 1.0, %v2654
        %v2656 = vmul.f32 %v2653, %v2655
        %v2657 = vadd.f32 %v2653, %v2656
        %vm2658 = vweird.f32 %v2649
        %vm2659 = vweird.f32 %v2653
        %vm2660 = vmor %vm2658, %vm2659
        %v2661 = vsel %vm2660, %v2653, %v2657
        %v2662 = vand.u32 2147483647, %v2649
        %vm2663 = vcmp.eq.f32.partialorder %v2662, 8.507059e+37
        %v2664 = vand.u32 %v2649, 2147483648
        %v2665 = vor.u32 1.1754944e-38, %v2664
        %v2666 = vsel %vm2663, %v2665, %v2661
        %v2667 = vmul.f32 %v2644, %v2666
        %v2668 = vrcp.pop %v2652
        %v2669 = vmul.f32 %v2652, %v2668
        %v2670 = vsub.f32 1.0, %v2669
        %v2671 = vmul.f32 %v2668, %v2670
        %v2672 = vadd.f32 %v2668, %v2671
        %vm2673 = vweird.f32 %v2652
        %vm2674 = vweird.f32 %v2668
        %vm2675 = vmor %vm2673, %vm2674
        %v2676 = vsel %vm2675, %v2668, %v2672
        %v2677 = vand.u32 2147483647, %v2652
        %vm2678 = vcmp.eq.f32.partialorder %v2677, 8.507059e+37
        %v2679 = vand.u32 %v2652, 2147483648
        %v2680 = vor.u32 1.1754944e-38, %v2679
        %v2681 = vsel %vm2678, %v2680, %v2676
        %v2682 = vmul.f32 %v2646, %v2681
        %v2683 = vpack.c.bf16 %v2682, %v2667
        %2684 = vrot.lane.b32.xlu0 %v2260, 80
        %v2685 = vpop.permute.xlu0 %2684
        %v2688 = vsel %vm1500, %v2683, 0
        %2690 = vmatpush.bf16.msra.mxu0 0
        %2691 = vmatpush.bf16.msra.mxu0 0
        %2692 = vmatpush.bf16.msra.mxu0 0
        %2693 = vmatpush.bf16.msra.mxu0 0
        %2694 = vmatpush.bf16.msra.mxu0 0
        %2695 = vmatpush.bf16.msra.mxu0 0
        %2696 = vmatpush.bf16.msra.mxu0 0
        %2697 = vmatpush.bf16.msra.mxu0 %v2685
        %2698 = vmatmul.bf16.gmra.mxu0 %v2688
        %v2699 = vpop.f32.mrf.mxu0
        %v2700 = vadd.f32 0.0, %v2699
        %v2701 = vpop.f32.mrf.mxu0
        %v2702 = vadd.f32 0.0, %v2701
        %2703 = vdwg.mxu0
        %v2704 = vpack.c.bf16 %v2702, %v2700
        %v2707 = vunpack.c.l.b16 %v2257
        %v2708 = vunpack.c.l.b16 %v2258
        %v2709 = vpack.c.b16 %v2708, %v2707
        %v2712 = vsel %vm1500, %v2704, 0
        %2714 = vmatpush.bf16.msra.mxu0 0
        %2715 = vmatpush.bf16.msra.mxu0 0
        %2716 = vmatpush.bf16.msra.mxu0 0
        %2717 = vmatpush.bf16.msra.mxu0 0
        %2718 = vmatpush.bf16.msra.mxu0 0
        %2719 = vmatpush.bf16.msra.mxu0 0
        %2720 = vmatpush.bf16.msra.mxu0 0
        %2721 = vmatpush.bf16.msra.mxu0 %v2709
        %2722 = vmatmul.bf16.gmra.mxu0 %v2712
        %v2723 = vpop.f32.mrf.mxu0
        %v2724 = vadd.f32 0.0, %v2723
        %v2725 = vpop.f32.mrf.mxu0
        %v2726 = vadd.f32 0.0, %v2725
        %2727 = vdwg.mxu0
        %v2728 = vadd.f32 %v2609, %v2724
        %v2729 = vadd.f32 %v2610, %v2726
        %s2730 = scalar_lea.vmem %s25, 1
        %v2731 = vld [vmem:[%s2730] sm:$0x1]
        %v2733 = vperm.slane %v2731, 0
        %v2735 = vadd.f32 %v2728, %v2733
        %v2736 = vadd.f32 %v2729, %v2733
        %s2737 = scalar_lea.vmem %s27, 32
        %v2738 = vld [vmem:[%s2737] sm:$0xf]
        %v2739 = vld [vmem:[%s2737 + $0x4] sm:$0xf]
        %v2740 = vld [vmem:[%s2737 + $0x8] sm:$0xf]
        %v2741 = vld [vmem:[%s2737 + $0xc] sm:$0xf]
        %v2742 = vld [vmem:[%s2737 + $0x10] sm:$0xf]
        %v2743 = vld [vmem:[%s2737 + $0x14] sm:$0xf]
        %v2744 = vld [vmem:[%s2737 + $0x18] sm:$0xf]
        %v2745 = vld [vmem:[%s2737 + $0x1c] sm:$0xf]
        %s2746 = scalar_lea.vmem [#allocation13], 32
        %v2747 = vld [vmem:[%s2746] sm:$0xf]
        %v2748 = vld [vmem:[%s2746 + $0x4] sm:$0xf]
        %v2749 = vld [vmem:[%s2746 + $0x8] sm:$0xf]
        %v2750 = vld [vmem:[%s2746 + $0xc] sm:$0xf]
        %v2751 = vld [vmem:[%s2746 + $0x10] sm:$0xf]
        %v2752 = vld [vmem:[%s2746 + $0x14] sm:$0xf]
        %v2753 = vld [vmem:[%s2746 + $0x18] sm:$0xf]
        %v2754 = vld [vmem:[%s2746 + $0x1c] sm:$0xf]
        %v2755 = vpack.c.bf16 %v2736, %v2735
        %v2764 = vunpack.c.l.b16 %v2747
        %v2765 = vunpack.c.l.b16 %v2748
        %v2766 = vunpack.c.l.b16 %v2749
        %v2767 = vunpack.c.l.b16 %v2750
        %v2768 = vunpack.c.l.b16 %v2751
        %v2769 = vunpack.c.l.b16 %v2752
        %v2770 = vunpack.c.l.b16 %v2753
        %v2771 = vunpack.c.l.b16 %v2754
        %v2772 = vpack.c.b16 %v2765, %v2764
        %v2773 = vpack.c.b16 %v2767, %v2766
        %v2774 = vpack.c.b16 %v2769, %v2768
        %v2775 = vpack.c.b16 %v2771, %v2770
        %v2781 = vsel %vm1252, %v2755, 0
        %2783 = vmatpush.bf16.msra.mxu0 0
        %2784 = vmatpush.bf16.msra.mxu0 0
        %2785 = vmatpush.bf16.msra.mxu0 0
        %2786 = vmatpush.bf16.msra.mxu0 0
        %2787 = vmatpush.bf16.msra.mxu0 %v2775
        %2788 = vmatpush.bf16.msra.mxu0 %v2774
        %2789 = vmatpush.bf16.msra.mxu0 %v2773
        %2790 = vmatpush.bf16.msra.mxu0 %v2772
        %2791 = vmatmul.bf16.gmra.mxu0 %v2781
        %v2792 = vpop.f32.mrf.mxu0
        %v2793 = vadd.f32 0.0, %v2792
        %v2794 = vpop.f32.mrf.mxu0
        %v2795 = vadd.f32 0.0, %v2794
        %2796 = vdwg.mxu0
        %v2805 = vunpack.c.l.b16 %v2738
        %v2806 = vunpack.c.l.b16 %v2739
        %v2807 = vunpack.c.l.b16 %v2740
        %v2808 = vunpack.c.l.b16 %v2741
        %v2809 = vunpack.c.l.b16 %v2742
        %v2810 = vunpack.c.l.b16 %v2743
        %v2811 = vunpack.c.l.b16 %v2744
        %v2812 = vunpack.c.l.b16 %v2745
        %v2813 = vpack.c.b16 %v2806, %v2805
        %v2814 = vpack.c.b16 %v2808, %v2807
        %v2815 = vpack.c.b16 %v2810, %v2809
        %v2816 = vpack.c.b16 %v2812, %v2811
        %2821 = vmatpush.bf16.msra.mxu0 0
        %2822 = vmatpush.bf16.msra.mxu0 0
        %2823 = vmatpush.bf16.msra.mxu0 0
        %2824 = vmatpush.bf16.msra.mxu0 0
        %2825 = vmatpush.bf16.msra.mxu0 %v2816
        %2826 = vmatpush.bf16.msra.mxu0 %v2815
        %2827 = vmatpush.bf16.msra.mxu0 %v2814
        %2828 = vmatpush.bf16.msra.mxu0 %v2813
        %2829 = vmatmul.bf16.gmra.mxu0 %v2220
        %v2830 = vpop.f32.mrf.mxu0
        %v2831 = vadd.f32 %v2793, %v2830
        %v2832 = vpop.f32.mrf.mxu0
        %v2833 = vadd.f32 %v2795, %v2832
        %2834 = vdwg.mxu0
        %s2835 = scalar_lea.vmem [#allocation15], 1
        %v2836 = vld [vmem:[%s2835] sm:$0x1]
        %v2838 = vperm.slane %v2836, 0
        %v2840 = vadd.f32 %v2831, %v2838
        %v2841 = vadd.f32 %v2833, %v2838
        %v2842 = vmax.f32 %v2840, 0.0
        %v2843 = vmax.f32 %v2841, 0.0
        %s2844 = scalar_lea.vmem %s33, 64
        %v2845 = vld [vmem:[%s2844] sm:$0xf]
        %v2846 = vld [vmem:[%s2844 + $0x4] sm:$0xf]
        %v2847 = vld [vmem:[%s2844 + $0x8] sm:$0xf]
        %v2848 = vld [vmem:[%s2844 + $0xc] sm:$0xf]
        %v2849 = vld [vmem:[%s2844 + $0x10] sm:$0xf]
        %v2850 = vld [vmem:[%s2844 + $0x14] sm:$0xf]
        %v2851 = vld [vmem:[%s2844 + $0x18] sm:$0xf]
        %v2852 = vld [vmem:[%s2844 + $0x1c] sm:$0xf]
        %v2853 = vld [vmem:[%s2844 + $0x20] sm:$0xf]
        %v2854 = vld [vmem:[%s2844 + $0x24] sm:$0xf]
        %v2855 = vld [vmem:[%s2844 + $0x28] sm:$0xf]
        %v2856 = vld [vmem:[%s2844 + $0x2c] sm:$0xf]
        %v2857 = vld [vmem:[%s2844 + $0x30] sm:$0xf]
        %v2858 = vld [vmem:[%s2844 + $0x34] sm:$0xf]
        %v2859 = vld [vmem:[%s2844 + $0x38] sm:$0xf]
        %v2860 = vld [vmem:[%s2844 + $0x3c] sm:$0xf]
        %s2861 = scalar_lea.vmem [#allocation16], 1
        %v2862 = vld [vmem:[%s2861] sm:$0x1]
        %v2863 = vpack.c.bf16 %v2843, %v2842
        %v2865 = vperm.slane %v2862, 0
        %v2883 = vunpack.c.l.b16 %v2845
        %v2884 = vunpack.c.l.b16 %v2846
        %v2885 = vunpack.c.l.b16 %v2847
        %v2886 = vunpack.c.l.b16 %v2848
        %v2887 = vunpack.c.l.b16 %v2849
        %v2888 = vunpack.c.l.b16 %v2850
        %v2889 = vunpack.c.l.b16 %v2851
        %v2890 = vunpack.c.l.b16 %v2852
        %v2891 = vunpack.c.l.b16 %v2853
        %v2892 = vunpack.c.l.b16 %v2854
        %v2893 = vunpack.c.l.b16 %v2855
        %v2894 = vunpack.c.l.b16 %v2856
        %v2895 = vunpack.c.l.b16 %v2857
        %v2896 = vunpack.c.l.b16 %v2858
        %v2897 = vunpack.c.l.b16 %v2859
        %v2898 = vunpack.c.l.b16 %v2860
        %v2899 = vpack.c.b16 %v2884, %v2883
        %v2900 = vpack.c.b16 %v2886, %v2885
        %v2901 = vpack.c.b16 %v2888, %v2887
        %v2902 = vpack.c.b16 %v2890, %v2889
        %v2903 = vpack.c.b16 %v2892, %v2891
        %v2904 = vpack.c.b16 %v2894, %v2893
        %v2905 = vpack.c.b16 %v2896, %v2895
        %v2906 = vpack.c.b16 %v2898, %v2897
        %2915 = vmatpush.bf16.msra.mxu0 %v2906
        %2916 = vmatpush.bf16.msra.mxu0 %v2905
        %2917 = vmatpush.bf16.msra.mxu0 %v2904
        %2918 = vmatpush.bf16.msra.mxu0 %v2903
        %2919 = vmatpush.bf16.msra.mxu0 %v2902
        %2920 = vmatpush.bf16.msra.mxu0 %v2901
        %2921 = vmatpush.bf16.msra.mxu0 %v2900
        %2922 = vmatpush.bf16.msra.mxu0 %v2899
        %2923 = vmatmul.bf16.gmra.mxu0 %v2863
        %v2924 = vpop.f32.mrf.mxu0
        %v2925 = vadd.f32 %v2865, %v2924
        %v2926 = vpop.f32.mrf.mxu0
        %v2927 = vadd.f32 %v2865, %v2926
        %2928 = vdwg.mxu0
        %v2929 = vadd.f32 %v2160, %v2925
        %v2930 = vadd.f32 %v2161, %v2927
        %s2931 = scalar_lea.vmem %s19, 128
        %v2932 = vld [vmem:[%s2931] sm:$0xff]
        %v2933 = vld [vmem:[%s2931 + $0x8] sm:$0xff]
        %v2934 = vld [vmem:[%s2931 + $0x10] sm:$0xff]
        %v2935 = vld [vmem:[%s2931 + $0x18] sm:$0xff]
        %v2936 = vld [vmem:[%s2931 + $0x20] sm:$0xff]
        %v2937 = vld [vmem:[%s2931 + $0x28] sm:$0xff]
        %v2938 = vld [vmem:[%s2931 + $0x30] sm:$0xff]
        %v2939 = vld [vmem:[%s2931 + $0x38] sm:$0xff]
        %s2940 = scalar_lea.vmem [#allocation12], 4
        %v2941 = vld [vmem:[%s2940] sm:$0x3]
        %v2942 = vpack.c.bf16 %v2930, %v2929
        %v2944 = vperm.slane %v2941, 0
        %v2945 = vperm.slane %v2941, 1
        %v2956 = vunpack.c.l.b16 %v2932
        %v2957 = vunpack.c.h.b16 %v2932
        %v2958 = vunpack.c.l.b16 %v2933
        %v2959 = vunpack.c.h.b16 %v2933
        %v2960 = vunpack.c.l.b16 %v2934
        %v2961 = vunpack.c.h.b16 %v2934
        %v2962 = vunpack.c.l.b16 %v2935
        %v2963 = vunpack.c.h.b16 %v2935
        %v2964 = vunpack.c.l.b16 %v2936
        %v2965 = vunpack.c.h.b16 %v2936
        %v2966 = vunpack.c.l.b16 %v2937
        %v2967 = vunpack.c.h.b16 %v2937
        %v2968 = vunpack.c.l.b16 %v2938
        %v2969 = vunpack.c.h.b16 %v2938
        %v2970 = vunpack.c.l.b16 %v2939
        %v2971 = vunpack.c.h.b16 %v2939
        %v2972 = vpack.c.b16 %v2958, %v2956
        %v2973 = vpack.c.b16 %v2959, %v2957
        %v2974 = vpack.c.b16 %v2962, %v2960
        %v2975 = vpack.c.b16 %v2963, %v2961
        %v2976 = vpack.c.b16 %v2966, %v2964
        %v2977 = vpack.c.b16 %v2967, %v2965
        %v2978 = vpack.c.b16 %v2970, %v2968
        %v2979 = vpack.c.b16 %v2971, %v2969
        %v2989 = vsel %vm1252, %v2942, 0
        %2991 = vmatpush.bf16.msra.mxu0 0
        %2992 = vmatpush.bf16.msra.mxu0 0
        %2993 = vmatpush.bf16.msra.mxu0 0
        %2994 = vmatpush.bf16.msra.mxu0 0
        %2995 = vmatpush.bf16.msra.mxu0 %v2978
        %2996 = vmatpush.bf16.msra.mxu0 %v2976
        %2997 = vmatpush.bf16.msra.mxu0 %v2974
        %2998 = vmatpush.bf16.msra.mxu0 %v2972
        %2999 = vmatmul.bf16.gmra.mxu0 %v2989
        %v3000 = vpop.f32.mrf.mxu0
        %v3001 = vadd.f32 %v2944, %v3000
        %v3002 = vpop.f32.mrf.mxu0
        %v3003 = vadd.f32 %v2944, %v3002
        %3004 = vdwg.mxu0
        %3005 = vmatpush.bf16.msra.mxu0 0
        %3006 = vmatpush.bf16.msra.mxu0 0
        %3007 = vmatpush.bf16.msra.mxu0 0
        %3008 = vmatpush.bf16.msra.mxu0 0
        %3009 = vmatpush.bf16.msra.mxu0 %v2979
        %3010 = vmatpush.bf16.msra.mxu0 %v2977
        %3011 = vmatpush.bf16.msra.mxu0 %v2975
        %3012 = vmatpush.bf16.msra.mxu0 %v2973
        %3013 = vmatmul.bf16.gmra.mxu0 %v2989
        %v3014 = vpop.f32.mrf.mxu0
        %v3015 = vadd.f32 %v2945, %v3014
        %v3016 = vpop.f32.mrf.mxu0
        %v3017 = vadd.f32 %v2945, %v3016
        %3018 = vdwg.mxu0
        %s3019 = scalar_lea.vmem %s23, 64
        %v3020 = vld [vmem:[%s3019] sm:$0xf]
        %v3021 = vld [vmem:[%s3019 + $0x4] sm:$0xf]
        %v3022 = vld [vmem:[%s3019 + $0x8] sm:$0xf]
        %v3023 = vld [vmem:[%s3019 + $0xc] sm:$0xf]
        %v3024 = vld [vmem:[%s3019 + $0x10] sm:$0xf]
        %v3025 = vld [vmem:[%s3019 + $0x14] sm:$0xf]
        %v3026 = vld [vmem:[%s3019 + $0x18] sm:$0xf]
        %v3027 = vld [vmem:[%s3019 + $0x1c] sm:$0xf]
        %v3028 = vpack.c.bf16 %v3003, %v3001
        %v3029 = vpack.c.bf16 %v3017, %v3015
        %3031 = vrot.lane.b32.xlu0 %v3028, 64
        %v3032 = vpop.permute.xlu0 %3031
        %v3034 = vsel %vm1500, %v3028, 0
        %v3037 = vsel %vm1500, %v3032, 0
        %3039 = vmatpush.bf16.xpose.msra.mxu0 0
        %3040 = vmatpush.bf16.xpose.msra.mxu0 0
        %3041 = vmatpush.bf16.xpose.msra.mxu0 0
        %3042 = vmatpush.bf16.xpose.msra.mxu0 0
        %3043 = vmatpush.bf16.xpose.msra.mxu0 0
        %3044 = vmatpush.bf16.xpose.msra.mxu0 0
        %3045 = vmatpush.bf16.xpose.msra.mxu0 0
        %3046 = vmatpush.bf16.xpose.msra.mxu0 %v3037
        %3047 = vmatmul.bf16.gmra.mxu0 %v3034
        %v3048 = vpop.f32.mrf.mxu0
        %v3049 = vadd.f32 0.0, %v3048
        %v3050 = vpop.f32.mrf.mxu0
        %v3051 = vadd.f32 0.0, %v3050
        %3052 = vdwg.mxu0
        %v3053 = vsel %vm1500, %v3049, -inf
        %3054 = vmax.xlane.f32.xlu0 %v3053
        %v3055 = vpop.xlane.xlu0 %3054
        %v3056 = vsel %vm1500, %v3051, -inf
        %3057 = vmax.xlane.f32.xlu0 %v3056
        %v3058 = vpop.xlane.xlu0 %3057
        %v3059 = vsub.f32 %v3049, %v3055
        %v3060 = vsub.f32 %v3051, %v3058
        %v3061 = vmul.f32 %v3059, 1.442695
        %v3062 = vpow.pop %v3061
        %v3063 = vmul.f32 %v3060, 1.442695
        %v3064 = vpow.pop %v3063
        %v3065 = vsel %vm1500, %v3062, 0.0
        %3066 = vadd.xlane.f32.xlu0 %v3065
        %v3067 = vpop.xlane.xlu0 %3066
        %v3068 = vsel %vm1500, %v3064, 0.0
        %3069 = vadd.xlane.f32.xlu0 %v3068
        %v3070 = vpop.xlane.xlu0 %3069
        %v3071 = vrcp.pop %v3067
        %v3072 = vmul.f32 %v3067, %v3071
        %v3073 = vsub.f32 1.0, %v3072
        %v3074 = vmul.f32 %v3071, %v3073
        %v3075 = vadd.f32 %v3071, %v3074
        %vm3076 = vweird.f32 %v3067
        %vm3077 = vweird.f32 %v3071
        %vm3078 = vmor %vm3076, %vm3077
        %v3079 = vsel %vm3078, %v3071, %v3075
        %v3080 = vand.u32 2147483647, %v3067
        %vm3081 = vcmp.eq.f32.partialorder %v3080, 8.507059e+37
        %v3082 = vand.u32 %v3067, 2147483648
        %v3083 = vor.u32 1.1754944e-38, %v3082
        %v3084 = vsel %vm3081, %v3083, %v3079
        %v3085 = vmul.f32 %v3062, %v3084
        %v3086 = vrcp.pop %v3070
        %v3087 = vmul.f32 %v3070, %v3086
        %v3088 = vsub.f32 1.0, %v3087
        %v3089 = vmul.f32 %v3086, %v3088
        %v3090 = vadd.f32 %v3086, %v3089
        %vm3091 = vweird.f32 %v3070
        %vm3092 = vweird.f32 %v3086
        %vm3093 = vmor %vm3091, %vm3092
        %v3094 = vsel %vm3093, %v3086, %v3090
        %v3095 = vand.u32 2147483647, %v3070
        %vm3096 = vcmp.eq.f32.partialorder %v3095, 8.507059e+37
        %v3097 = vand.u32 %v3070, 2147483648
        %v3098 = vor.u32 1.1754944e-38, %v3097
        %v3099 = vsel %vm3096, %v3098, %v3094
        %v3100 = vmul.f32 %v3064, %v3099
        %v3101 = vpack.c.bf16 %v3100, %v3085
        %v3103 = vsel %vm1500, %v3101, 0
        %3105 = vmatpush.bf16.msra.mxu0 0
        %3106 = vmatpush.bf16.msra.mxu0 0
        %3107 = vmatpush.bf16.msra.mxu0 0
        %3108 = vmatpush.bf16.msra.mxu0 0
        %3109 = vmatpush.bf16.msra.mxu0 0
        %3110 = vmatpush.bf16.msra.mxu0 0
        %3111 = vmatpush.bf16.msra.mxu0 0
        %3112 = vmatpush.bf16.msra.mxu0 %v3029
        %3113 = vmatmul.bf16.gmra.mxu0 %v3103
        %v3114 = vpop.f32.mrf.mxu0
        %v3115 = vadd.f32 0.0, %v3114
        %v3116 = vpop.f32.mrf.mxu0
        %v3117 = vadd.f32 0.0, %v3116
        %3118 = vdwg.mxu0
        %v3119 = vpack.c.bf16 %v3117, %v3115
        %3120 = vrot.lane.b32.xlu0 %v3028, 112
        %v3121 = vpop.permute.xlu0 %3120
        %3122 = vrot.lane.b32.xlu0 %v3028, 48
        %v3123 = vpop.permute.xlu0 %3122
        %v3125 = vsel %vm1500, %v3121, 0
        %v3128 = vsel %vm1500, %v3123, 0
        %3130 = vmatpush.bf16.xpose.msra.mxu0 0
        %3131 = vmatpush.bf16.xpose.msra.mxu0 0
        %3132 = vmatpush.bf16.xpose.msra.mxu0 0
        %3133 = vmatpush.bf16.xpose.msra.mxu0 0
        %3134 = vmatpush.bf16.xpose.msra.mxu0 0
        %3135 = vmatpush.bf16.xpose.msra.mxu0 0
        %3136 = vmatpush.bf16.xpose.msra.mxu0 0
        %3137 = vmatpush.bf16.xpose.msra.mxu0 %v3128
        %3138 = vmatmul.bf16.gmra.mxu0 %v3125
        %v3139 = vpop.f32.mrf.mxu0
        %v3140 = vadd.f32 0.0, %v3139
        %v3141 = vpop.f32.mrf.mxu0
        %v3142 = vadd.f32 0.0, %v3141
        %3143 = vdwg.mxu0
        %v3144 = vsel %vm1500, %v3140, -inf
        %3145 = vmax.xlane.f32.xlu0 %v3144
        %v3146 = vpop.xlane.xlu0 %3145
        %v3147 = vsel %vm1500, %v3142, -inf
        %3148 = vmax.xlane.f32.xlu0 %v3147
        %v3149 = vpop.xlane.xlu0 %3148
        %v3150 = vsub.f32 %v3140, %v3146
        %v3151 = vsub.f32 %v3142, %v3149
        %v3152 = vmul.f32 %v3150, 1.442695
        %v3153 = vpow.pop %v3152
        %v3154 = vmul.f32 %v3151, 1.442695
        %v3155 = vpow.pop %v3154
        %v3156 = vsel %vm1500, %v3153, 0.0
        %3157 = vadd.xlane.f32.xlu0 %v3156
        %v3158 = vpop.xlane.xlu0 %3157
        %v3159 = vsel %vm1500, %v3155, 0.0
        %3160 = vadd.xlane.f32.xlu0 %v3159
        %v3161 = vpop.xlane.xlu0 %3160
        %v3162 = vrcp.pop %v3158
        %v3163 = vmul.f32 %v3158, %v3162
        %v3164 = vsub.f32 1.0, %v3163
        %v3165 = vmul.f32 %v3162, %v3164
        %v3166 = vadd.f32 %v3162, %v3165
        %vm3167 = vweird.f32 %v3158
        %vm3168 = vweird.f32 %v3162
        %vm3169 = vmor %vm3167, %vm3168
        %v3170 = vsel %vm3169, %v3162, %v3166
        %v3171 = vand.u32 2147483647, %v3158
        %vm3172 = vcmp.eq.f32.partialorder %v3171, 8.507059e+37
        %v3173 = vand.u32 %v3158, 2147483648
        %v3174 = vor.u32 1.1754944e-38, %v3173
        %v3175 = vsel %vm3172, %v3174, %v3170
        %v3176 = vmul.f32 %v3153, %v3175
        %v3177 = vrcp.pop %v3161
        %v3178 = vmul.f32 %v3161, %v3177
        %v3179 = vsub.f32 1.0, %v3178
        %v3180 = vmul.f32 %v3177, %v3179
        %v3181 = vadd.f32 %v3177, %v3180
        %vm3182 = vweird.f32 %v3161
        %vm3183 = vweird.f32 %v3177
        %vm3184 = vmor %vm3182, %vm3183
        %v3185 = vsel %vm3184, %v3177, %v3181
        %v3186 = vand.u32 2147483647, %v3161
        %vm3187 = vcmp.eq.f32.partialorder %v3186, 8.507059e+37
        %v3188 = vand.u32 %v3161, 2147483648
        %v3189 = vor.u32 1.1754944e-38, %v3188
        %v3190 = vsel %vm3187, %v3189, %v3185
        %v3191 = vmul.f32 %v3155, %v3190
        %v3192 = vpack.c.bf16 %v3191, %v3176
        %3194 = vrot.lane.b32.xlu0 %v3029, 112
        %v3195 = vpop.permute.xlu0 %3194
        %v3198 = vsel %vm1500, %v3192, 0
        %3200 = vmatpush.bf16.msra.mxu0 0
        %3201 = vmatpush.bf16.msra.mxu0 0
        %3202 = vmatpush.bf16.msra.mxu0 0
        %3203 = vmatpush.bf16.msra.mxu0 0
        %3204 = vmatpush.bf16.msra.mxu0 0
        %3205 = vmatpush.bf16.msra.mxu0 0
        %3206 = vmatpush.bf16.msra.mxu0 0
        %3207 = vmatpush.bf16.msra.mxu0 %v3195
        %3208 = vmatmul.bf16.gmra.mxu0 %v3198
        %v3209 = vpop.f32.mrf.mxu0
        %v3210 = vadd.f32 0.0, %v3209
        %v3211 = vpop.f32.mrf.mxu0
        %v3212 = vadd.f32 0.0, %v3211
        %3213 = vdwg.mxu0
        %v3214 = vpack.c.bf16 %v3212, %v3210
        %v3217 = vunpack.c.l.b16 %v3022
        %v3218 = vunpack.c.l.b16 %v3023
        %v3219 = vpack.c.b16 %v3218, %v3217
        %v3222 = vsel %vm1500, %v3214, 0
        %3224 = vmatpush.bf16.msra.mxu0 0
        %3225 = vmatpush.bf16.msra.mxu0 0
        %3226 = vmatpush.bf16.msra.mxu0 0
        %3227 = vmatpush.bf16.msra.mxu0 0
        %3228 = vmatpush.bf16.msra.mxu0 0
        %3229 = vmatpush.bf16.msra.mxu0 0
        %3230 = vmatpush.bf16.msra.mxu0 0
        %3231 = vmatpush.bf16.msra.mxu0 %v3219
        %3232 = vmatmul.bf16.gmra.mxu0 %v3222
        %v3233 = vpop.f32.mrf.mxu0
        %v3234 = vadd.f32 0.0, %v3233
        %v3235 = vpop.f32.mrf.mxu0
        %v3236 = vadd.f32 0.0, %v3235
        %3237 = vdwg.mxu0
        %v3240 = vunpack.c.l.b16 %v3020
        %v3241 = vunpack.c.l.b16 %v3021
        %v3242 = vpack.c.b16 %v3241, %v3240
        %v3245 = vsel %vm1500, %v3119, 0
        %3247 = vmatpush.bf16.msra.mxu0 0
        %3248 = vmatpush.bf16.msra.mxu0 0
        %3249 = vmatpush.bf16.msra.mxu0 0
        %3250 = vmatpush.bf16.msra.mxu0 0
        %3251 = vmatpush.bf16.msra.mxu0 0
        %3252 = vmatpush.bf16.msra.mxu0 0
        %3253 = vmatpush.bf16.msra.mxu0 0
        %3254 = vmatpush.bf16.msra.mxu0 %v3242
        %3255 = vmatmul.bf16.gmra.mxu0 %v3245
        %v3256 = vpop.f32.mrf.mxu0
        %v3257 = vadd.f32 %v3234, %v3256
        %v3258 = vpop.f32.mrf.mxu0
        %v3259 = vadd.f32 %v3236, %v3258
        %3260 = vdwg.mxu0
        %3261 = vrot.lane.b32.xlu0 %v3028, 96
        %v3262 = vpop.permute.xlu0 %3261
        %3263 = vrot.lane.b32.xlu0 %v3028, 32
        %v3264 = vpop.permute.xlu0 %3263
        %v3266 = vsel %vm1500, %v3262, 0
        %v3269 = vsel %vm1500, %v3264, 0
        %3271 = vmatpush.bf16.xpose.msra.mxu0 0
        %3272 = vmatpush.bf16.xpose.msra.mxu0 0
        %3273 = vmatpush.bf16.xpose.msra.mxu0 0
        %3274 = vmatpush.bf16.xpose.msra.mxu0 0
        %3275 = vmatpush.bf16.xpose.msra.mxu0 0
        %3276 = vmatpush.bf16.xpose.msra.mxu0 0
        %3277 = vmatpush.bf16.xpose.msra.mxu0 0
        %3278 = vmatpush.bf16.xpose.msra.mxu0 %v3269
        %3279 = vmatmul.bf16.gmra.mxu0 %v3266
        %v3280 = vpop.f32.mrf.mxu0
        %v3281 = vadd.f32 0.0, %v3280
        %v3282 = vpop.f32.mrf.mxu0
        %v3283 = vadd.f32 0.0, %v3282
        %3284 = vdwg.mxu0
        %v3285 = vsel %vm1500, %v3281, -inf
        %3286 = vmax.xlane.f32.xlu0 %v3285
        %v3287 = vpop.xlane.xlu0 %3286
        %v3288 = vsel %vm1500, %v3283, -inf
        %3289 = vmax.xlane.f32.xlu0 %v3288
        %v3290 = vpop.xlane.xlu0 %3289
        %v3291 = vsub.f32 %v3281, %v3287
        %v3292 = vsub.f32 %v3283, %v3290
        %v3293 = vmul.f32 %v3291, 1.442695
        %v3294 = vpow.pop %v3293
        %v3295 = vmul.f32 %v3292, 1.442695
        %v3296 = vpow.pop %v3295
        %v3297 = vsel %vm1500, %v3294, 0.0
        %3298 = vadd.xlane.f32.xlu0 %v3297
        %v3299 = vpop.xlane.xlu0 %3298
        %v3300 = vsel %vm1500, %v3296, 0.0
        %3301 = vadd.xlane.f32.xlu0 %v3300
        %v3302 = vpop.xlane.xlu0 %3301
        %v3303 = vrcp.pop %v3299
        %v3304 = vmul.f32 %v3299, %v3303
        %v3305 = vsub.f32 1.0, %v3304
        %v3306 = vmul.f32 %v3303, %v3305
        %v3307 = vadd.f32 %v3303, %v3306
        %vm3308 = vweird.f32 %v3299
        %vm3309 = vweird.f32 %v3303
        %vm3310 = vmor %vm3308, %vm3309
        %v3311 = vsel %vm3310, %v3303, %v3307
        %v3312 = vand.u32 2147483647, %v3299
        %vm3313 = vcmp.eq.f32.partialorder %v3312, 8.507059e+37
        %v3314 = vand.u32 %v3299, 2147483648
        %v3315 = vor.u32 1.1754944e-38, %v3314
        %v3316 = vsel %vm3313, %v3315, %v3311
        %v3317 = vmul.f32 %v3294, %v3316
        %v3318 = vrcp.pop %v3302
        %v3319 = vmul.f32 %v3302, %v3318
        %v3320 = vsub.f32 1.0, %v3319
        %v3321 = vmul.f32 %v3318, %v3320
        %v3322 = vadd.f32 %v3318, %v3321
        %vm3323 = vweird.f32 %v3302
        %vm3324 = vweird.f32 %v3318
        %vm3325 = vmor %vm3323, %vm3324
        %v3326 = vsel %vm3325, %v3318, %v3322
        %v3327 = vand.u32 2147483647, %v3302
        %vm3328 = vcmp.eq.f32.partialorder %v3327, 8.507059e+37
        %v3329 = vand.u32 %v3302, 2147483648
        %v3330 = vor.u32 1.1754944e-38, %v3329
        %v3331 = vsel %vm3328, %v3330, %v3326
        %v3332 = vmul.f32 %v3296, %v3331
        %v3333 = vpack.c.bf16 %v3332, %v3317
        %3334 = vrot.lane.b32.xlu0 %v3029, 96
        %v3335 = vpop.permute.xlu0 %3334
        %v3338 = vsel %vm1500, %v3333, 0
        %3340 = vmatpush.bf16.msra.mxu0 0
        %3341 = vmatpush.bf16.msra.mxu0 0
        %3342 = vmatpush.bf16.msra.mxu0 0
        %3343 = vmatpush.bf16.msra.mxu0 0
        %3344 = vmatpush.bf16.msra.mxu0 0
        %3345 = vmatpush.bf16.msra.mxu0 0
        %3346 = vmatpush.bf16.msra.mxu0 0
        %3347 = vmatpush.bf16.msra.mxu0 %v3335
        %3348 = vmatmul.bf16.gmra.mxu0 %v3338
        %v3349 = vpop.f32.mrf.mxu0
        %v3350 = vadd.f32 0.0, %v3349
        %v3351 = vpop.f32.mrf.mxu0
        %v3352 = vadd.f32 0.0, %v3351
        %3353 = vdwg.mxu0
        %v3354 = vpack.c.bf16 %v3352, %v3350
        %v3357 = vunpack.c.l.b16 %v3024
        %v3358 = vunpack.c.l.b16 %v3025
        %v3359 = vpack.c.b16 %v3358, %v3357
        %v3362 = vsel %vm1500, %v3354, 0
        %3364 = vmatpush.bf16.msra.mxu0 0
        %3365 = vmatpush.bf16.msra.mxu0 0
        %3366 = vmatpush.bf16.msra.mxu0 0
        %3367 = vmatpush.bf16.msra.mxu0 0
        %3368 = vmatpush.bf16.msra.mxu0 0
        %3369 = vmatpush.bf16.msra.mxu0 0
        %3370 = vmatpush.bf16.msra.mxu0 0
        %3371 = vmatpush.bf16.msra.mxu0 %v3359
        %3372 = vmatmul.bf16.gmra.mxu0 %v3362
        %v3373 = vpop.f32.mrf.mxu0
        %v3374 = vadd.f32 0.0, %v3373
        %v3375 = vpop.f32.mrf.mxu0
        %v3376 = vadd.f32 0.0, %v3375
        %3377 = vdwg.mxu0
        %v3378 = vadd.f32 %v3257, %v3374
        %v3379 = vadd.f32 %v3259, %v3376
        %3380 = vrot.lane.b32.xlu0 %v3028, 80
        %v3381 = vpop.permute.xlu0 %3380
        %3382 = vrot.lane.b32.xlu0 %v3028, 16
        %v3383 = vpop.permute.xlu0 %3382
        %v3385 = vsel %vm1500, %v3381, 0
        %v3388 = vsel %vm1500, %v3383, 0
        %3390 = vmatpush.bf16.xpose.msra.mxu0 0
        %3391 = vmatpush.bf16.xpose.msra.mxu0 0
        %3392 = vmatpush.bf16.xpose.msra.mxu0 0
        %3393 = vmatpush.bf16.xpose.msra.mxu0 0
        %3394 = vmatpush.bf16.xpose.msra.mxu0 0
        %3395 = vmatpush.bf16.xpose.msra.mxu0 0
        %3396 = vmatpush.bf16.xpose.msra.mxu0 0
        %3397 = vmatpush.bf16.xpose.msra.mxu0 %v3388
        %3398 = vmatmul.bf16.gmra.mxu0 %v3385
        %v3399 = vpop.f32.mrf.mxu0
        %v3400 = vadd.f32 0.0, %v3399
        %v3401 = vpop.f32.mrf.mxu0
        %v3402 = vadd.f32 0.0, %v3401
        %3403 = vdwg.mxu0
        %v3404 = vsel %vm1500, %v3400, -inf
        %3405 = vmax.xlane.f32.xlu0 %v3404
        %v3406 = vpop.xlane.xlu0 %3405
        %v3407 = vsel %vm1500, %v3402, -inf
        %3408 = vmax.xlane.f32.xlu0 %v3407
        %v3409 = vpop.xlane.xlu0 %3408
        %v3410 = vsub.f32 %v3400, %v3406
        %v3411 = vsub.f32 %v3402, %v3409
        %v3412 = vmul.f32 %v3410, 1.442695
        %v3413 = vpow.pop %v3412
        %v3414 = vmul.f32 %v3411, 1.442695
        %v3415 = vpow.pop %v3414
        %v3416 = vsel %vm1500, %v3413, 0.0
        %3417 = vadd.xlane.f32.xlu0 %v3416
        %v3418 = vpop.xlane.xlu0 %3417
        %v3419 = vsel %vm1500, %v3415, 0.0
        %3420 = vadd.xlane.f32.xlu0 %v3419
        %v3421 = vpop.xlane.xlu0 %3420
        %v3422 = vrcp.pop %v3418
        %v3423 = vmul.f32 %v3418, %v3422
        %v3424 = vsub.f32 1.0, %v3423
        %v3425 = vmul.f32 %v3422, %v3424
        %v3426 = vadd.f32 %v3422, %v3425
        %vm3427 = vweird.f32 %v3418
        %vm3428 = vweird.f32 %v3422
        %vm3429 = vmor %vm3427, %vm3428
        %v3430 = vsel %vm3429, %v3422, %v3426
        %v3431 = vand.u32 2147483647, %v3418
        %vm3432 = vcmp.eq.f32.partialorder %v3431, 8.507059e+37
        %v3433 = vand.u32 %v3418, 2147483648
        %v3434 = vor.u32 1.1754944e-38, %v3433
        %v3435 = vsel %vm3432, %v3434, %v3430
        %v3436 = vmul.f32 %v3413, %v3435
        %v3437 = vrcp.pop %v3421
        %v3438 = vmul.f32 %v3421, %v3437
        %v3439 = vsub.f32 1.0, %v3438
        %v3440 = vmul.f32 %v3437, %v3439
        %v3441 = vadd.f32 %v3437, %v3440
        %vm3442 = vweird.f32 %v3421
        %vm3443 = vweird.f32 %v3437
        %vm3444 = vmor %vm3442, %vm3443
        %v3445 = vsel %vm3444, %v3437, %v3441
        %v3446 = vand.u32 2147483647, %v3421
        %vm3447 = vcmp.eq.f32.partialorder %v3446, 8.507059e+37
        %v3448 = vand.u32 %v3421, 2147483648
        %v3449 = vor.u32 1.1754944e-38, %v3448
        %v3450 = vsel %vm3447, %v3449, %v3445
        %v3451 = vmul.f32 %v3415, %v3450
        %v3452 = vpack.c.bf16 %v3451, %v3436
        %3453 = vrot.lane.b32.xlu0 %v3029, 80
        %v3454 = vpop.permute.xlu0 %3453
        %v3457 = vsel %vm1500, %v3452, 0
        %3459 = vmatpush.bf16.msra.mxu0 0
        %3460 = vmatpush.bf16.msra.mxu0 0
        %3461 = vmatpush.bf16.msra.mxu0 0
        %3462 = vmatpush.bf16.msra.mxu0 0
        %3463 = vmatpush.bf16.msra.mxu0 0
        %3464 = vmatpush.bf16.msra.mxu0 0
        %3465 = vmatpush.bf16.msra.mxu0 0
        %3466 = vmatpush.bf16.msra.mxu0 %v3454
        %3467 = vmatmul.bf16.gmra.mxu0 %v3457
        %v3468 = vpop.f32.mrf.mxu0
        %v3469 = vadd.f32 0.0, %v3468
        %v3470 = vpop.f32.mrf.mxu0
        %v3471 = vadd.f32 0.0, %v3470
        %3472 = vdwg.mxu0
        %v3473 = vpack.c.bf16 %v3471, %v3469
        %v3476 = vunpack.c.l.b16 %v3026
        %v3477 = vunpack.c.l.b16 %v3027
        %v3478 = vpack.c.b16 %v3477, %v3476
        %v3481 = vsel %vm1500, %v3473, 0
        %3483 = vmatpush.bf16.msra.mxu0 0
        %3484 = vmatpush.bf16.msra.mxu0 0
        %3485 = vmatpush.bf16.msra.mxu0 0
        %3486 = vmatpush.bf16.msra.mxu0 0
        %3487 = vmatpush.bf16.msra.mxu0 0
        %3488 = vmatpush.bf16.msra.mxu0 0
        %3489 = vmatpush.bf16.msra.mxu0 0
        %3490 = vmatpush.bf16.msra.mxu0 %v3478
        %3491 = vmatmul.bf16.gmra.mxu0 %v3481
        %v3492 = vpop.f32.mrf.mxu0
        %v3493 = vadd.f32 0.0, %v3492
        %v3494 = vpop.f32.mrf.mxu0
        %v3495 = vadd.f32 0.0, %v3494
        %3496 = vdwg.mxu0
        %v3497 = vadd.f32 %v3378, %v3493
        %v3498 = vadd.f32 %v3379, %v3495
        %s3499 = scalar_lea.vmem %s25, 2
        %v3500 = vld [vmem:[%s3499] sm:$0x1]
        %v3502 = vperm.slane %v3500, 0
        %v3504 = vadd.f32 %v3497, %v3502
        %v3505 = vadd.f32 %v3498, %v3502
        %s3506 = scalar_lea.vmem %s27, 64
        %v3507 = vld [vmem:[%s3506] sm:$0xf]
        %v3508 = vld [vmem:[%s3506 + $0x4] sm:$0xf]
        %v3509 = vld [vmem:[%s3506 + $0x8] sm:$0xf]
        %v3510 = vld [vmem:[%s3506 + $0xc] sm:$0xf]
        %v3511 = vld [vmem:[%s3506 + $0x10] sm:$0xf]
        %v3512 = vld [vmem:[%s3506 + $0x14] sm:$0xf]
        %v3513 = vld [vmem:[%s3506 + $0x18] sm:$0xf]
        %v3514 = vld [vmem:[%s3506 + $0x1c] sm:$0xf]
        %s3515 = scalar_lea.vmem [#allocation13], 64
        %v3516 = vld [vmem:[%s3515] sm:$0xf]
        %v3517 = vld [vmem:[%s3515 + $0x4] sm:$0xf]
        %v3518 = vld [vmem:[%s3515 + $0x8] sm:$0xf]
        %v3519 = vld [vmem:[%s3515 + $0xc] sm:$0xf]
        %v3520 = vld [vmem:[%s3515 + $0x10] sm:$0xf]
        %v3521 = vld [vmem:[%s3515 + $0x14] sm:$0xf]
        %v3522 = vld [vmem:[%s3515 + $0x18] sm:$0xf]
        %v3523 = vld [vmem:[%s3515 + $0x1c] sm:$0xf]
        %v3524 = vpack.c.bf16 %v3505, %v3504
        %v3533 = vunpack.c.l.b16 %v3516
        %v3534 = vunpack.c.l.b16 %v3517
        %v3535 = vunpack.c.l.b16 %v3518
        %v3536 = vunpack.c.l.b16 %v3519
        %v3537 = vunpack.c.l.b16 %v3520
        %v3538 = vunpack.c.l.b16 %v3521
        %v3539 = vunpack.c.l.b16 %v3522
        %v3540 = vunpack.c.l.b16 %v3523
        %v3541 = vpack.c.b16 %v3534, %v3533
        %v3542 = vpack.c.b16 %v3536, %v3535
        %v3543 = vpack.c.b16 %v3538, %v3537
        %v3544 = vpack.c.b16 %v3540, %v3539
        %v3550 = vsel %vm1252, %v3524, 0
        %3552 = vmatpush.bf16.msra.mxu0 0
        %3553 = vmatpush.bf16.msra.mxu0 0
        %3554 = vmatpush.bf16.msra.mxu0 0
        %3555 = vmatpush.bf16.msra.mxu0 0
        %3556 = vmatpush.bf16.msra.mxu0 %v3544
        %3557 = vmatpush.bf16.msra.mxu0 %v3543
        %3558 = vmatpush.bf16.msra.mxu0 %v3542
        %3559 = vmatpush.bf16.msra.mxu0 %v3541
        %3560 = vmatmul.bf16.gmra.mxu0 %v3550
        %v3561 = vpop.f32.mrf.mxu0
        %v3562 = vadd.f32 0.0, %v3561
        %v3563 = vpop.f32.mrf.mxu0
        %v3564 = vadd.f32 0.0, %v3563
        %3565 = vdwg.mxu0
        %v3574 = vunpack.c.l.b16 %v3507
        %v3575 = vunpack.c.l.b16 %v3508
        %v3576 = vunpack.c.l.b16 %v3509
        %v3577 = vunpack.c.l.b16 %v3510
        %v3578 = vunpack.c.l.b16 %v3511
        %v3579 = vunpack.c.l.b16 %v3512
        %v3580 = vunpack.c.l.b16 %v3513
        %v3581 = vunpack.c.l.b16 %v3514
        %v3582 = vpack.c.b16 %v3575, %v3574
        %v3583 = vpack.c.b16 %v3577, %v3576
        %v3584 = vpack.c.b16 %v3579, %v3578
        %v3585 = vpack.c.b16 %v3581, %v3580
        %3590 = vmatpush.bf16.msra.mxu0 0
        %3591 = vmatpush.bf16.msra.mxu0 0
        %3592 = vmatpush.bf16.msra.mxu0 0
        %3593 = vmatpush.bf16.msra.mxu0 0
        %3594 = vmatpush.bf16.msra.mxu0 %v3585
        %3595 = vmatpush.bf16.msra.mxu0 %v3584
        %3596 = vmatpush.bf16.msra.mxu0 %v3583
        %3597 = vmatpush.bf16.msra.mxu0 %v3582
        %3598 = vmatmul.bf16.gmra.mxu0 %v2989
        %v3599 = vpop.f32.mrf.mxu0
        %v3600 = vadd.f32 %v3562, %v3599
        %v3601 = vpop.f32.mrf.mxu0
        %v3602 = vadd.f32 %v3564, %v3601
        %3603 = vdwg.mxu0
        %s3604 = scalar_lea.vmem [#allocation15], 2
        %v3605 = vld [vmem:[%s3604] sm:$0x1]
        %v3607 = vperm.slane %v3605, 0
        %v3609 = vadd.f32 %v3600, %v3607
        %v3610 = vadd.f32 %v3602, %v3607
        %v3611 = vmax.f32 %v3609, 0.0
        %v3612 = vmax.f32 %v3610, 0.0
        %s3613 = scalar_lea.vmem %s33, 128
        %v3614 = vld [vmem:[%s3613] sm:$0xf]
        %v3615 = vld [vmem:[%s3613 + $0x4] sm:$0xf]
        %v3616 = vld [vmem:[%s3613 + $0x8] sm:$0xf]
        %v3617 = vld [vmem:[%s3613 + $0xc] sm:$0xf]
        %v3618 = vld [vmem:[%s3613 + $0x10] sm:$0xf]
        %v3619 = vld [vmem:[%s3613 + $0x14] sm:$0xf]
        %v3620 = vld [vmem:[%s3613 + $0x18] sm:$0xf]
        %v3621 = vld [vmem:[%s3613 + $0x1c] sm:$0xf]
        %v3622 = vld [vmem:[%s3613 + $0x20] sm:$0xf]
        %v3623 = vld [vmem:[%s3613 + $0x24] sm:$0xf]
        %v3624 = vld [vmem:[%s3613 + $0x28] sm:$0xf]
        %v3625 = vld [vmem:[%s3613 + $0x2c] sm:$0xf]
        %v3626 = vld [vmem:[%s3613 + $0x30] sm:$0xf]
        %v3627 = vld [vmem:[%s3613 + $0x34] sm:$0xf]
        %v3628 = vld [vmem:[%s3613 + $0x38] sm:$0xf]
        %v3629 = vld [vmem:[%s3613 + $0x3c] sm:$0xf]
        %s3630 = scalar_lea.vmem [#allocation16], 2
        %v3631 = vld [vmem:[%s3630] sm:$0x1]
        %v3632 = vpack.c.bf16 %v3612, %v3611
        %v3634 = vperm.slane %v3631, 0
        %v3652 = vunpack.c.l.b16 %v3614
        %v3653 = vunpack.c.l.b16 %v3615
        %v3654 = vunpack.c.l.b16 %v3616
        %v3655 = vunpack.c.l.b16 %v3617
        %v3656 = vunpack.c.l.b16 %v3618
        %v3657 = vunpack.c.l.b16 %v3619
        %v3658 = vunpack.c.l.b16 %v3620
        %v3659 = vunpack.c.l.b16 %v3621
        %v3660 = vunpack.c.l.b16 %v3622
        %v3661 = vunpack.c.l.b16 %v3623
        %v3662 = vunpack.c.l.b16 %v3624
        %v3663 = vunpack.c.l.b16 %v3625
        %v3664 = vunpack.c.l.b16 %v3626
        %v3665 = vunpack.c.l.b16 %v3627
        %v3666 = vunpack.c.l.b16 %v3628
        %v3667 = vunpack.c.l.b16 %v3629
        %v3668 = vpack.c.b16 %v3653, %v3652
        %v3669 = vpack.c.b16 %v3655, %v3654
        %v3670 = vpack.c.b16 %v3657, %v3656
        %v3671 = vpack.c.b16 %v3659, %v3658
        %v3672 = vpack.c.b16 %v3661, %v3660
        %v3673 = vpack.c.b16 %v3663, %v3662
        %v3674 = vpack.c.b16 %v3665, %v3664
        %v3675 = vpack.c.b16 %v3667, %v3666
        %3684 = vmatpush.bf16.msra.mxu0 %v3675
        %3685 = vmatpush.bf16.msra.mxu0 %v3674
        %3686 = vmatpush.bf16.msra.mxu0 %v3673
        %3687 = vmatpush.bf16.msra.mxu0 %v3672
        %3688 = vmatpush.bf16.msra.mxu0 %v3671
        %3689 = vmatpush.bf16.msra.mxu0 %v3670
        %3690 = vmatpush.bf16.msra.mxu0 %v3669
        %3691 = vmatpush.bf16.msra.mxu0 %v3668
        %3692 = vmatmul.bf16.gmra.mxu0 %v3632
        %v3693 = vpop.f32.mrf.mxu0
        %v3694 = vadd.f32 %v3634, %v3693
        %v3695 = vpop.f32.mrf.mxu0
        %v3696 = vadd.f32 %v3634, %v3695
        %3697 = vdwg.mxu0
        %v3698 = vadd.f32 %v2929, %v3694
        %v3699 = vadd.f32 %v2930, %v3696
        %s3700 = scalar_lea.vmem %s19, 192
        %v3701 = vld [vmem:[%s3700] sm:$0xff]
        %v3702 = vld [vmem:[%s3700 + $0x8] sm:$0xff]
        %v3703 = vld [vmem:[%s3700 + $0x10] sm:$0xff]
        %v3704 = vld [vmem:[%s3700 + $0x18] sm:$0xff]
        %v3705 = vld [vmem:[%s3700 + $0x20] sm:$0xff]
        %v3706 = vld [vmem:[%s3700 + $0x28] sm:$0xff]
        %v3707 = vld [vmem:[%s3700 + $0x30] sm:$0xff]
        %v3708 = vld [vmem:[%s3700 + $0x38] sm:$0xff]
        %s3709 = scalar_lea.vmem [#allocation12], 6
        %v3710 = vld [vmem:[%s3709] sm:$0x3]
        %v3711 = vpack.c.bf16 %v3699, %v3698
        %v3713 = vperm.slane %v3710, 0
        %v3714 = vperm.slane %v3710, 1
        %v3725 = vunpack.c.l.b16 %v3701
        %v3726 = vunpack.c.h.b16 %v3701
        %v3727 = vunpack.c.l.b16 %v3702
        %v3728 = vunpack.c.h.b16 %v3702
        %v3729 = vunpack.c.l.b16 %v3703
        %v3730 = vunpack.c.h.b16 %v3703
        %v3731 = vunpack.c.l.b16 %v3704
        %v3732 = vunpack.c.h.b16 %v3704
        %v3733 = vunpack.c.l.b16 %v3705
        %v3734 = vunpack.c.h.b16 %v3705
        %v3735 = vunpack.c.l.b16 %v3706
        %v3736 = vunpack.c.h.b16 %v3706
        %v3737 = vunpack.c.l.b16 %v3707
        %v3738 = vunpack.c.h.b16 %v3707
        %v3739 = vunpack.c.l.b16 %v3708
        %v3740 = vunpack.c.h.b16 %v3708
        %v3741 = vpack.c.b16 %v3727, %v3725
        %v3742 = vpack.c.b16 %v3728, %v3726
        %v3743 = vpack.c.b16 %v3731, %v3729
        %v3744 = vpack.c.b16 %v3732, %v3730
        %v3745 = vpack.c.b16 %v3735, %v3733
        %v3746 = vpack.c.b16 %v3736, %v3734
        %v3747 = vpack.c.b16 %v3739, %v3737
        %v3748 = vpack.c.b16 %v3740, %v3738
        %v3758 = vsel %vm1252, %v3711, 0
        %3760 = vmatpush.bf16.msra.mxu0 0
        %3761 = vmatpush.bf16.msra.mxu0 0
        %3762 = vmatpush.bf16.msra.mxu0 0
        %3763 = vmatpush.bf16.msra.mxu0 0
        %3764 = vmatpush.bf16.msra.mxu0 %v3747
        %3765 = vmatpush.bf16.msra.mxu0 %v3745
        %3766 = vmatpush.bf16.msra.mxu0 %v3743
        %3767 = vmatpush.bf16.msra.mxu0 %v3741
        %3768 = vmatmul.bf16.gmra.mxu0 %v3758
        %v3769 = vpop.f32.mrf.mxu0
        %v3770 = vadd.f32 %v3713, %v3769
        %v3771 = vpop.f32.mrf.mxu0
        %v3772 = vadd.f32 %v3713, %v3771
        %3773 = vdwg.mxu0
        %3774 = vmatpush.bf16.msra.mxu0 0
        %3775 = vmatpush.bf16.msra.mxu0 0
        %3776 = vmatpush.bf16.msra.mxu0 0
        %3777 = vmatpush.bf16.msra.mxu0 0
        %3778 = vmatpush.bf16.msra.mxu0 %v3748
        %3779 = vmatpush.bf16.msra.mxu0 %v3746
        %3780 = vmatpush.bf16.msra.mxu0 %v3744
        %3781 = vmatpush.bf16.msra.mxu0 %v3742
        %3782 = vmatmul.bf16.gmra.mxu0 %v3758
        %v3783 = vpop.f32.mrf.mxu0
        %v3784 = vadd.f32 %v3714, %v3783
        %v3785 = vpop.f32.mrf.mxu0
        %v3786 = vadd.f32 %v3714, %v3785
        %3787 = vdwg.mxu0
        %s3788 = scalar_lea.vmem %s23, 96
        %v3789 = vld [vmem:[%s3788] sm:$0xf]
        %v3790 = vld [vmem:[%s3788 + $0x4] sm:$0xf]
        %v3791 = vld [vmem:[%s3788 + $0x8] sm:$0xf]
        %v3792 = vld [vmem:[%s3788 + $0xc] sm:$0xf]
        %v3793 = vld [vmem:[%s3788 + $0x10] sm:$0xf]
        %v3794 = vld [vmem:[%s3788 + $0x14] sm:$0xf]
        %v3795 = vld [vmem:[%s3788 + $0x18] sm:$0xf]
        %v3796 = vld [vmem:[%s3788 + $0x1c] sm:$0xf]
        %v3797 = vpack.c.bf16 %v3772, %v3770
        %v3798 = vpack.c.bf16 %v3786, %v3784
        %3800 = vrot.lane.b32.xlu0 %v3797, 64
        %v3801 = vpop.permute.xlu0 %3800
        %v3803 = vsel %vm1500, %v3797, 0
        %v3806 = vsel %vm1500, %v3801, 0
        %3808 = vmatpush.bf16.xpose.msra.mxu0 0
        %3809 = vmatpush.bf16.xpose.msra.mxu0 0
        %3810 = vmatpush.bf16.xpose.msra.mxu0 0
        %3811 = vmatpush.bf16.xpose.msra.mxu0 0
        %3812 = vmatpush.bf16.xpose.msra.mxu0 0
        %3813 = vmatpush.bf16.xpose.msra.mxu0 0
        %3814 = vmatpush.bf16.xpose.msra.mxu0 0
        %3815 = vmatpush.bf16.xpose.msra.mxu0 %v3806
        %3816 = vmatmul.bf16.gmra.mxu0 %v3803
        %v3817 = vpop.f32.mrf.mxu0
        %v3818 = vadd.f32 0.0, %v3817
        %v3819 = vpop.f32.mrf.mxu0
        %v3820 = vadd.f32 0.0, %v3819
        %3821 = vdwg.mxu0
        %v3822 = vsel %vm1500, %v3818, -inf
        %3823 = vmax.xlane.f32.xlu0 %v3822
        %v3824 = vpop.xlane.xlu0 %3823
        %v3825 = vsel %vm1500, %v3820, -inf
        %3826 = vmax.xlane.f32.xlu0 %v3825
        %v3827 = vpop.xlane.xlu0 %3826
        %v3828 = vsub.f32 %v3818, %v3824
        %v3829 = vsub.f32 %v3820, %v3827
        %v3830 = vmul.f32 %v3828, 1.442695
        %v3831 = vpow.pop %v3830
        %v3832 = vmul.f32 %v3829, 1.442695
        %v3833 = vpow.pop %v3832
        %v3834 = vsel %vm1500, %v3831, 0.0
        %3835 = vadd.xlane.f32.xlu0 %v3834
        %v3836 = vpop.xlane.xlu0 %3835
        %v3837 = vsel %vm1500, %v3833, 0.0
        %3838 = vadd.xlane.f32.xlu0 %v3837
        %v3839 = vpop.xlane.xlu0 %3838
        %v3840 = vrcp.pop %v3836
        %v3841 = vmul.f32 %v3836, %v3840
        %v3842 = vsub.f32 1.0, %v3841
        %v3843 = vmul.f32 %v3840, %v3842
        %v3844 = vadd.f32 %v3840, %v3843
        %vm3845 = vweird.f32 %v3836
        %vm3846 = vweird.f32 %v3840
        %vm3847 = vmor %vm3845, %vm3846
        %v3848 = vsel %vm3847, %v3840, %v3844
        %v3849 = vand.u32 2147483647, %v3836
        %vm3850 = vcmp.eq.f32.partialorder %v3849, 8.507059e+37
        %v3851 = vand.u32 %v3836, 2147483648
        %v3852 = vor.u32 1.1754944e-38, %v3851
        %v3853 = vsel %vm3850, %v3852, %v3848
        %v3854 = vmul.f32 %v3831, %v3853
        %v3855 = vrcp.pop %v3839
        %v3856 = vmul.f32 %v3839, %v3855
        %v3857 = vsub.f32 1.0, %v3856
        %v3858 = vmul.f32 %v3855, %v3857
        %v3859 = vadd.f32 %v3855, %v3858
        %vm3860 = vweird.f32 %v3839
        %vm3861 = vweird.f32 %v3855
        %vm3862 = vmor %vm3860, %vm3861
        %v3863 = vsel %vm3862, %v3855, %v3859
        %v3864 = vand.u32 2147483647, %v3839
        %vm3865 = vcmp.eq.f32.partialorder %v3864, 8.507059e+37
        %v3866 = vand.u32 %v3839, 2147483648
        %v3867 = vor.u32 1.1754944e-38, %v3866
        %v3868 = vsel %vm3865, %v3867, %v3863
        %v3869 = vmul.f32 %v3833, %v3868
        %v3870 = vpack.c.bf16 %v3869, %v3854
        %v3872 = vsel %vm1500, %v3870, 0
        %3874 = vmatpush.bf16.msra.mxu0 0
        %3875 = vmatpush.bf16.msra.mxu0 0
        %3876 = vmatpush.bf16.msra.mxu0 0
        %3877 = vmatpush.bf16.msra.mxu0 0
        %3878 = vmatpush.bf16.msra.mxu0 0
        %3879 = vmatpush.bf16.msra.mxu0 0
        %3880 = vmatpush.bf16.msra.mxu0 0
        %3881 = vmatpush.bf16.msra.mxu0 %v3798
        %3882 = vmatmul.bf16.gmra.mxu0 %v3872
        %v3883 = vpop.f32.mrf.mxu0
        %v3884 = vadd.f32 0.0, %v3883
        %v3885 = vpop.f32.mrf.mxu0
        %v3886 = vadd.f32 0.0, %v3885
        %3887 = vdwg.mxu0
        %v3888 = vpack.c.bf16 %v3886, %v3884
        %3889 = vrot.lane.b32.xlu0 %v3797, 112
        %v3890 = vpop.permute.xlu0 %3889
        %3891 = vrot.lane.b32.xlu0 %v3797, 48
        %v3892 = vpop.permute.xlu0 %3891
        %v3894 = vsel %vm1500, %v3890, 0
        %v3897 = vsel %vm1500, %v3892, 0
        %3899 = vmatpush.bf16.xpose.msra.mxu0 0
        %3900 = vmatpush.bf16.xpose.msra.mxu0 0
        %3901 = vmatpush.bf16.xpose.msra.mxu0 0
        %3902 = vmatpush.bf16.xpose.msra.mxu0 0
        %3903 = vmatpush.bf16.xpose.msra.mxu0 0
        %3904 = vmatpush.bf16.xpose.msra.mxu0 0
        %3905 = vmatpush.bf16.xpose.msra.mxu0 0
        %3906 = vmatpush.bf16.xpose.msra.mxu0 %v3897
        %3907 = vmatmul.bf16.gmra.mxu0 %v3894
        %v3908 = vpop.f32.mrf.mxu0
        %v3909 = vadd.f32 0.0, %v3908
        %v3910 = vpop.f32.mrf.mxu0
        %v3911 = vadd.f32 0.0, %v3910
        %3912 = vdwg.mxu0
        %v3913 = vsel %vm1500, %v3909, -inf
        %3914 = vmax.xlane.f32.xlu0 %v3913
        %v3915 = vpop.xlane.xlu0 %3914
        %v3916 = vsel %vm1500, %v3911, -inf
        %3917 = vmax.xlane.f32.xlu0 %v3916
        %v3918 = vpop.xlane.xlu0 %3917
        %v3919 = vsub.f32 %v3909, %v3915
        %v3920 = vsub.f32 %v3911, %v3918
        %v3921 = vmul.f32 %v3919, 1.442695
        %v3922 = vpow.pop %v3921
        %v3923 = vmul.f32 %v3920, 1.442695
        %v3924 = vpow.pop %v3923
        %v3925 = vsel %vm1500, %v3922, 0.0
        %3926 = vadd.xlane.f32.xlu0 %v3925
        %v3927 = vpop.xlane.xlu0 %3926
        %v3928 = vsel %vm1500, %v3924, 0.0
        %3929 = vadd.xlane.f32.xlu0 %v3928
        %v3930 = vpop.xlane.xlu0 %3929
        %v3931 = vrcp.pop %v3927
        %v3932 = vmul.f32 %v3927, %v3931
        %v3933 = vsub.f32 1.0, %v3932
        %v3934 = vmul.f32 %v3931, %v3933
        %v3935 = vadd.f32 %v3931, %v3934
        %vm3936 = vweird.f32 %v3927
        %vm3937 = vweird.f32 %v3931
        %vm3938 = vmor %vm3936, %vm3937
        %v3939 = vsel %vm3938, %v3931, %v3935
        %v3940 = vand.u32 2147483647, %v3927
        %vm3941 = vcmp.eq.f32.partialorder %v3940, 8.507059e+37
        %v3942 = vand.u32 %v3927, 2147483648
        %v3943 = vor.u32 1.1754944e-38, %v3942
        %v3944 = vsel %vm3941, %v3943, %v3939
        %v3945 = vmul.f32 %v3922, %v3944
        %v3946 = vrcp.pop %v3930
        %v3947 = vmul.f32 %v3930, %v3946
        %v3948 = vsub.f32 1.0, %v3947
        %v3949 = vmul.f32 %v3946, %v3948
        %v3950 = vadd.f32 %v3946, %v3949
        %vm3951 = vweird.f32 %v3930
        %vm3952 = vweird.f32 %v3946
        %vm3953 = vmor %vm3951, %vm3952
        %v3954 = vsel %vm3953, %v3946, %v3950
        %v3955 = vand.u32 2147483647, %v3930
        %vm3956 = vcmp.eq.f32.partialorder %v3955, 8.507059e+37
        %v3957 = vand.u32 %v3930, 2147483648
        %v3958 = vor.u32 1.1754944e-38, %v3957
        %v3959 = vsel %vm3956, %v3958, %v3954
        %v3960 = vmul.f32 %v3924, %v3959
        %v3961 = vpack.c.bf16 %v3960, %v3945
        %3963 = vrot.lane.b32.xlu0 %v3798, 112
        %v3964 = vpop.permute.xlu0 %3963
        %v3967 = vsel %vm1500, %v3961, 0
        %3969 = vmatpush.bf16.msra.mxu0 0
        %3970 = vmatpush.bf16.msra.mxu0 0
        %3971 = vmatpush.bf16.msra.mxu0 0
        %3972 = vmatpush.bf16.msra.mxu0 0
        %3973 = vmatpush.bf16.msra.mxu0 0
        %3974 = vmatpush.bf16.msra.mxu0 0
        %3975 = vmatpush.bf16.msra.mxu0 0
        %3976 = vmatpush.bf16.msra.mxu0 %v3964
        %3977 = vmatmul.bf16.gmra.mxu0 %v3967
        %v3978 = vpop.f32.mrf.mxu0
        %v3979 = vadd.f32 0.0, %v3978
        %v3980 = vpop.f32.mrf.mxu0
        %v3981 = vadd.f32 0.0, %v3980
        %3982 = vdwg.mxu0
        %v3983 = vpack.c.bf16 %v3981, %v3979
        %v3986 = vunpack.c.l.b16 %v3791
        %v3987 = vunpack.c.l.b16 %v3792
        %v3988 = vpack.c.b16 %v3987, %v3986
        %v3991 = vsel %vm1500, %v3983, 0
        %3993 = vmatpush.bf16.msra.mxu0 0
        %3994 = vmatpush.bf16.msra.mxu0 0
        %3995 = vmatpush.bf16.msra.mxu0 0
        %3996 = vmatpush.bf16.msra.mxu0 0
        %3997 = vmatpush.bf16.msra.mxu0 0
        %3998 = vmatpush.bf16.msra.mxu0 0
        %3999 = vmatpush.bf16.msra.mxu0 0
        %4000 = vmatpush.bf16.msra.mxu0 %v3988
        %4001 = vmatmul.bf16.gmra.mxu0 %v3991
        %v4002 = vpop.f32.mrf.mxu0
        %v4003 = vadd.f32 0.0, %v4002
        %v4004 = vpop.f32.mrf.mxu0
        %v4005 = vadd.f32 0.0, %v4004
        %4006 = vdwg.mxu0
        %v4009 = vunpack.c.l.b16 %v3789
        %v4010 = vunpack.c.l.b16 %v3790
        %v4011 = vpack.c.b16 %v4010, %v4009
        %v4014 = vsel %vm1500, %v3888, 0
        %4016 = vmatpush.bf16.msra.mxu0 0
        %4017 = vmatpush.bf16.msra.mxu0 0
        %4018 = vmatpush.bf16.msra.mxu0 0
        %4019 = vmatpush.bf16.msra.mxu0 0
        %4020 = vmatpush.bf16.msra.mxu0 0
        %4021 = vmatpush.bf16.msra.mxu0 0
        %4022 = vmatpush.bf16.msra.mxu0 0
        %4023 = vmatpush.bf16.msra.mxu0 %v4011
        %4024 = vmatmul.bf16.gmra.mxu0 %v4014
        %v4025 = vpop.f32.mrf.mxu0
        %v4026 = vadd.f32 %v4003, %v4025
        %v4027 = vpop.f32.mrf.mxu0
        %v4028 = vadd.f32 %v4005, %v4027
        %4029 = vdwg.mxu0
        %4030 = vrot.lane.b32.xlu0 %v3797, 96
        %v4031 = vpop.permute.xlu0 %4030
        %4032 = vrot.lane.b32.xlu0 %v3797, 32
        %v4033 = vpop.permute.xlu0 %4032
        %v4035 = vsel %vm1500, %v4031, 0
        %v4038 = vsel %vm1500, %v4033, 0
        %4040 = vmatpush.bf16.xpose.msra.mxu0 0
        %4041 = vmatpush.bf16.xpose.msra.mxu0 0
        %4042 = vmatpush.bf16.xpose.msra.mxu0 0
        %4043 = vmatpush.bf16.xpose.msra.mxu0 0
        %4044 = vmatpush.bf16.xpose.msra.mxu0 0
        %4045 = vmatpush.bf16.xpose.msra.mxu0 0
        %4046 = vmatpush.bf16.xpose.msra.mxu0 0
        %4047 = vmatpush.bf16.xpose.msra.mxu0 %v4038
        %4048 = vmatmul.bf16.gmra.mxu0 %v4035
        %v4049 = vpop.f32.mrf.mxu0
        %v4050 = vadd.f32 0.0, %v4049
        %v4051 = vpop.f32.mrf.mxu0
        %v4052 = vadd.f32 0.0, %v4051
        %4053 = vdwg.mxu0
        %v4054 = vsel %vm1500, %v4050, -inf
        %4055 = vmax.xlane.f32.xlu0 %v4054
        %v4056 = vpop.xlane.xlu0 %4055
        %v4057 = vsel %vm1500, %v4052, -inf
        %4058 = vmax.xlane.f32.xlu0 %v4057
        %v4059 = vpop.xlane.xlu0 %4058
        %v4060 = vsub.f32 %v4050, %v4056
        %v4061 = vsub.f32 %v4052, %v4059
        %v4062 = vmul.f32 %v4060, 1.442695
        %v4063 = vpow.pop %v4062
        %v4064 = vmul.f32 %v4061, 1.442695
        %v4065 = vpow.pop %v4064
        %v4066 = vsel %vm1500, %v4063, 0.0
        %4067 = vadd.xlane.f32.xlu0 %v4066
        %v4068 = vpop.xlane.xlu0 %4067
        %v4069 = vsel %vm1500, %v4065, 0.0
        %4070 = vadd.xlane.f32.xlu0 %v4069
        %v4071 = vpop.xlane.xlu0 %4070
        %v4072 = vrcp.pop %v4068
        %v4073 = vmul.f32 %v4068, %v4072
        %v4074 = vsub.f32 1.0, %v4073
        %v4075 = vmul.f32 %v4072, %v4074
        %v4076 = vadd.f32 %v4072, %v4075
        %vm4077 = vweird.f32 %v4068
        %vm4078 = vweird.f32 %v4072
        %vm4079 = vmor %vm4077, %vm4078
        %v4080 = vsel %vm4079, %v4072, %v4076
        %v4081 = vand.u32 2147483647, %v4068
        %vm4082 = vcmp.eq.f32.partialorder %v4081, 8.507059e+37
        %v4083 = vand.u32 %v4068, 2147483648
        %v4084 = vor.u32 1.1754944e-38, %v4083
        %v4085 = vsel %vm4082, %v4084, %v4080
        %v4086 = vmul.f32 %v4063, %v4085
        %v4087 = vrcp.pop %v4071
        %v4088 = vmul.f32 %v4071, %v4087
        %v4089 = vsub.f32 1.0, %v4088
        %v4090 = vmul.f32 %v4087, %v4089
        %v4091 = vadd.f32 %v4087, %v4090
        %vm4092 = vweird.f32 %v4071
        %vm4093 = vweird.f32 %v4087
        %vm4094 = vmor %vm4092, %vm4093
        %v4095 = vsel %vm4094, %v4087, %v4091
        %v4096 = vand.u32 2147483647, %v4071
        %vm4097 = vcmp.eq.f32.partialorder %v4096, 8.507059e+37
        %v4098 = vand.u32 %v4071, 2147483648
        %v4099 = vor.u32 1.1754944e-38, %v4098
        %v4100 = vsel %vm4097, %v4099, %v4095
        %v4101 = vmul.f32 %v4065, %v4100
        %v4102 = vpack.c.bf16 %v4101, %v4086
        %4103 = vrot.lane.b32.xlu0 %v3798, 96
        %v4104 = vpop.permute.xlu0 %4103
        %v4107 = vsel %vm1500, %v4102, 0
        %4109 = vmatpush.bf16.msra.mxu0 0
        %4110 = vmatpush.bf16.msra.mxu0 0
        %4111 = vmatpush.bf16.msra.mxu0 0
        %4112 = vmatpush.bf16.msra.mxu0 0
        %4113 = vmatpush.bf16.msra.mxu0 0
        %4114 = vmatpush.bf16.msra.mxu0 0
        %4115 = vmatpush.bf16.msra.mxu0 0
        %4116 = vmatpush.bf16.msra.mxu0 %v4104
        %4117 = vmatmul.bf16.gmra.mxu0 %v4107
        %v4118 = vpop.f32.mrf.mxu0
        %v4119 = vadd.f32 0.0, %v4118
        %v4120 = vpop.f32.mrf.mxu0
        %v4121 = vadd.f32 0.0, %v4120
        %4122 = vdwg.mxu0
        %v4123 = vpack.c.bf16 %v4121, %v4119
        %v4126 = vunpack.c.l.b16 %v3793
        %v4127 = vunpack.c.l.b16 %v3794
        %v4128 = vpack.c.b16 %v4127, %v4126
        %v4131 = vsel %vm1500, %v4123, 0
        %4133 = vmatpush.bf16.msra.mxu0 0
        %4134 = vmatpush.bf16.msra.mxu0 0
        %4135 = vmatpush.bf16.msra.mxu0 0
        %4136 = vmatpush.bf16.msra.mxu0 0
        %4137 = vmatpush.bf16.msra.mxu0 0
        %4138 = vmatpush.bf16.msra.mxu0 0
        %4139 = vmatpush.bf16.msra.mxu0 0
        %4140 = vmatpush.bf16.msra.mxu0 %v4128
        %4141 = vmatmul.bf16.gmra.mxu0 %v4131
        %v4142 = vpop.f32.mrf.mxu0
        %v4143 = vadd.f32 0.0, %v4142
        %v4144 = vpop.f32.mrf.mxu0
        %v4145 = vadd.f32 0.0, %v4144
        %4146 = vdwg.mxu0
        %v4147 = vadd.f32 %v4026, %v4143
        %v4148 = vadd.f32 %v4028, %v4145
        %4149 = vrot.lane.b32.xlu0 %v3797, 80
        %v4150 = vpop.permute.xlu0 %4149
        %4151 = vrot.lane.b32.xlu0 %v3797, 16
        %v4152 = vpop.permute.xlu0 %4151
        %v4154 = vsel %vm1500, %v4150, 0
        %v4157 = vsel %vm1500, %v4152, 0
        %4159 = vmatpush.bf16.xpose.msra.mxu0 0
        %4160 = vmatpush.bf16.xpose.msra.mxu0 0
        %4161 = vmatpush.bf16.xpose.msra.mxu0 0
        %4162 = vmatpush.bf16.xpose.msra.mxu0 0
        %4163 = vmatpush.bf16.xpose.msra.mxu0 0
        %4164 = vmatpush.bf16.xpose.msra.mxu0 0
        %4165 = vmatpush.bf16.xpose.msra.mxu0 0
        %4166 = vmatpush.bf16.xpose.msra.mxu0 %v4157
        %4167 = vmatmul.bf16.gmra.mxu0 %v4154
        %v4168 = vpop.f32.mrf.mxu0
        %v4169 = vadd.f32 0.0, %v4168
        %v4170 = vpop.f32.mrf.mxu0
        %v4171 = vadd.f32 0.0, %v4170
        %4172 = vdwg.mxu0
        %v4173 = vsel %vm1500, %v4169, -inf
        %4174 = vmax.xlane.f32.xlu0 %v4173
        %v4175 = vpop.xlane.xlu0 %4174
        %v4176 = vsel %vm1500, %v4171, -inf
        %4177 = vmax.xlane.f32.xlu0 %v4176
        %v4178 = vpop.xlane.xlu0 %4177
        %v4179 = vsub.f32 %v4169, %v4175
        %v4180 = vsub.f32 %v4171, %v4178
        %v4181 = vmul.f32 %v4179, 1.442695
        %v4182 = vpow.pop %v4181
        %v4183 = vmul.f32 %v4180, 1.442695
        %v4184 = vpow.pop %v4183
        %v4185 = vsel %vm1500, %v4182, 0.0
        %4186 = vadd.xlane.f32.xlu0 %v4185
        %v4187 = vpop.xlane.xlu0 %4186
        %v4188 = vsel %vm1500, %v4184, 0.0
        %4189 = vadd.xlane.f32.xlu0 %v4188
        %v4190 = vpop.xlane.xlu0 %4189
        %v4191 = vrcp.pop %v4187
        %v4192 = vmul.f32 %v4187, %v4191
        %v4193 = vsub.f32 1.0, %v4192
        %v4194 = vmul.f32 %v4191, %v4193
        %v4195 = vadd.f32 %v4191, %v4194
        %vm4196 = vweird.f32 %v4187
        %vm4197 = vweird.f32 %v4191
        %vm4198 = vmor %vm4196, %vm4197
        %v4199 = vsel %vm4198, %v4191, %v4195
        %v4200 = vand.u32 2147483647, %v4187
        %vm4201 = vcmp.eq.f32.partialorder %v4200, 8.507059e+37
        %v4202 = vand.u32 %v4187, 2147483648
        %v4203 = vor.u32 1.1754944e-38, %v4202
        %v4204 = vsel %vm4201, %v4203, %v4199
        %v4205 = vmul.f32 %v4182, %v4204
        %v4206 = vrcp.pop %v4190
        %v4207 = vmul.f32 %v4190, %v4206
        %v4208 = vsub.f32 1.0, %v4207
        %v4209 = vmul.f32 %v4206, %v4208
        %v4210 = vadd.f32 %v4206, %v4209
        %vm4211 = vweird.f32 %v4190
        %vm4212 = vweird.f32 %v4206
        %vm4213 = vmor %vm4211, %vm4212
        %v4214 = vsel %vm4213, %v4206, %v4210
        %v4215 = vand.u32 2147483647, %v4190
        %vm4216 = vcmp.eq.f32.partialorder %v4215, 8.507059e+37
        %v4217 = vand.u32 %v4190, 2147483648
        %v4218 = vor.u32 1.1754944e-38, %v4217
        %v4219 = vsel %vm4216, %v4218, %v4214
        %v4220 = vmul.f32 %v4184, %v4219
        %v4221 = vpack.c.bf16 %v4220, %v4205
        %4222 = vrot.lane.b32.xlu0 %v3798, 80
        %v4223 = vpop.permute.xlu0 %4222
        %v4226 = vsel %vm1500, %v4221, 0
        %4228 = vmatpush.bf16.msra.mxu0 0
        %4229 = vmatpush.bf16.msra.mxu0 0
        %4230 = vmatpush.bf16.msra.mxu0 0
        %4231 = vmatpush.bf16.msra.mxu0 0
        %4232 = vmatpush.bf16.msra.mxu0 0
        %4233 = vmatpush.bf16.msra.mxu0 0
        %4234 = vmatpush.bf16.msra.mxu0 0
        %4235 = vmatpush.bf16.msra.mxu0 %v4223
        %4236 = vmatmul.bf16.gmra.mxu0 %v4226
        %v4237 = vpop.f32.mrf.mxu0
        %v4238 = vadd.f32 0.0, %v4237
        %v4239 = vpop.f32.mrf.mxu0
        %v4240 = vadd.f32 0.0, %v4239
        %4241 = vdwg.mxu0
        %v4242 = vpack.c.bf16 %v4240, %v4238
        %v4245 = vunpack.c.l.b16 %v3795
        %v4246 = vunpack.c.l.b16 %v3796
        %v4247 = vpack.c.b16 %v4246, %v4245
        %v4250 = vsel %vm1500, %v4242, 0
        %4252 = vmatpush.bf16.msra.mxu0 0
        %4253 = vmatpush.bf16.msra.mxu0 0
        %4254 = vmatpush.bf16.msra.mxu0 0
        %4255 = vmatpush.bf16.msra.mxu0 0
        %4256 = vmatpush.bf16.msra.mxu0 0
        %4257 = vmatpush.bf16.msra.mxu0 0
        %4258 = vmatpush.bf16.msra.mxu0 0
        %4259 = vmatpush.bf16.msra.mxu0 %v4247
        %4260 = vmatmul.bf16.gmra.mxu0 %v4250
        %v4261 = vpop.f32.mrf.mxu0
        %v4262 = vadd.f32 0.0, %v4261
        %v4263 = vpop.f32.mrf.mxu0
        %v4264 = vadd.f32 0.0, %v4263
        %4265 = vdwg.mxu0
        %v4266 = vadd.f32 %v4147, %v4262
        %v4267 = vadd.f32 %v4148, %v4264
        %s4268 = scalar_lea.vmem %s25, 3
        %v4269 = vld [vmem:[%s4268] sm:$0x1]
        %v4271 = vperm.slane %v4269, 0
        %v4273 = vadd.f32 %v4266, %v4271
        %v4274 = vadd.f32 %v4267, %v4271
        %s4275 = scalar_lea.vmem %s27, 96
        %v4276 = vld [vmem:[%s4275] sm:$0xf]
        %v4277 = vld [vmem:[%s4275 + $0x4] sm:$0xf]
        %v4278 = vld [vmem:[%s4275 + $0x8] sm:$0xf]
        %v4279 = vld [vmem:[%s4275 + $0xc] sm:$0xf]
        %v4280 = vld [vmem:[%s4275 + $0x10] sm:$0xf]
        %v4281 = vld [vmem:[%s4275 + $0x14] sm:$0xf]
        %v4282 = vld [vmem:[%s4275 + $0x18] sm:$0xf]
        %v4283 = vld [vmem:[%s4275 + $0x1c] sm:$0xf]
        %s4284 = scalar_lea.vmem [#allocation13], 96
        %v4285 = vld [vmem:[%s4284] sm:$0xf]
        %v4286 = vld [vmem:[%s4284 + $0x4] sm:$0xf]
        %v4287 = vld [vmem:[%s4284 + $0x8] sm:$0xf]
        %v4288 = vld [vmem:[%s4284 + $0xc] sm:$0xf]
        %v4289 = vld [vmem:[%s4284 + $0x10] sm:$0xf]
        %v4290 = vld [vmem:[%s4284 + $0x14] sm:$0xf]
        %v4291 = vld [vmem:[%s4284 + $0x18] sm:$0xf]
        %v4292 = vld [vmem:[%s4284 + $0x1c] sm:$0xf]
        %v4293 = vpack.c.bf16 %v4274, %v4273
        %v4302 = vunpack.c.l.b16 %v4285
        %v4303 = vunpack.c.l.b16 %v4286
        %v4304 = vunpack.c.l.b16 %v4287
        %v4305 = vunpack.c.l.b16 %v4288
        %v4306 = vunpack.c.l.b16 %v4289
        %v4307 = vunpack.c.l.b16 %v4290
        %v4308 = vunpack.c.l.b16 %v4291
        %v4309 = vunpack.c.l.b16 %v4292
        %v4310 = vpack.c.b16 %v4303, %v4302
        %v4311 = vpack.c.b16 %v4305, %v4304
        %v4312 = vpack.c.b16 %v4307, %v4306
        %v4313 = vpack.c.b16 %v4309, %v4308
        %v4319 = vsel %vm1252, %v4293, 0
        %4321 = vmatpush.bf16.msra.mxu0 0
        %4322 = vmatpush.bf16.msra.mxu0 0
        %4323 = vmatpush.bf16.msra.mxu0 0
        %4324 = vmatpush.bf16.msra.mxu0 0
        %4325 = vmatpush.bf16.msra.mxu0 %v4313
        %4326 = vmatpush.bf16.msra.mxu0 %v4312
        %4327 = vmatpush.bf16.msra.mxu0 %v4311
        %4328 = vmatpush.bf16.msra.mxu0 %v4310
        %4329 = vmatmul.bf16.gmra.mxu0 %v4319
        %v4330 = vpop.f32.mrf.mxu0
        %v4331 = vadd.f32 0.0, %v4330
        %v4332 = vpop.f32.mrf.mxu0
        %v4333 = vadd.f32 0.0, %v4332
        %4334 = vdwg.mxu0
        %v4343 = vunpack.c.l.b16 %v4276
        %v4344 = vunpack.c.l.b16 %v4277
        %v4345 = vunpack.c.l.b16 %v4278
        %v4346 = vunpack.c.l.b16 %v4279
        %v4347 = vunpack.c.l.b16 %v4280
        %v4348 = vunpack.c.l.b16 %v4281
        %v4349 = vunpack.c.l.b16 %v4282
        %v4350 = vunpack.c.l.b16 %v4283
        %v4351 = vpack.c.b16 %v4344, %v4343
        %v4352 = vpack.c.b16 %v4346, %v4345
        %v4353 = vpack.c.b16 %v4348, %v4347
        %v4354 = vpack.c.b16 %v4350, %v4349
        %4359 = vmatpush.bf16.msra.mxu0 0
        %4360 = vmatpush.bf16.msra.mxu0 0
        %4361 = vmatpush.bf16.msra.mxu0 0
        %4362 = vmatpush.bf16.msra.mxu0 0
        %4363 = vmatpush.bf16.msra.mxu0 %v4354
        %4364 = vmatpush.bf16.msra.mxu0 %v4353
        %4365 = vmatpush.bf16.msra.mxu0 %v4352
        %4366 = vmatpush.bf16.msra.mxu0 %v4351
        %4367 = vmatmul.bf16.gmra.mxu0 %v3758
        %v4368 = vpop.f32.mrf.mxu0
        %v4369 = vadd.f32 %v4331, %v4368
        %v4370 = vpop.f32.mrf.mxu0
        %v4371 = vadd.f32 %v4333, %v4370
        %4372 = vdwg.mxu0
        %s4373 = scalar_lea.vmem [#allocation15], 3
        %v4374 = vld [vmem:[%s4373] sm:$0x1]
        %v4376 = vperm.slane %v4374, 0
        %v4378 = vadd.f32 %v4369, %v4376
        %v4379 = vadd.f32 %v4371, %v4376
        %v4380 = vmax.f32 %v4378, 0.0
        %v4381 = vmax.f32 %v4379, 0.0
        %s4382 = scalar_lea.vmem %s33, 192
        %v4383 = vld [vmem:[%s4382] sm:$0xf]
        %v4384 = vld [vmem:[%s4382 + $0x4] sm:$0xf]
        %v4385 = vld [vmem:[%s4382 + $0x8] sm:$0xf]
        %v4386 = vld [vmem:[%s4382 + $0xc] sm:$0xf]
        %v4387 = vld [vmem:[%s4382 + $0x10] sm:$0xf]
        %v4388 = vld [vmem:[%s4382 + $0x14] sm:$0xf]
        %v4389 = vld [vmem:[%s4382 + $0x18] sm:$0xf]
        %v4390 = vld [vmem:[%s4382 + $0x1c] sm:$0xf]
        %v4391 = vld [vmem:[%s4382 + $0x20] sm:$0xf]
        %v4392 = vld [vmem:[%s4382 + $0x24] sm:$0xf]
        %v4393 = vld [vmem:[%s4382 + $0x28] sm:$0xf]
        %v4394 = vld [vmem:[%s4382 + $0x2c] sm:$0xf]
        %v4395 = vld [vmem:[%s4382 + $0x30] sm:$0xf]
        %v4396 = vld [vmem:[%s4382 + $0x34] sm:$0xf]
        %v4397 = vld [vmem:[%s4382 + $0x38] sm:$0xf]
        %v4398 = vld [vmem:[%s4382 + $0x3c] sm:$0xf]
        %s4399 = scalar_lea.vmem [#allocation16], 3
        %v4400 = vld [vmem:[%s4399] sm:$0x1]
        %v4401 = vpack.c.bf16 %v4381, %v4380
        %v4403 = vperm.slane %v4400, 0
        %v4421 = vunpack.c.l.b16 %v4383
        %v4422 = vunpack.c.l.b16 %v4384
        %v4423 = vunpack.c.l.b16 %v4385
        %v4424 = vunpack.c.l.b16 %v4386
        %v4425 = vunpack.c.l.b16 %v4387
        %v4426 = vunpack.c.l.b16 %v4388
        %v4427 = vunpack.c.l.b16 %v4389
        %v4428 = vunpack.c.l.b16 %v4390
        %v4429 = vunpack.c.l.b16 %v4391
        %v4430 = vunpack.c.l.b16 %v4392
        %v4431 = vunpack.c.l.b16 %v4393
        %v4432 = vunpack.c.l.b16 %v4394
        %v4433 = vunpack.c.l.b16 %v4395
        %v4434 = vunpack.c.l.b16 %v4396
        %v4435 = vunpack.c.l.b16 %v4397
        %v4436 = vunpack.c.l.b16 %v4398
        %v4437 = vpack.c.b16 %v4422, %v4421
        %v4438 = vpack.c.b16 %v4424, %v4423
        %v4439 = vpack.c.b16 %v4426, %v4425
        %v4440 = vpack.c.b16 %v4428, %v4427
        %v4441 = vpack.c.b16 %v4430, %v4429
        %v4442 = vpack.c.b16 %v4432, %v4431
        %v4443 = vpack.c.b16 %v4434, %v4433
        %v4444 = vpack.c.b16 %v4436, %v4435
        %4453 = vmatpush.bf16.msra.mxu0 %v4444
        %4454 = vmatpush.bf16.msra.mxu0 %v4443
        %4455 = vmatpush.bf16.msra.mxu0 %v4442
        %4456 = vmatpush.bf16.msra.mxu0 %v4441
        %4457 = vmatpush.bf16.msra.mxu0 %v4440
        %4458 = vmatpush.bf16.msra.mxu0 %v4439
        %4459 = vmatpush.bf16.msra.mxu0 %v4438
        %4460 = vmatpush.bf16.msra.mxu0 %v4437
        %4461 = vmatmul.bf16.gmra.mxu0 %v4401
        %v4462 = vpop.f32.mrf.mxu0
        %v4463 = vadd.f32 %v4403, %v4462
        %v4464 = vpop.f32.mrf.mxu0
        %v4465 = vadd.f32 %v4403, %v4464
        %4466 = vdwg.mxu0
        %v4467 = vadd.f32 %v3698, %v4463
        %v4468 = vadd.f32 %v3699, %v4465
        %v4469 = vld [vmem:[#allocation18] sm:$0xf]
        %v4470 = vld [vmem:[#allocation18 + $0x4] sm:$0xf]
        %v4471 = vld [vmem:[#allocation18 + $0x8] sm:$0xf]
        %v4472 = vld [vmem:[#allocation18 + $0xc] sm:$0xf]
        %v4473 = vld [vmem:[#allocation18 + $0x10] sm:$0xf]
        %v4474 = vld [vmem:[#allocation18 + $0x14] sm:$0xf]
        %v4475 = vld [vmem:[#allocation18 + $0x18] sm:$0xf]
        %v4476 = vld [vmem:[#allocation18 + $0x1c] sm:$0xf]
        %v4477 = vld [vmem:[%s39] sm:$0x1]
        %v4478 = vpack.c.bf16 %v4468, %v4467
        %v4480 = vperm.slane %v4477, 0
        %v4490 = vunpack.c.l.b16 %v4469
        %v4491 = vunpack.c.l.b16 %v4470
        %v4492 = vunpack.c.l.b16 %v4471
        %v4493 = vunpack.c.l.b16 %v4472
        %v4494 = vunpack.c.l.b16 %v4473
        %v4495 = vunpack.c.l.b16 %v4474
        %v4496 = vunpack.c.l.b16 %v4475
        %v4497 = vunpack.c.l.b16 %v4476
        %v4498 = vpack.c.b16 %v4491, %v4490
        %v4499 = vpack.c.b16 %v4493, %v4492
        %v4500 = vpack.c.b16 %v4495, %v4494
        %v4501 = vpack.c.b16 %v4497, %v4496
        %v4507 = vsel %vm1252, %v4478, 0
        %4509 = vmatpush.bf16.msra.mxu0 0
        %4510 = vmatpush.bf16.msra.mxu0 0
        %4511 = vmatpush.bf16.msra.mxu0 0
        %4512 = vmatpush.bf16.msra.mxu0 0
        %4513 = vmatpush.bf16.msra.mxu0 %v4501
        %4514 = vmatpush.bf16.msra.mxu0 %v4500
        %4515 = vmatpush.bf16.msra.mxu0 %v4499
        %4516 = vmatpush.bf16.msra.mxu0 %v4498
        %4517 = vmatmul.bf16.gmra.mxu0 %v4507
        %v4518 = vpop.f32.mrf.mxu0
        %v4519 = vadd.f32 %v4480, %v4518
        %v4520 = vpop.f32.mrf.mxu0
        %v4521 = vadd.f32 %v4480, %v4520
        %4522 = vdwg.mxu0
        %v4523 = vmax.f32 %v4519, 0.0
        %v4524 = vmax.f32 %v4521, 0.0
        %v4525 = vld [vmem:[#allocation19] sm:$0xf]
        %v4526 = vld [vmem:[#allocation19 + $0x4] sm:$0xf]
        %v4527 = vld [vmem:[#allocation19 + $0x8] sm:$0xf]
        %v4528 = vld [vmem:[#allocation19 + $0xc] sm:$0xf]
        %v4529 = vld [vmem:[#allocation19 + $0x10] sm:$0xf]
        %v4530 = vld [vmem:[#allocation19 + $0x14] sm:$0xf]
        %v4531 = vld [vmem:[#allocation19 + $0x18] sm:$0xf]
        %v4532 = vld [vmem:[#allocation19 + $0x1c] sm:$0xf]
        %v4533 = vpack.c.bf16 %v4524, %v4523
        %v4534 = vld [vmem:[%s43] sm:$0xff]
        %v4535 = vld [vmem:[%s43 + $0x8] sm:$0xff]
        %v4536 = vld [vmem:[%s43 + $0x10] sm:$0xff]
        %v4537 = vld [vmem:[%s43 + $0x18] sm:$0xff]
        %v4538 = vld [vmem:[%s43 + $0x20] sm:$0xff]
        %v4539 = vld [vmem:[%s43 + $0x28] sm:$0xff]
        %v4540 = vld [vmem:[%s43 + $0x30] sm:$0xff]
        %v4541 = vld [vmem:[%s43 + $0x38] sm:$0xff]
        %4543 = vset.pattern.permute.xlu0 0
        %4544 = vperm.xlu0 %4543, %v4534
        %v4545 = vpop.permute.xlu0 %4544
        %4548 = vset.pattern.permute.xlu0 0
        %4549 = vperm.xlu0 %4548, %v4535
        %v4550 = vpop.permute.xlu0 %4549
        %4553 = vset.pattern.permute.xlu0 0
        %4554 = vperm.xlu0 %4553, %v4536
        %v4555 = vpop.permute.xlu0 %4554
        %4558 = vset.pattern.permute.xlu0 0
        %4559 = vperm.xlu0 %4558, %v4537
        %v4560 = vpop.permute.xlu0 %4559
        %4563 = vset.pattern.permute.xlu0 0
        %4564 = vperm.xlu0 %4563, %v4538
        %v4565 = vpop.permute.xlu0 %4564
        %4568 = vset.pattern.permute.xlu0 0
        %4569 = vperm.xlu0 %4568, %v4539
        %v4570 = vpop.permute.xlu0 %4569
        %4573 = vset.pattern.permute.xlu0 0
        %4574 = vperm.xlu0 %4573, %v4540
        %v4575 = vpop.permute.xlu0 %4574
        %4578 = vset.pattern.permute.xlu0 0
        %4579 = vperm.xlu0 %4578, %v4541
        %v4580 = vpop.permute.xlu0 %4579
        %v4590 = vunpack.c.l.b16 %v4525
        %v4591 = vunpack.c.l.b16 %v4526
        %v4592 = vunpack.c.l.b16 %v4527
        %v4593 = vunpack.c.l.b16 %v4528
        %v4594 = vunpack.c.l.b16 %v4529
        %v4595 = vunpack.c.l.b16 %v4530
        %v4596 = vunpack.c.l.b16 %v4531
        %v4597 = vunpack.c.l.b16 %v4532
        %v4598 = vpack.c.b16 %v4591, %v4590
        %v4599 = vpack.c.b16 %v4593, %v4592
        %v4600 = vpack.c.b16 %v4595, %v4594
        %v4601 = vpack.c.b16 %v4597, %v4596
        %v4603 = vsel %vm1252, %v4598, 0
        %v4606 = vsel %vm1252, %v4599, 0
        %v4609 = vsel %vm1252, %v4600, 0
        %v4612 = vsel %vm1252, %v4601, 0
        %v4615 = vsel %vm1252, %v4533, 0
        %4617 = vmatpush.bf16.xpose.msra.mxu0 0
        %4618 = vmatpush.bf16.xpose.msra.mxu0 0
        %4619 = vmatpush.bf16.xpose.msra.mxu0 0
        %4620 = vmatpush.bf16.xpose.msra.mxu0 0
        %4621 = vmatpush.bf16.xpose.msra.mxu0 0
        %4622 = vmatpush.bf16.xpose.msra.mxu0 0
        %4623 = vmatpush.bf16.xpose.msra.mxu0 0
        %4624 = vmatpush.bf16.xpose.msra.mxu0 %v4615
        %4625 = vmatmul.bf16.gmra.mxu0 %v4603
        %v4626 = vpop.f32.mrf.mxu0
        %v4627 = vadd.f32 %v4545, %v4626
        %v4628 = vpop.f32.mrf.mxu0
        %v4629 = vadd.f32 %v4550, %v4628
        %4630 = vmatmul.bf16.gmra.mxu0 %v4606
        %v4631 = vpop.f32.mrf.mxu0
        %v4632 = vadd.f32 %v4555, %v4631
        %v4633 = vpop.f32.mrf.mxu0
        %v4634 = vadd.f32 %v4560, %v4633
        %4635 = vmatmul.bf16.gmra.mxu0 %v4609
        %v4636 = vpop.f32.mrf.mxu0
        %v4637 = vadd.f32 %v4565, %v4636
        %v4638 = vpop.f32.mrf.mxu0
        %v4639 = vadd.f32 %v4570, %v4638
        %4640 = vmatmul.bf16.gmra.mxu0 %v4612
        %v4641 = vpop.f32.mrf.mxu0
        %v4642 = vadd.f32 %v4575, %v4641
        %v4643 = vpop.f32.mrf.mxu0
        %v4644 = vadd.f32 %v4580, %v4643
        %4645 = vdwg.mxu0
        %v4646 = vmax.f32 %v4627, 0.0
        %v4647 = vmax.f32 %v4629, 0.0
        %v4648 = vmax.f32 %v4632, 0.0
        %v4649 = vmax.f32 %v4634, 0.0
        %v4650 = vmax.f32 %v4637, 0.0
        %v4651 = vmax.f32 %v4639, 0.0
        %v4652 = vmax.f32 %v4642, 0.0
        %v4653 = vmax.f32 %v4644, 0.0
        %4654 = vst.msk [vmem:[%s1156] sm:$0xff] %vm1500, %v4646
        %4655 = vst.msk [vmem:[%s1156 + $0x8] sm:$0xff] %vm1500, %v4647
        %4656 = vst.msk [vmem:[%s1156 + $0x10] sm:$0xff] %vm1500, %v4648
        %4657 = vst.msk [vmem:[%s1156 + $0x18] sm:$0xff] %vm1500, %v4649
        %4658 = vst.msk [vmem:[%s1156 + $0x20] sm:$0xff] %vm1500, %v4650
        %4659 = vst.msk [vmem:[%s1156 + $0x28] sm:$0xff] %vm1500, %v4651
        %4660 = vst.msk [vmem:[%s1156 + $0x30] sm:$0xff] %vm1500, %v4652
        %4661 = vst.msk [vmem:[%s1156 + $0x38] sm:$0xff] %vm1500, %v4653
        %v4662 = vld [vmem:[#allocation21] sm:$0xf]
        %v4663 = vld [vmem:[#allocation21 + $0x4] sm:$0xf]
        %v4664 = vld [vmem:[#allocation21 + $0x8] sm:$0xf]
        %v4665 = vld [vmem:[#allocation21 + $0xc] sm:$0xf]
        %v4666 = vld [vmem:[#allocation21 + $0x10] sm:$0xf]
        %v4667 = vld [vmem:[#allocation21 + $0x14] sm:$0xf]
        %v4668 = vld [vmem:[#allocation21 + $0x18] sm:$0xf]
        %v4669 = vld [vmem:[#allocation21 + $0x1c] sm:$0xf]
        %v4670 = vld [vmem:[%s47] sm:$0x1]
        %v4672 = vperm.slane %v4670, 0
        %v4682 = vunpack.c.l.b16 %v4662
        %v4683 = vunpack.c.l.b16 %v4663
        %v4684 = vunpack.c.l.b16 %v4664
        %v4685 = vunpack.c.l.b16 %v4665
        %v4686 = vunpack.c.l.b16 %v4666
        %v4687 = vunpack.c.l.b16 %v4667
        %v4688 = vunpack.c.l.b16 %v4668
        %v4689 = vunpack.c.l.b16 %v4669
        %v4690 = vpack.c.b16 %v4683, %v4682
        %v4691 = vpack.c.b16 %v4685, %v4684
        %v4692 = vpack.c.b16 %v4687, %v4686
        %v4693 = vpack.c.b16 %v4689, %v4688
        %4698 = vmatpush.bf16.msra.mxu0 0
        %4699 = vmatpush.bf16.msra.mxu0 0
        %4700 = vmatpush.bf16.msra.mxu0 0
        %4701 = vmatpush.bf16.msra.mxu0 0
        %4702 = vmatpush.bf16.msra.mxu0 %v4693
        %4703 = vmatpush.bf16.msra.mxu0 %v4692
        %4704 = vmatpush.bf16.msra.mxu0 %v4691
        %4705 = vmatpush.bf16.msra.mxu0 %v4690
        %4706 = vmatmul.bf16.gmra.mxu0 %v4507
        %v4707 = vpop.f32.mrf.mxu0
        %v4708 = vadd.f32 %v4672, %v4707
        %v4709 = vpop.f32.mrf.mxu0
        %v4710 = vadd.f32 %v4672, %v4709
        %4711 = vdwg.mxu0
        %v4712 = vmax.f32 %v4708, 0.0
        %v4713 = vmax.f32 %v4710, 0.0
        %v4714 = vld [vmem:[#allocation22] sm:$0xf]
        %v4715 = vld [vmem:[#allocation22 + $0x4] sm:$0xf]
        %v4716 = vld [vmem:[#allocation22 + $0x8] sm:$0xf]
        %v4717 = vld [vmem:[#allocation22 + $0xc] sm:$0xf]
        %v4718 = vld [vmem:[#allocation22 + $0x10] sm:$0xf]
        %v4719 = vld [vmem:[#allocation22 + $0x14] sm:$0xf]
        %v4720 = vld [vmem:[#allocation22 + $0x18] sm:$0xf]
        %v4721 = vld [vmem:[#allocation22 + $0x1c] sm:$0xf]
        %v4722 = vld [vmem:[%s51] sm:$0x1]
        %v4723 = vpack.c.bf16 %v4713, %v4712
        %v4725 = vperm.slane %v4722, 0
        %v4735 = vunpack.c.l.b16 %v4714
        %v4736 = vunpack.c.l.b16 %v4715
        %v4737 = vunpack.c.l.b16 %v4716
        %v4738 = vunpack.c.l.b16 %v4717
        %v4739 = vunpack.c.l.b16 %v4718
        %v4740 = vunpack.c.l.b16 %v4719
        %v4741 = vunpack.c.l.b16 %v4720
        %v4742 = vunpack.c.l.b16 %v4721
        %v4743 = vpack.c.b16 %v4736, %v4735
        %v4744 = vpack.c.b16 %v4738, %v4737
        %v4745 = vpack.c.b16 %v4740, %v4739
        %v4746 = vpack.c.b16 %v4742, %v4741
        %v4752 = vsel %vm1252, %v4723, 0
        %4754 = vmatpush.bf16.msra.mxu0 0
        %4755 = vmatpush.bf16.msra.mxu0 0
        %4756 = vmatpush.bf16.msra.mxu0 0
        %4757 = vmatpush.bf16.msra.mxu0 0
        %4758 = vmatpush.bf16.msra.mxu0 %v4746
        %4759 = vmatpush.bf16.msra.mxu0 %v4745
        %4760 = vmatpush.bf16.msra.mxu0 %v4744
        %4761 = vmatpush.bf16.msra.mxu0 %v4743
        %4762 = vmatmul.bf16.gmra.mxu0 %v4752
        %v4763 = vpop.f32.mrf.mxu0
        %v4764 = vadd.f32 %v4725, %v4763
        %v4765 = vpop.f32.mrf.mxu0
        %v4766 = vadd.f32 %v4725, %v4765
        %4767 = vdwg.mxu0
        %v4768 = vmax.f32 %v4764, 0.0
        %v4769 = vmax.f32 %v4766, 0.0
        %v4770 = vld [vmem:[%s53] sm:$0xf]
        %v4771 = vld [vmem:[%s53 + $0x4] sm:$0xf]
        %v4772 = vld [vmem:[%s53 + $0x8] sm:$0xf]
        %v4773 = vld [vmem:[%s53 + $0xc] sm:$0xf]
        %v4774 = vld [vmem:[%s53 + $0x10] sm:$0xf]
        %v4775 = vld [vmem:[%s53 + $0x14] sm:$0xf]
        %v4776 = vld [vmem:[%s53 + $0x18] sm:$0xf]
        %v4777 = vld [vmem:[%s53 + $0x1c] sm:$0xf]
        %v4778 = vld [vmem:[%s55] sm:$0x1]
        %v4779 = vpack.c.bf16 %v4769, %v4768
        %v4781 = vperm.slane %v4778, 0
        %v4791 = vunpack.c.l.b16 %v4770
        %v4792 = vunpack.c.l.b16 %v4771
        %v4793 = vunpack.c.l.b16 %v4772
        %v4794 = vunpack.c.l.b16 %v4773
        %v4795 = vunpack.c.l.b16 %v4774
        %v4796 = vunpack.c.l.b16 %v4775
        %v4797 = vunpack.c.l.b16 %v4776
        %v4798 = vunpack.c.l.b16 %v4777
        %v4799 = vpack.c.b16 %v4792, %v4791
        %v4800 = vpack.c.b16 %v4794, %v4793
        %v4801 = vpack.c.b16 %v4796, %v4795
        %v4802 = vpack.c.b16 %v4798, %v4797
        %v4808 = vsel %vm1252, %v4779, 0
        %4810 = vmatpush.bf16.msra.mxu0 0
        %4811 = vmatpush.bf16.msra.mxu0 0
        %4812 = vmatpush.bf16.msra.mxu0 0
        %4813 = vmatpush.bf16.msra.mxu0 0
        %4814 = vmatpush.bf16.msra.mxu0 %v4802
        %4815 = vmatpush.bf16.msra.mxu0 %v4801
        %4816 = vmatpush.bf16.msra.mxu0 %v4800
        %4817 = vmatpush.bf16.msra.mxu0 %v4799
        %4818 = vmatmul.bf16.gmra.mxu0 %v4808
        %v4819 = vpop.f32.mrf.mxu0
        %v4820 = vadd.f32 %v4781, %v4819
        %v4821 = vpop.f32.mrf.mxu0
        %v4822 = vadd.f32 %v4781, %v4821
        %4823 = vdwg.mxu0
        %v4824 = vmax.f32 %v4820, -1.0
        %v4825 = vmax.f32 %v4822, -1.0
        %v4826 = vmin.f32 %v4824, 1.0
        %v4827 = vmin.f32 %v4825, 1.0
        %vm4828 = vcmask 15360
        %4829 = vst.msk [vmem:[%s1161] sm:$0xff] %vm4828, %v4826
        %4830 = vst.msk [vmem:[%s1161 + $0x8] sm:$0xff] %vm4828, %v4827
        %p4831 = scmp.lt.s32.totalorder %s79, 1
        %s4832 = scalar_select %p4831, %s79, 1
        %s4833 = smul.addr %s4832, 8
        %s4834 = smul.addr %s4833, 8
        %s4835 = scalar_lea.vmem %s57, %s4834
        %p4836 = scmp.lt.s32.totalorder %s79, 1
        %s4837 = scalar_select %p4836, %s79, 1
        %s4838 = smul.addr %s4837, 2
        %s4839 = smul.addr %s4838, 8
        %s4840 = scalar_lea.vmem %s59, %s4839
        // Predicated region
        $region189: #{attentional_gnn_forward.1} parent=131 // pred_check
          %p4841 = pneg %p695
        $region190: #{attentional_gnn_forward.1} parent=131 // pred_check_branch
          %4843 = sbr.rel (%p4841) target = $region192
        $region191: #{attentional_gnn_forward.1} parent=131 // pred_region
          _
        $region192: #{attentional_gnn_forward.1} parent=131 // pred_fallthru
          _
        // Predicated region
        $region193: #{attentional_gnn_forward.1} parent=131 // pred_check
          %p4844 = pneg %p721
        $region194: #{attentional_gnn_forward.1} parent=131 // pred_check_branch
          %4846 = sbr.rel (%p4844) target = $region196
        $region195: #{attentional_gnn_forward.1} parent=131 // pred_region
          _
        $region196: #{attentional_gnn_forward.1} parent=131 // pred_fallthru
          _
      $region132: #{attentional_gnn_forward.1} parent=5 // pred_fallthru
        _
      %p4847 = scmp.le.s32.totalorder 2, %s74
      // Predicated region
      $region197: #{attentional_gnn_forward.1} parent=5 // pred_check
        %p4848 = pneg %p4847
      $region198: #{attentional_gnn_forward.1} parent=5 // pred_check_branch
        %4850 = sbr.rel (%p4848) target = $region200
      $region199: #{attentional_gnn_forward.1} parent=5 // pred_region
        %s4851 = ssub.s32 %s74, 2
        // Predicated region
        $region201: #{attentional_gnn_forward.1} parent=199 // pred_check
          %p4852 = pneg %p701
        $region202: #{attentional_gnn_forward.1} parent=199 // pred_check_branch
          %4854 = sbr.rel (%p4852) target = $region204
        $region203: #{attentional_gnn_forward.1} parent=199 // pred_region
          %p4855 = scmp.lt.s32.totalorder %s80, 1
          %s4856 = scalar_select %p4855, %s80, 1
          %s4857 = smul.addr %s4856, 8
          %s4858 = smul.addr %s4857, 8
          %s4859 = scalar_lea.vmem %s57, %s4858
        $region204: #{attentional_gnn_forward.1} parent=199 // pred_fallthru
          _
        // Predicated region
        $region205: #{attentional_gnn_forward.1} parent=199 // pred_check
          %p4860 = pneg %p727
        $region206: #{attentional_gnn_forward.1} parent=199 // pred_check_branch
          %4862 = sbr.rel (%p4860) target = $region208
        $region207: #{attentional_gnn_forward.1} parent=199 // pred_region
          %p4863 = scmp.lt.s32.totalorder %s80, 1
          %s4864 = scalar_select %p4863, %s80, 1
          %s4865 = smul.addr %s4864, 2
          %s4866 = smul.addr %s4865, 8
          %s4867 = scalar_lea.vmem %s59, %s4866
        $region208: #{attentional_gnn_forward.1} parent=199 // pred_fallthru
          _
      $region200: #{attentional_gnn_forward.1} parent=5 // pred_fallthru
        _
    $region6: #{attentional_gnn_forward.1} parent=1 // loop_footer
      %s78 = sadd.s32 1, %s74
    $region7: #{attentional_gnn_forward.1} parent=1 // loop_footer_branch
      %73 = sbr.rel target = $region3
    $region8: #{attentional_gnn_forward.1} parent=1 // loop_exit
      _
    %4868 = vsyncpa [#allocation3], 1
    %s4869 = scalar_lea.sflag [#allocation3], 1
    %4870 = vsyncpa %s4869, 1
    %4871 = vsyncpa [#allocation5], 1
    %4872 = vsyncpa [#allocation8], 1
    %4873 = vsyncpa [#allocation11], 1
    %4874 = vsyncpa [#allocation14], 1
    %4875 = vsyncpa [#allocation17], 1
    %4876 = vsyncpa [#allocation20], 1
    %4877 = vsyncpa [#allocation23], 1

</llo_original>
